<compile_context>
chip_gen: v7x
topology: tpu7x:2x2x1
jax: 0.10.0
libtpu: 0.0.40
codegen_flags: <defaults>
</compile_context>

<pallas_src>
import functools
import math

import jax
import jax.numpy as jnp
from jax.experimental import pallas as pl
from jax.experimental.pallas import tpu as pltpu

HEADS = 2
NEG_BIG = -1e30


def _gat_kernel(sd_ref, tmsg_ref, dstr_ref,                 # edge-tiled inputs
                qn_ref, kvl_ref, skip_ref,                   # resident node tables
                wt_ref, bt_ref, we_t_ref, we_m_ref, sel_ref, # resident weights
                out_ref,
                m_scr, la_scr,
                *, heads, head_dim, num_nodes, mxu_dtype):
    f32 = jnp.float32
    hc = heads * head_dim
    dot32 = functools.partial(jnp.dot, preferred_element_type=f32)
    step = pl.program_id(0)
    et = sd_ref.shape[0]
    msg_dim = tmsg_ref.shape[1] - 1

    @pl.when(step == 0)
    def _init():
        m_scr[...] = jnp.full(m_scr.shape, NEG_BIG, f32)
        la_scr[...] = jnp.zeros(la_scr.shape, f32)

    # --- selector masks built on the fly from indices (never touch HBM) -------
    src = sd_ref[:, 0:1]                                    # [Et,1] int32
    dst = sd_ref[:, 1:2]
    col = jax.lax.broadcasted_iota(jnp.int32, (et, num_nodes), 1)
    s_mask = col == src                                     # padded edges (id==N) match nothing
    d_mask = col == dst
    S = s_mask.astype(mxu_dtype)                            # [Et, N]
    D = d_mask.astype(mxu_dtype)
    # scatter mask built directly transposed -> Et contraction is a plain matmul
    row_nodes = jax.lax.broadcasted_iota(jnp.int32, (num_nodes, et), 0)
    Dt = (row_nodes == dstr_ref[...]).astype(mxu_dtype)     # [N, Et]

    # --- fused gathers on the MXU ---------------------------------------------
    q_e = dot32(D, qn_ref[...])                             # [Et, HC]    query from dst (x_i)
    kvl = dot32(S, kvl_ref[...])                            # [Et, 2HC+1] key/value/last_update from src (x_j)
    k_e = kvl[:, 0:hc]
    v_e = kvl[:, hc:2 * hc]
    lu_e = kvl[:, 2 * hc:2 * hc + 1]

    # --- TimeEncoder + lin_edge (f32; independent of N) -----------------------
    msg_e = tmsg_ref[:, 0:msg_dim]
    t_e = tmsg_ref[:, msg_dim:msg_dim + 1]
    rel_t = lu_e - t_e                                      # [Et, 1]
    rel_enc = jnp.cos(rel_t * wt_ref[...] + bt_ref[...])    # [Et, TD]
    e_proj = dot32(rel_enc, we_t_ref[...]) + dot32(msg_e, we_m_ref[...])
    k_e = k_e + e_proj
    v_e = v_e + e_proj

    # --- per-head scores (small K=HC dot, f32) ---------------------------------
    scale = 1.0 / math.sqrt(head_dim)
    a = dot32(q_e * k_e, sel_ref[...]) * scale              # [Et, H]

    # --- per-node tile max (rows) + per-edge base gather (XLU, no MXU pass) ----
    rows, bases = [], []
    for h in range(heads):
        a_h = a[:, h:h + 1]                                 # [Et, 1]
        r = jnp.max(jnp.where(d_mask, a_h, NEG_BIG), axis=0, keepdims=True)   # [1, N]
        rows.append(r)
        # one-hot masked lane-sum == gather r[dst]; padded edges -> 0 (harmless)
        bases.append(jnp.sum(jnp.where(d_mask, r, 0.0), axis=1, keepdims=True))
    tmax_row = jnp.concatenate(rows, axis=0)                # [H, N]
    base = jnp.concatenate(bases, axis=1)                   # [Et, H]

    p = jnp.exp(a - base)                                   # [Et, H], <= 1 for real edges

    # per-channel alpha via lane select (replaces the K=2 sel_t MXU dot)
    chan_h0 = jax.lax.broadcasted_iota(jnp.int32, (1, hc), 1) < head_dim
    pc = jnp.where(chan_h0, p[:, 0:1], p[:, 1:2])           # [Et, HC]

    # --- fused scatter: [denominator | numerator] in ONE Et-contraction dot ----
    payload = jnp.concatenate([p, pc * v_e], axis=1).astype(mxu_dtype)   # [Et, H+HC]
    scat = dot32(Dt, payload)                               # [N, H+HC]

    # --- node-level online-softmax merge (f32, lane-packed state) --------------
    tmax = tmax_row.T                                       # [N, H] (tiny relayout)
    m_old = m_scr[...]
    m_new = jnp.maximum(m_old, tmax)
    f_old = jnp.exp(m_old - m_new)                          # [N, H]
    f_tile = jnp.exp(tmax - m_new)                          # [N, H]
    lane = jax.lax.broadcasted_iota(jnp.int32, (1, heads + hc), 1)
    lane_h0 = jnp.logical_or(lane == 0,
                             jnp.logical_and(lane >= heads, lane < heads + head_dim))
    f_old_p = jnp.where(lane_h0, f_old[:, 0:1], f_old[:, 1:2])     # [N, H+HC]
    f_tile_p = jnp.where(lane_h0, f_tile[:, 0:1], f_tile[:, 1:2])
    m_scr[...] = m_new
    la_scr[...] = la_scr[...] * f_old_p + scat * f_tile_p

    # --- last step: normalize, add skip, single store ---------------------------
    @pl.when(step == pl.num_programs(0) - 1)
    def _finalize():
        la = la_scr[...]
        l = la[:, 0:heads]                                  # [N, H]  denominators
        acc = la[:, heads:heads + hc]                       # [N, HC] numerators
        l_full = jnp.where(chan_h0, l[:, 0:1], l[:, 1:2])   # [N, HC]
        denom = jnp.where(l_full > 0.0, l_full, 1.0)        # 0-in-degree -> skip only
        out_ref[...] = acc * pl.reciprocal(denom, approx=False) + skip_ref[...]
        # TODO(synk): dropout(p=0.1) on alpha is eval-mode identity; training-mode
        # stochastic dropout is not implemented.


def graph_attention_embedding(x, last_update, edge_index, t, msg, params, *,
                              edge_tile=256, mxu_dtype=jnp.bfloat16,
                              vmem_limit_bytes=32 * 1024 * 1024):
    N, F = x.shape
    E = int(t.shape[0])
    hc = params["wq"].shape[1]
    assert HEADS == 2 and hc % HEADS == 0
    head_dim = hc // HEADS
    msg_dim = msg.shape[1]
    td = params["wt"].shape[1]
    f32 = jnp.float32

    # Node-level projections are plain dense GEMMs: do them in XLA, keep only the
    # per-node tables resident in the kernel (drops x + q/k/v/skip weights from VMEM).
    x32 = x.astype(f32)
    qn = x32 @ params["wq"] + params["bq"]                                  # [N, HC]
    kn = x32 @ params["wk"] + params["bk"]
    vn = x32 @ params["wv"] + params["bv"]
    kvl = jnp.concatenate([kn, vn, last_update.astype(f32).reshape(N, 1)], axis=1)
    skip = x32 @ params["ws"] + params["bs"]                                # [N, HC]

    # head-selector for the per-head score reduction, hoisted out of the kernel
    sel = (jnp.arange(hc)[:, None] // head_dim ==
           jnp.arange(HEADS)[None, :]).astype(f32)                          # [HC, H]

    n_tiles = max(1, pl.cdiv(E, edge_tile))
    e_pad = n_tiles * edge_tile
    pad = e_pad - E
    # Padded edges point at node index N (matches no real node) => inert.
    src = jnp.pad(edge_index[0].astype(jnp.int32), (0, pad), constant_values=N)
    dst = jnp.pad(edge_index[1].astype(jnp.int32), (0, pad), constant_values=N)
    sd = jnp.stack([src, dst], axis=1)                                      # [Ep, 2]
    tmsg = jnp.concatenate(
        [jnp.pad(msg.astype(f32), ((0, pad), (0, 0))),
         jnp.pad(t.astype(f32), (0, pad)).reshape(e_pad, 1)], axis=1)       # [Ep, MSG+1]
    dstr = dst.reshape(1, e_pad)                                            # [1, Ep]

    inputs = (
        sd, tmsg, dstr,
        qn.astype(mxu_dtype), kvl.astype(mxu_dtype), skip,
        params["wt"].astype(f32), params["bt"].astype(f32),
        params["we_t"].astype(f32), params["we_m"].astype(f32), sel,
    )

    def resident(shape):
        return pl.BlockSpec(shape, lambda i: (0,) * len(shape))

    in_specs = [
        pl.BlockSpec((edge_tile, 2), lambda i: (i, 0)),                     # src|dst
        pl.BlockSpec((edge_tile, msg_dim + 1), lambda i: (i, 0)),           # msg|t
        pl.BlockSpec((1, edge_tile), lambda i: (0, i)),                     # dst row
        resident((N, hc)), resident((N, 2 * hc + 1)), resident((N, hc)),
        resident((1, td)), resident((1, td)),
        resident((td, hc)), resident((msg_dim, hc)),
        resident((hc, HEADS)),
    ]

    kernel = functools.partial(_gat_kernel, heads=HEADS, head_dim=head_dim,
                               num_nodes=N, mxu_dtype=mxu_dtype)
    return pl.pallas_call(
        kernel,
        out_shape=jax.ShapeDtypeStruct((N, hc), jnp.float32),
        grid_spec=pltpu.PrefetchScalarGridSpec(
            num_scalar_prefetch=0,
            grid=(n_tiles,),
            in_specs=in_specs,
            out_specs=pl.BlockSpec((N, hc), lambda i: (0, 0)),
            scratch_shapes=[
                pltpu.VMEM((N, HEADS), jnp.float32),          # running per-node max
                pltpu.VMEM((N, HEADS + hc), jnp.float32),     # packed [denominator | numerator]
            ],
        ),
        compiler_params=pltpu.CompilerParams(
            dimension_semantics=("arbitrary",),               # sequential reduction over edge tiles
            vmem_limit_bytes=vmem_limit_bytes,
        ),
    )(*inputs)


def reference(x, last_update, edge_index, t, msg, params):
    """Pure-JAX reference of the PyTorch forward (eval mode)."""
    src, dst = edge_index[0], edge_index[1]
    N = x.shape[0]
    hc = params["wq"].shape[1]
    C = hc // HEADS
    rel_t = (last_update[src] - t).astype(x.dtype)
    rel_enc = jnp.cos(rel_t[:, None] * params["wt"] + params["bt"])
    edge_attr = jnp.concatenate([rel_enc, msg], axis=-1)
    we = jnp.concatenate([params["we_t"], params["we_m"]], axis=0)
    e_proj = edge_attr @ we
    q = x @ params["wq"] + params["bq"]
    k = x @ params["wk"] + params["bk"]
    v = x @ params["wv"] + params["bv"]
    skip = x @ params["ws"] + params["bs"]
    q_e = q[dst]
    k_e = k[src] + e_proj
    v_e = v[src] + e_proj
    outs = []
    for h in range(HEADS):
        sl = slice(h * C, (h + 1) * C)
        a = jnp.sum(q_e[:, sl] * k_e[:, sl], axis=1) / math.sqrt(C)
        m = jax.ops.segment_max(a, dst, num_segments=N)
        ex = jnp.exp(a - m[dst])
        den = jax.ops.segment_sum(ex, dst, num_segments=N)
        alpha = ex / den[dst]
        outs.append(jax.ops.segment_sum(v_e[:, sl] * alpha[:, None], dst, num_segments=N))
    return jnp.concatenate(outs, axis=1) + skip


if __name__ == "__main__":
    # Small shapes consistent with the module; E is not a tile multiple so padding,
    # single-tile and multi-tile online-softmax accumulation are all exercised.
    N, E = 64, 200               # nodes, edges
    F = 32                       # in_channels (TGN memory dim)
    OUT = 32                     # out_channels -> heads=2, per-head C=16
    MSG = 16                     # msg_dim
    TD = 16                      # time_enc.out_channels (edge_dim = MSG + TD)
    HC = OUT

    key = jax.random.PRNGKey(0)
    ks = jax.random.split(key, 20)

    def init(k, shape, scale=0.1):
        return (scale * jax.random.normal(k, shape)).astype(jnp.float32)

    params = dict(
        wt=init(ks[0], (1, TD)), bt=init(ks[1], (1, TD)),       # TimeEncoder Linear(1, TD)
        wq=init(ks[2], (F, HC)), bq=init(ks[3], (1, HC)),       # lin_query
        wk=init(ks[4], (F, HC)), bk=init(ks[5], (1, HC)),       # lin_key
        wv=init(ks[6], (F, HC)), bv=init(ks[7], (1, HC)),       # lin_value
        we_t=init(ks[8], (TD, HC)),                             # lin_edge (bias-free), time part
        we_m=init(ks[9], (MSG, HC)),                            # lin_edge (bias-free), msg part
        ws=init(ks[10], (F, HC)), bs=init(ks[11], (1, HC)),     # lin_skip
    )

    x = jax.random.normal(ks[12], (N, F), dtype=jnp.float32)
    last_update = jax.random.uniform(ks[13], (N,), minval=0.0, maxval=10.0, dtype=jnp.float32)
    edge_index = jax.random.randint(ks[14], (2, E), 0, N, dtype=jnp.int32)
    t = jax.random.uniform(ks[15], (E,), minval=0.0, maxval=10.0, dtype=jnp.float32)
    msg = jax.random.normal(ks[16], (E, MSG), dtype=jnp.float32)

    ref = reference(x, last_update, edge_index, t, msg, params)

    # f32 MXU operands -> exact match; bf16 MXU operands (default) -> fast path with
    # small, bounded drift (selectors are exact in bf16, payload tables are rounded).
    configs = [
        dict(mxu_dtype=jnp.float32, edge_tile=128, atol=2e-3, rtol=2e-3),
        dict(mxu_dtype=jnp.bfloat16, edge_tile=256, atol=7.5e-2, rtol=7.5e-2),
        dict(mxu_dtype=jnp.bfloat16, edge_tile=128, atol=7.5e-2, rtol=7.5e-2),
    ]
    for cfg in configs:
        out = graph_attention_embedding(
            x, last_update, edge_index, t, msg, params,
            edge_tile=cfg["edge_tile"], mxu_dtype=cfg["mxu_dtype"])
        out = jax.block_until_ready(out)
        if not jnp.allclose(out, ref, atol=cfg["atol"], rtol=cfg["rtol"]):
            err = float(jnp.max(jnp.abs(out - ref)))
            raise AssertionError(
                f"Pallas kernel mismatch (mxu_dtype={cfg['mxu_dtype'].__name__}, "
                f"edge_tile={cfg['edge_tile']}, max abs err {err})")

    print("KERNEL_OK")
</pallas_src>

<mosaic_0001>
module attributes {stable_mosaic.version = 11 : i64} {
  func.func @_gat_kernel(%arg0: i32, %arg1: memref<128x2xi32, #tpu.memory_space<vmem>>, %arg2: memref<128x17xf32, #tpu.memory_space<vmem>>, %arg3: memref<1x128xi32, #tpu.memory_space<vmem>>, %arg4: memref<64x32xf32, #tpu.memory_space<vmem>>, %arg5: memref<64x65xf32, #tpu.memory_space<vmem>>, %arg6: memref<64x32xf32, #tpu.memory_space<vmem>>, %arg7: memref<1x16xf32, #tpu.memory_space<vmem>>, %arg8: memref<1x16xf32, #tpu.memory_space<vmem>>, %arg9: memref<16x32xf32, #tpu.memory_space<vmem>>, %arg10: memref<16x32xf32, #tpu.memory_space<vmem>>, %arg11: memref<32x2xf32, #tpu.memory_space<vmem>>, %arg12: memref<64x32xf32, #tpu.memory_space<vmem>>, %arg13: memref<64x2xf32, #tpu.memory_space<vmem>>, %arg14: memref<64x34xf32, #tpu.memory_space<vmem>>) attributes {dimension_semantics = [#tpu.dimension_semantics<arbitrary>], iteration_bounds = array<i64: 2>, scalar_prefetch = 0 : i64, scratch_operands = 2 : i64, tpu.core_type = #tpu.core_type<tc>, window_params = [{transform_indices = @transform_0, window_bounds = array<i64: 128, 2>}, {transform_indices = @transform_1, window_bounds = array<i64: 128, 17>}, {transform_indices = @transform_2, window_bounds = array<i64: 1, 128>}, {pipeline_mode = #tpu.pipeline_mode<synchronous>, transform_indices = @transform_3, window_bounds = array<i64: 64, 32>}, {pipeline_mode = #tpu.pipeline_mode<synchronous>, transform_indices = @transform_4, window_bounds = array<i64: 64, 65>}, {pipeline_mode = #tpu.pipeline_mode<synchronous>, transform_indices = @transform_5, window_bounds = array<i64: 64, 32>}, {pipeline_mode = #tpu.pipeline_mode<synchronous>, transform_indices = @transform_6, window_bounds = array<i64: 1, 16>}, {pipeline_mode = #tpu.pipeline_mode<synchronous>, transform_indices = @transform_7, window_bounds = array<i64: 1, 16>}, {pipeline_mode = #tpu.pipeline_mode<synchronous>, transform_indices = @transform_8, window_bounds = array<i64: 16, 32>}, {pipeline_mode = #tpu.pipeline_mode<synchronous>, transform_indices = @transform_9, window_bounds = array<i64: 16, 32>}, {pipeline_mode = #tpu.pipeline_mode<synchronous>, transform_indices = @transform_10, window_bounds = array<i64: 32, 2>}, {pipeline_mode = #tpu.pipeline_mode<synchronous>, transform_indices = @transform_11, window_bounds = array<i64: 64, 32>}]} {
    %c0_i32 = arith.constant 0 : i32
    %0 = arith.cmpi eq, %arg0, %c0_i32 : i32
    %1 = arith.extui %0 : i1 to i32
    %c0_i32_0 = arith.constant 0 : i32
    %2 = arith.cmpi ne, %1, %c0_i32_0 : i32
    scf.if %2 {
      %cst_46 = arith.constant -1.000000e+30 : f32
      %138 = vector.broadcast %cst_46 : f32 to vector<64x2xf32>
      %c0_47 = arith.constant 0 : index
      %c0_48 = arith.constant 0 : index
      %139 = vector.load %arg13[%c0_47, %c0_48] : memref<64x2xf32, #tpu.memory_space<vmem>>, vector<64x2xf32>
      tpu.vector_store %arg13[%c0_47, %c0_48], %138 {strides = array<i32>} : memref<64x2xf32, #tpu.memory_space<vmem>>, vector<64x2xf32>,
      %cst_49 = arith.constant 0.000000e+00 : f32
      %140 = vector.broadcast %cst_49 : f32 to vector<64x34xf32>
      %c0_50 = arith.constant 0 : index
      %c0_51 = arith.constant 0 : index
      %141 = vector.load %arg14[%c0_50, %c0_51] : memref<64x34xf32, #tpu.memory_space<vmem>>, vector<64x34xf32>
      tpu.vector_store %arg14[%c0_50, %c0_51], %140 {strides = array<i32>} : memref<64x34xf32, #tpu.memory_space<vmem>>, vector<64x34xf32>,
    } else {
    }
    %c0 = arith.constant 0 : index
    %c0_1 = arith.constant 0 : index
    %3 = vector.load %arg1[%c0, %c0_1] : memref<128x2xi32, #tpu.memory_space<vmem>>, vector<128x1xi32>
    %c0_2 = arith.constant 0 : index
    %c1 = arith.constant 1 : index
    %4 = vector.load %arg1[%c0_2, %c1] : memref<128x2xi32, #tpu.memory_space<vmem>>, vector<128x1xi32>
    %5 = tpu.iota {dimensions = array<i32: 1>} : vector<128x64xi32>
    %6 = vector.broadcast %3 : vector<128x1xi32> to vector<128x64xi32>
    %7 = arith.cmpi eq, %5, %6 : vector<128x64xi32>
    %8 = vector.broadcast %4 : vector<128x1xi32> to vector<128x64xi32>
    %9 = arith.cmpi eq, %5, %8 : vector<128x64xi32>
    %10 = arith.extui %7 : vector<128x64xi1> to vector<128x64xi32>
    %11 = arith.sitofp %10 : vector<128x64xi32> to vector<128x64xf32>
    %12 = arith.extui %9 : vector<128x64xi1> to vector<128x64xi32>
    %13 = arith.sitofp %12 : vector<128x64xi32> to vector<128x64xf32>
    %14 = tpu.iota {dimensions = array<i32: 0>} : vector<64x128xi32>
    %c0_3 = arith.constant 0 : index
    %c0_4 = arith.constant 0 : index
    %15 = vector.load %arg3[%c0_3, %c0_4] : memref<1x128xi32, #tpu.memory_space<vmem>>, vector<1x128xi32>
    %16 = vector.broadcast %15 : vector<1x128xi32> to vector<64x128xi32>
    %17 = arith.cmpi eq, %14, %16 : vector<64x128xi32>
    %18 = arith.extui %17 : vector<64x128xi1> to vector<64x128xi32>
    %19 = arith.sitofp %18 : vector<64x128xi32> to vector<64x128xf32>
    %c0_5 = arith.constant 0 : index
    %c0_6 = arith.constant 0 : index
    %20 = vector.load %arg4[%c0_5, %c0_6] : memref<64x32xf32, #tpu.memory_space<vmem>>, vector<64x32xf32>
    %cst = arith.constant dense<0.000000e+00> : vector<128x32xf32>
    %21 = tpu.matmul %13, %20, %cst {dimension_numbers = #tpu.dot_dimension_numbers<[1], [0], [0], [1], [0, 0, 1, 1], [], []>} : vector<128x64xf32>, vector<64x32xf32>, vector<128x32xf32> -> vector<128x32xf32>
    %c0_7 = arith.constant 0 : index
    %c0_8 = arith.constant 0 : index
    %22 = vector.load %arg5[%c0_7, %c0_8] : memref<64x65xf32, #tpu.memory_space<vmem>>, vector<64x65xf32>
    %cst_9 = arith.constant dense<0.000000e+00> : vector<128x65xf32>
    %23 = tpu.matmul %11, %22, %cst_9 {dimension_numbers = #tpu.dot_dimension_numbers<[1], [0], [0], [1], [0, 0, 1, 1], [], []>} : vector<128x64xf32>, vector<64x65xf32>, vector<128x65xf32> -> vector<128x65xf32>
    %24 = vector.extract_strided_slice %23 {offsets = [0, 0], sizes = [128, 32], strides = [1, 1]} : vector<128x65xf32> to vector<128x32xf32>
    %25 = vector.extract_strided_slice %23 {offsets = [0, 32], sizes = [128, 32], strides = [1, 1]} : vector<128x65xf32> to vector<128x32xf32>
    %26 = vector.extract_strided_slice %23 {offsets = [0, 64], sizes = [128, 1], strides = [1, 1]} : vector<128x65xf32> to vector<128x1xf32>
    %c0_10 = arith.constant 0 : index
    %c0_11 = arith.constant 0 : index
    %27 = vector.load %arg2[%c0_10, %c0_11] : memref<128x17xf32, #tpu.memory_space<vmem>>, vector<128x16xf32>
    %c0_12 = arith.constant 0 : index
    %c16 = arith.constant 16 : index
    %28 = vector.load %arg2[%c0_12, %c16] : memref<128x17xf32, #tpu.memory_space<vmem>>, vector<128x1xf32>
    %29 = arith.subf %26, %28 : vector<128x1xf32>
    %c0_13 = arith.constant 0 : index
    %c0_14 = arith.constant 0 : index
    %30 = vector.load %arg7[%c0_13, %c0_14] : memref<1x16xf32, #tpu.memory_space<vmem>>, vector<1x16xf32>
    %31 = vector.broadcast %29 : vector<128x1xf32> to vector<128x16xf32>
    %32 = vector.broadcast %30 : vector<1x16xf32> to vector<128x16xf32>
    %33 = arith.mulf %31, %32 : vector<128x16xf32>
    %c0_15 = arith.constant 0 : index
    %c0_16 = arith.constant 0 : index
    %34 = vector.load %arg8[%c0_15, %c0_16] : memref<1x16xf32, #tpu.memory_space<vmem>>, vector<1x16xf32>
    %35 = vector.broadcast %34 : vector<1x16xf32> to vector<128x16xf32>
    %36 = arith.addf %33, %35 : vector<128x16xf32>
    %37 = math.cos %36 : vector<128x16xf32>
    %c0_17 = arith.constant 0 : index
    %c0_18 = arith.constant 0 : index
    %38 = vector.load %arg9[%c0_17, %c0_18] : memref<16x32xf32, #tpu.memory_space<vmem>>, vector<16x32xf32>
    %cst_19 = arith.constant dense<0.000000e+00> : vector<128x32xf32>
    %39 = tpu.matmul %37, %38, %cst_19 {dimension_numbers = #tpu.dot_dimension_numbers<[1], [0], [0], [1], [0, 0, 1, 1], [], []>} : vector<128x16xf32>, vector<16x32xf32>, vector<128x32xf32> -> vector<128x32xf32>
    %c0_20 = arith.constant 0 : index
    %c0_21 = arith.constant 0 : index
    %40 = vector.load %arg10[%c0_20, %c0_21] : memref<16x32xf32, #tpu.memory_space<vmem>>, vector<16x32xf32>
    %cst_22 = arith.constant dense<0.000000e+00> : vector<128x32xf32>
    %41 = tpu.matmul %27, %40, %cst_22 {dimension_numbers = #tpu.dot_dimension_numbers<[1], [0], [0], [1], [0, 0, 1, 1], [], []>} : vector<128x16xf32>, vector<16x32xf32>, vector<128x32xf32> -> vector<128x32xf32>
    %42 = arith.addf %39, %41 : vector<128x32xf32>
    %43 = arith.addf %24, %42 : vector<128x32xf32>
    %44 = arith.addf %25, %42 : vector<128x32xf32>
    %45 = arith.mulf %21, %43 : vector<128x32xf32>
    %c0_23 = arith.constant 0 : index
    %c0_24 = arith.constant 0 : index
    %46 = vector.load %arg11[%c0_23, %c0_24] : memref<32x2xf32, #tpu.memory_space<vmem>>, vector<32x2xf32>
    %cst_25 = arith.constant dense<0.000000e+00> : vector<128x2xf32>
    %47 = tpu.matmul %45, %46, %cst_25 {dimension_numbers = #tpu.dot_dimension_numbers<[1], [0], [0], [1], [0, 0, 1, 1], [], []>} : vector<128x32xf32>, vector<32x2xf32>, vector<128x2xf32> -> vector<128x2xf32>
    %cst_26 = arith.constant 2.500000e-01 : f32
    %48 = vector.broadcast %cst_26 : f32 to vector<128x2xf32>
    %49 = arith.mulf %47, %48 : vector<128x2xf32>
    %50 = vector.extract_strided_slice %49 {offsets = [0, 0], sizes = [128, 1], strides = [1, 1]} : vector<128x2xf32> to vector<128x1xf32>
    %cst_27 = arith.constant -1.000000e+30 : f32
    %51 = vector.shape_cast %50 : vector<128x1xf32> to vector<128x1xf32>
    %52 = vector.broadcast %51 : vector<128x1xf32> to vector<128x64xf32>
    %53 = vector.broadcast %cst_27 : f32 to vector<128x64xf32>
    %54 = arith.select %9, %52, %53 : vector<128x64xi1>, vector<128x64xf32>
    %cst_28 = arith.constant dense<0xFF800000> : vector<64xf32>
    %55 = vector.multi_reduction <maximumf>, %54, %cst_28 [0] : vector<128x64xf32> to vector<64xf32>
    %56 = vector.shape_cast %55 : vector<64xf32> to vector<1x64xf32>
    %cst_29 = arith.constant 0.000000e+00 : f32
    %57 = vector.shape_cast %56 : vector<1x64xf32> to vector<1x64xf32>
    %58 = vector.broadcast %57 : vector<1x64xf32> to vector<128x64xf32>
    %59 = vector.broadcast %cst_29 : f32 to vector<128x64xf32>
    %60 = arith.select %9, %58, %59 : vector<128x64xi1>, vector<128x64xf32>
    %cst_30 = arith.constant dense<0.000000e+00> : vector<128xf32>
    %61 = vector.multi_reduction <add>, %60, %cst_30 [1] : vector<128x64xf32> to vector<128xf32>
    %62 = vector.shape_cast %61 : vector<128xf32> to vector<128x1xf32>
    %63 = vector.extract_strided_slice %49 {offsets = [0, 1], sizes = [128, 1], strides = [1, 1]} : vector<128x2xf32> to vector<128x1xf32>
    %cst_31 = arith.constant -1.000000e+30 : f32
    %64 = vector.shape_cast %63 : vector<128x1xf32> to vector<128x1xf32>
    %65 = vector.broadcast %64 : vector<128x1xf32> to vector<128x64xf32>
    %66 = vector.broadcast %cst_31 : f32 to vector<128x64xf32>
    %67 = arith.select %9, %65, %66 : vector<128x64xi1>, vector<128x64xf32>
    %cst_32 = arith.constant dense<0xFF800000> : vector<64xf32>
    %68 = vector.multi_reduction <maximumf>, %67, %cst_32 [0] : vector<128x64xf32> to vector<64xf32>
    %69 = vector.shape_cast %68 : vector<64xf32> to vector<1x64xf32>
    %cst_33 = arith.constant 0.000000e+00 : f32
    %70 = vector.shape_cast %69 : vector<1x64xf32> to vector<1x64xf32>
    %71 = vector.broadcast %70 : vector<1x64xf32> to vector<128x64xf32>
    %72 = vector.broadcast %cst_33 : f32 to vector<128x64xf32>
    %73 = arith.select %9, %71, %72 : vector<128x64xi1>, vector<128x64xf32>
    %cst_34 = arith.constant dense<0.000000e+00> : vector<128xf32>
    %74 = vector.multi_reduction <add>, %73, %cst_34 [1] : vector<128x64xf32> to vector<128xf32>
    %75 = vector.shape_cast %74 : vector<128xf32> to vector<128x1xf32>
    %76 = tpu.concatenate %56, %69 in 0 : vector<1x64xf32>, vector<1x64xf32> -> vector<2x64xf32>
    %77 = tpu.concatenate %62, %75 in 1 : vector<128x1xf32>, vector<128x1xf32> -> vector<128x2xf32>
    %78 = arith.subf %49, %77 : vector<128x2xf32>
    %79 = math.exp %78 : vector<128x2xf32>
    %80 = tpu.iota {dimensions = array<i32: 1>} : vector<1x32xi32>
    %c16_i32 = arith.constant 16 : i32
    %81 = vector.broadcast %c16_i32 : i32 to vector<1x32xi32>
    %82 = arith.cmpi slt, %80, %81 : vector<1x32xi32>
    %83 = vector.extract_strided_slice %79 {offsets = [0, 0], sizes = [128, 1], strides = [1, 1]} : vector<128x2xf32> to vector<128x1xf32>
    %84 = vector.extract_strided_slice %79 {offsets = [0, 1], sizes = [128, 1], strides = [1, 1]} : vector<128x2xf32> to vector<128x1xf32>
    %85 = vector.shape_cast %82 : vector<1x32xi1> to vector<1x32xi1>
    %86 = vector.broadcast %85 : vector<1x32xi1> to vector<128x32xi1>
    %87 = vector.shape_cast %83 : vector<128x1xf32> to vector<128x1xf32>
    %88 = vector.broadcast %87 : vector<128x1xf32> to vector<128x32xf32>
    %89 = vector.shape_cast %84 : vector<128x1xf32> to vector<128x1xf32>
    %90 = vector.broadcast %89 : vector<128x1xf32> to vector<128x32xf32>
    %91 = arith.select %86, %88, %90 : vector<128x32xi1>, vector<128x32xf32>
    %92 = arith.mulf %91, %44 : vector<128x32xf32>
    %93 = tpu.concatenate %79, %92 in 1 : vector<128x2xf32>, vector<128x32xf32> -> vector<128x34xf32>
    %cst_35 = arith.constant dense<0.000000e+00> : vector<64x34xf32>
    %94 = tpu.matmul %19, %93, %cst_35 {dimension_numbers = #tpu.dot_dimension_numbers<[1], [0], [0], [1], [0, 0, 1, 1], [], []>} : vector<64x128xf32>, vector<128x34xf32>, vector<64x34xf32> -> vector<64x34xf32>
    %95 = tpu.transpose %76, [1, 0] : vector<2x64xf32> -> vector<64x2xf32>
    %c0_36 = arith.constant 0 : index
    %c0_37 = arith.constant 0 : index
    %96 = vector.load %arg13[%c0_36, %c0_37] : memref<64x2xf32, #tpu.memory_space<vmem>>, vector<64x2xf32>
    %97 = arith.maximumf %96, %95 : vector<64x2xf32>
    %98 = arith.subf %96, %97 : vector<64x2xf32>
    %99 = math.exp %98 : vector<64x2xf32>
    %100 = arith.subf %95, %97 : vector<64x2xf32>
    %101 = math.exp %100 : vector<64x2xf32>
    %102 = tpu.iota {dimensions = array<i32: 1>} : vector<1x34xi32>
    %c0_i32_38 = arith.constant 0 : i32
    %103 = vector.broadcast %c0_i32_38 : i32 to vector<1x34xi32>
    %104 = arith.cmpi eq, %102, %103 : vector<1x34xi32>
    %c2_i32 = arith.constant 2 : i32
    %105 = vector.broadcast %c2_i32 : i32 to vector<1x34xi32>
    %106 = arith.cmpi sge, %102, %105 : vector<1x34xi32>
    %c18_i32 = arith.constant 18 : i32
    %107 = vector.broadcast %c18_i32 : i32 to vector<1x34xi32>
    %108 = arith.cmpi slt, %102, %107 : vector<1x34xi32>
    %109 = arith.andi %106, %108 : vector<1x34xi1>
    %110 = arith.ori %104, %109 : vector<1x34xi1>
    %111 = vector.extract_strided_slice %99 {offsets = [0, 0], sizes = [64, 1], strides = [1, 1]} : vector<64x2xf32> to vector<64x1xf32>
    %112 = vector.extract_strided_slice %99 {offsets = [0, 1], sizes = [64, 1], strides = [1, 1]} : vector<64x2xf32> to vector<64x1xf32>
    %113 = vector.shape_cast %110 : vector<1x34xi1> to vector<1x34xi1>
    %114 = vector.broadcast %113 : vector<1x34xi1> to vector<64x34xi1>
    %115 = vector.shape_cast %111 : vector<64x1xf32> to vector<64x1xf32>
    %116 = vector.broadcast %115 : vector<64x1xf32> to vector<64x34xf32>
    %117 = vector.shape_cast %112 : vector<64x1xf32> to vector<64x1xf32>
    %118 = vector.broadcast %117 : vector<64x1xf32> to vector<64x34xf32>
    %119 = arith.select %114, %116, %118 : vector<64x34xi1>, vector<64x34xf32>
    %120 = vector.extract_strided_slice %101 {offsets = [0, 0], sizes = [64, 1], strides = [1, 1]} : vector<64x2xf32> to vector<64x1xf32>
    %121 = vector.extract_strided_slice %101 {offsets = [0, 1], sizes = [64, 1], strides = [1, 1]} : vector<64x2xf32> to vector<64x1xf32>
    %122 = vector.shape_cast %110 : vector<1x34xi1> to vector<1x34xi1>
    %123 = vector.broadcast %122 : vector<1x34xi1> to vector<64x34xi1>
    %124 = vector.shape_cast %120 : vector<64x1xf32> to vector<64x1xf32>
    %125 = vector.broadcast %124 : vector<64x1xf32> to vector<64x34xf32>
    %126 = vector.shape_cast %121 : vector<64x1xf32> to vector<64x1xf32>
    %127 = vector.broadcast %126 : vector<64x1xf32> to vector<64x34xf32>
    %128 = arith.select %123, %125, %127 : vector<64x34xi1>, vector<64x34xf32>
    %c0_39 = arith.constant 0 : index
    %c0_40 = arith.constant 0 : index
    %129 = vector.load %arg13[%c0_39, %c0_40] : memref<64x2xf32, #tpu.memory_space<vmem>>, vector<64x2xf32>
    tpu.vector_store %arg13[%c0_39, %c0_40], %97 {strides = array<i32>} : memref<64x2xf32, #tpu.memory_space<vmem>>, vector<64x2xf32>,
    %c0_41 = arith.constant 0 : index
    %c0_42 = arith.constant 0 : index
    %130 = vector.load %arg14[%c0_41, %c0_42] : memref<64x34xf32, #tpu.memory_space<vmem>>, vector<64x34xf32>
    %131 = arith.mulf %130, %119 : vector<64x34xf32>
    %132 = arith.mulf %94, %128 : vector<64x34xf32>
    %133 = arith.addf %131, %132 : vector<64x34xf32>
    %c0_43 = arith.constant 0 : index
    %c0_44 = arith.constant 0 : index
    %134 = vector.load %arg14[%c0_43, %c0_44] : memref<64x34xf32, #tpu.memory_space<vmem>>, vector<64x34xf32>
    tpu.vector_store %arg14[%c0_43, %c0_44], %133 {strides = array<i32>} : memref<64x34xf32, #tpu.memory_space<vmem>>, vector<64x34xf32>,
    %c1_i32 = arith.constant 1 : i32
    %135 = arith.cmpi eq, %arg0, %c1_i32 : i32
    %136 = arith.extui %135 : i1 to i32
    %c0_i32_45 = arith.constant 0 : i32
    %137 = arith.cmpi ne, %136, %c0_i32_45 : i32
    scf.if %137 {
      %c0_46 = arith.constant 0 : index
      %c0_47 = arith.constant 0 : index
      %138 = vector.load %arg14[%c0_46, %c0_47] : memref<64x34xf32, #tpu.memory_space<vmem>>, vector<64x34xf32>
      %139 = vector.extract_strided_slice %138 {offsets = [0, 0], sizes = [64, 2], strides = [1, 1]} : vector<64x34xf32> to vector<64x2xf32>
      %140 = vector.extract_strided_slice %138 {offsets = [0, 2], sizes = [64, 32], strides = [1, 1]} : vector<64x34xf32> to vector<64x32xf32>
      %141 = vector.extract_strided_slice %139 {offsets = [0, 0], sizes = [64, 1], strides = [1, 1]} : vector<64x2xf32> to vector<64x1xf32>
      %142 = vector.extract_strided_slice %139 {offsets = [0, 1], sizes = [64, 1], strides = [1, 1]} : vector<64x2xf32> to vector<64x1xf32>
      %143 = vector.shape_cast %82 : vector<1x32xi1> to vector<1x32xi1>
      %144 = vector.broadcast %143 : vector<1x32xi1> to vector<64x32xi1>
      %145 = vector.shape_cast %141 : vector<64x1xf32> to vector<64x1xf32>
      %146 = vector.broadcast %145 : vector<64x1xf32> to vector<64x32xf32>
      %147 = vector.shape_cast %142 : vector<64x1xf32> to vector<64x1xf32>
      %148 = vector.broadcast %147 : vector<64x1xf32> to vector<64x32xf32>
      %149 = arith.select %144, %146, %148 : vector<64x32xi1>, vector<64x32xf32>
      %cst_48 = arith.constant 0.000000e+00 : f32
      %150 = vector.broadcast %cst_48 : f32 to vector<64x32xf32>
      %151 = arith.cmpf ogt, %149, %150 : vector<64x32xf32>
      %cst_49 = arith.constant 1.000000e+00 : f32
      %152 = vector.broadcast %cst_49 : f32 to vector<64x32xf32>
      %153 = arith.select %151, %149, %152 : vector<64x32xi1>, vector<64x32xf32>
      %154 = tpu.reciprocal %153 : vector<64x32xf32> -> vector<64x32xf32>
      %155 = arith.mulf %140, %154 : vector<64x32xf32>
      %c0_50 = arith.constant 0 : index
      %c0_51 = arith.constant 0 : index
      %156 = vector.load %arg6[%c0_50, %c0_51] : memref<64x32xf32, #tpu.memory_space<vmem>>, vector<64x32xf32>
      %157 = arith.addf %155, %156 : vector<64x32xf32>
      %c0_52 = arith.constant 0 : index
      %c0_53 = arith.constant 0 : index
      %158 = vector.load %arg12[%c0_52, %c0_53] : memref<64x32xf32, #tpu.memory_space<vmem>>, vector<64x32xf32>
      tpu.vector_store %arg12[%c0_52, %c0_53], %157 {strides = array<i32>} : memref<64x32xf32, #tpu.memory_space<vmem>>, vector<64x32xf32>,
    } else {
    }
    return
  }
  func.func @transform_0(%arg0: i32) -> (i32, i32) {
    %c0_i32 = arith.constant 0 : i32
    %c0_i32_0 = arith.constant 0 : i32
    return %arg0, %c0_i32 : i32, i32
  }
  func.func @transform_1(%arg0: i32) -> (i32, i32) {
    %c0_i32 = arith.constant 0 : i32
    %c0_i32_0 = arith.constant 0 : i32
    return %arg0, %c0_i32 : i32, i32
  }
  func.func @transform_2(%arg0: i32) -> (i32, i32) {
    %c0_i32 = arith.constant 0 : i32
    %c0_i32_0 = arith.constant 0 : i32
    return %c0_i32, %arg0 : i32, i32
  }
  func.func @transform_3(%arg0: i32) -> (i32, i32) {
    %c0_i32 = arith.constant 0 : i32
    %c0_i32_0 = arith.constant 0 : i32
    %c0_i32_1 = arith.constant 0 : i32
    return %c0_i32, %c0_i32_0 : i32, i32
  }
  func.func @transform_4(%arg0: i32) -> (i32, i32) {
    %c0_i32 = arith.constant 0 : i32
    %c0_i32_0 = arith.constant 0 : i32
    %c0_i32_1 = arith.constant 0 : i32
    return %c0_i32, %c0_i32_0 : i32, i32
  }
  func.func @transform_5(%arg0: i32) -> (i32, i32) {
    %c0_i32 = arith.constant 0 : i32
    %c0_i32_0 = arith.constant 0 : i32
    %c0_i32_1 = arith.constant 0 : i32
    return %c0_i32, %c0_i32_0 : i32, i32
  }
  func.func @transform_6(%arg0: i32) -> (i32, i32) {
    %c0_i32 = arith.constant 0 : i32
    %c0_i32_0 = arith.constant 0 : i32
    %c0_i32_1 = arith.constant 0 : i32
    return %c0_i32, %c0_i32_0 : i32, i32
  }
  func.func @transform_7(%arg0: i32) -> (i32, i32) {
    %c0_i32 = arith.constant 0 : i32
    %c0_i32_0 = arith.constant 0 : i32
    %c0_i32_1 = arith.constant 0 : i32
    return %c0_i32, %c0_i32_0 : i32, i32
  }
  func.func @transform_8(%arg0: i32) -> (i32, i32) {
    %c0_i32 = arith.constant 0 : i32
    %c0_i32_0 = arith.constant 0 : i32
    %c0_i32_1 = arith.constant 0 : i32
    return %c0_i32, %c0_i32_0 : i32, i32
  }
  func.func @transform_9(%arg0: i32) -> (i32, i32) {
    %c0_i32 = arith.constant 0 : i32
    %c0_i32_0 = arith.constant 0 : i32
    %c0_i32_1 = arith.constant 0 : i32
    return %c0_i32, %c0_i32_0 : i32, i32
  }
  func.func @transform_10(%arg0: i32) -> (i32, i32) {
    %c0_i32 = arith.constant 0 : i32
    %c0_i32_0 = arith.constant 0 : i32
    %c0_i32_1 = arith.constant 0 : i32
    return %c0_i32, %c0_i32_0 : i32, i32
  }
  func.func @transform_11(%arg0: i32) -> (i32, i32) {
    %c0_i32 = arith.constant 0 : i32
    %c0_i32_0 = arith.constant 0 : i32
    %c0_i32_1 = arith.constant 0 : i32
    return %c0_i32, %c0_i32_0 : i32, i32
  }
}

</mosaic_0001>

<llo_original>
// kernel: tpu_custom_call.1
$region0: #{tpu_custom_call.1}
  #allocation0 [shape = 'u32[]', space=smem, size = 0x4, offset = 0x4, fixed_abs, tag = 'smem constant byte address 0x4 - core index']
  #allocation1 [shape = 'u32[144,128]{1,0:T(1,128)}', space=vmem, size = 0x12000, scoped, tag = 'internal scratch']
  #allocation2 [shape = 'f32[64,2]{1,0:T(8,128)}', space=vmem, size = 0x8000, scoped, tag = 'scratch operand']
  #allocation3 [shape = 'f32[64,34]{1,0:T(8,128)}', space=vmem, size = 0x8000, scoped, tag = 'scratch operand']
  %s0 = inlined_call_operand.vmem [shape: s32[256,2], index: 0, kind: input, shape index: {}]
  %s1 = inlined_call_operand.vmem [shape: f32[256,17], index: 1, kind: input, shape index: {}]
  %s2 = inlined_call_operand.vmem [shape: s32[1,256], index: 2, kind: input, shape index: {}]
  %s3 = inlined_call_operand.vmem [shape: f32[64,32], index: 3, kind: input, shape index: {}]
  %s4 = inlined_call_operand.vmem [shape: f32[64,65], index: 4, kind: input, shape index: {}]
  %s5 = inlined_call_operand.vmem [shape: f32[64,32], index: 5, kind: input, shape index: {}]
  %s6 = inlined_call_operand.vmem [shape: f32[1,16], index: 6, kind: input, shape index: {}]
  %s7 = inlined_call_operand.vmem [shape: f32[1,16], index: 7, kind: input, shape index: {}]
  %s8 = inlined_call_operand.vmem [shape: f32[16,32], index: 8, kind: input, shape index: {}]
  %s9 = inlined_call_operand.vmem [shape: f32[16,32], index: 9, kind: input, shape index: {}]
  %s10 = inlined_call_operand.vmem [shape: f32[32,2], index: 10, kind: input, shape index: {}]
  %s11 = inlined_call_operand.vmem [shape: f32[64,32], index: 11, kind: output, shape index: {}]
  %s12 = sld [smem:[#allocation0]]
  $region85: #{tpu_custom_call.1} parent=0
    _
  %s14 = ssub.s32 1, %s12
  %s15 = scalar_select 0, %s14, %s12
  loop: start=0, step=1, limit=4
  $region2: #{tpu_custom_call.1} parent=0 // loop_pre_header
    _
  $region3: #{tpu_custom_call.1} parent=0 // loop_header
    %s17 = sphi 0, %s21
    %p18 = scmp.ge.s32.totalorder %s17, 4
    %s27 = sphi 0, %s29
    %s30 = sphi 0, %s27
    %s31 = sphi 0, %s30
    %s47 = sphi 0, %s31
    %s53 = sphi 0, %s55
    %s56 = sphi 0, %s53
    %s57 = sphi 0, %s56
    %s73 = sphi 0, %s57
    %s79 = sphi 0, %s81
    %s82 = sphi 0, %s79
    %s83 = sphi 0, %s82
    %s99 = sphi 0, %s83
    %s103 = sphi 0, %s103
    %s105 = sphi 0, %s103
    %s106 = sphi 0, %s105
    %s120 = sphi 0, %s106
    %s124 = sphi 0, %s124
    %s126 = sphi 0, %s124
    %s127 = sphi 0, %s126
    %s141 = sphi 0, %s127
    %s145 = sphi 0, %s145
    %s147 = sphi 0, %s145
    %s148 = sphi 0, %s147
    %s162 = sphi 0, %s148
    %s166 = sphi 0, %s166
    %s168 = sphi 0, %s166
    %s169 = sphi 0, %s168
    %s183 = sphi 0, %s169
    %s187 = sphi 0, %s187
    %s189 = sphi 0, %s187
    %s190 = sphi 0, %s189
    %s204 = sphi 0, %s190
    %s208 = sphi 0, %s208
    %s210 = sphi 0, %s208
    %s211 = sphi 0, %s210
    %s225 = sphi 0, %s211
    %s229 = sphi 0, %s229
    %s231 = sphi 0, %s229
    %s232 = sphi 0, %s231
    %s246 = sphi 0, %s232
    %s250 = sphi 0, %s250
    %s252 = sphi 0, %s250
    %s253 = sphi 0, %s252
    %s267 = sphi 0, %s253
    %s271 = sphi 0, %s271
    %s273 = sphi 0, %s271
    %s274 = sphi 0, %s273
    %s288 = sphi 0, %s274
  $region4: #{tpu_custom_call.1} parent=0 // loop_header_branch
    %20 = sbr.rel (%p18) target = $region8
  $region5: #{tpu_custom_call.1} parent=0 // loop_body
    %s22 = ssub.s32 %s17, 1
    %s23 = ssub.s32 %s17, 2
    %s24 = sadd.s32 %s17, 1
    %s25 = ssub.s32 %s17, %s24
    %p26 = scmp.eq.s32.totalorder %s25, 0
    %s28 = sadd.s32 %s27, 1
    %s29 = scalar_select %p26, %s27, %s28
    %p32 = pneg %p26
    %p33 = scmp.eq.s32.totalorder %s17, 1
    %p34 = por %p32, %p33
    %p35 = scmp.ne.s32.totalorder %s27, %s30
    %p36 = scmp.eq.s32.totalorder %s17, 0
    %p37 = por %p35, %p36
    %p38 = scmp.ne.s32.totalorder %s27, %s30
    %p39 = scmp.eq.s32.totalorder %s22, 1
    %p40 = por %p38, %p39
    %p41 = scmp.ne.s32.totalorder %s30, %s31
    %p42 = scmp.eq.s32.totalorder %s22, 0
    %p43 = por %p41, %p42
    %p44 = scmp.ne.s32.totalorder %s30, %s31
    %p45 = scmp.eq.s32.totalorder %s23, 1
    %p46 = por %p44, %p45
    %p48 = scmp.ne.s32.totalorder %s31, %s47
    %p49 = scmp.eq.s32.totalorder %s23, 0
    %p50 = por %p48, %p49
    %s51 = ssub.s32 %s17, %s24
    %p52 = scmp.eq.s32.totalorder %s51, 0
    %s54 = sadd.s32 %s53, 1
    %s55 = scalar_select %p52, %s53, %s54
    %p58 = pneg %p52
    %p59 = scmp.eq.s32.totalorder %s17, 1
    %p60 = por %p58, %p59
    %p61 = scmp.ne.s32.totalorder %s53, %s56
    %p62 = scmp.eq.s32.totalorder %s17, 0
    %p63 = por %p61, %p62
    %p64 = scmp.ne.s32.totalorder %s53, %s56
    %p65 = scmp.eq.s32.totalorder %s22, 1
    %p66 = por %p64, %p65
    %p67 = scmp.ne.s32.totalorder %s56, %s57
    %p68 = scmp.eq.s32.totalorder %s22, 0
    %p69 = por %p67, %p68
    %p70 = scmp.ne.s32.totalorder %s56, %s57
    %p71 = scmp.eq.s32.totalorder %s23, 1
    %p72 = por %p70, %p71
    %p74 = scmp.ne.s32.totalorder %s57, %s73
    %p75 = scmp.eq.s32.totalorder %s23, 0
    %p76 = por %p74, %p75
    %s77 = ssub.s32 %s17, %s24
    %p78 = scmp.eq.s32.totalorder %s77, 0
    %s80 = sadd.s32 %s79, 1
    %s81 = scalar_select %p78, %s79, %s80
    %p84 = pneg %p78
    %p85 = scmp.eq.s32.totalorder %s17, 1
    %p86 = por %p84, %p85
    %p87 = scmp.ne.s32.totalorder %s79, %s82
    %p88 = scmp.eq.s32.totalorder %s17, 0
    %p89 = por %p87, %p88
    %p90 = scmp.ne.s32.totalorder %s79, %s82
    %p91 = scmp.eq.s32.totalorder %s22, 1
    %p92 = por %p90, %p91
    %p93 = scmp.ne.s32.totalorder %s82, %s83
    %p94 = scmp.eq.s32.totalorder %s22, 0
    %p95 = por %p93, %p94
    %p96 = scmp.ne.s32.totalorder %s82, %s83
    %p97 = scmp.eq.s32.totalorder %s23, 1
    %p98 = por %p96, %p97
    %p100 = scmp.ne.s32.totalorder %s83, %s99
    %p101 = scmp.eq.s32.totalorder %s23, 0
    %p102 = por %p100, %p101
    %s104 = sadd.s32 %s103, 1
    %p107 = scmp.eq.s32.totalorder %s17, 1
    %p108 = scmp.ne.s32.totalorder %s103, %s105
    %p109 = scmp.eq.s32.totalorder %s17, 0
    %p110 = por %p108, %p109
    %p111 = scmp.ne.s32.totalorder %s103, %s105
    %p112 = scmp.eq.s32.totalorder %s22, 1
    %p113 = por %p111, %p112
    %p114 = scmp.ne.s32.totalorder %s105, %s106
    %p115 = scmp.eq.s32.totalorder %s22, 0
    %p116 = por %p114, %p115
    %p117 = scmp.ne.s32.totalorder %s105, %s106
    %p118 = scmp.eq.s32.totalorder %s23, 1
    %p119 = por %p117, %p118
    %p121 = scmp.ne.s32.totalorder %s106, %s120
    %p122 = scmp.eq.s32.totalorder %s23, 0
    %p123 = por %p121, %p122
    %s125 = sadd.s32 %s124, 1
    %p128 = scmp.eq.s32.totalorder %s17, 1
    %p129 = scmp.ne.s32.totalorder %s124, %s126
    %p130 = scmp.eq.s32.totalorder %s17, 0
    %p131 = por %p129, %p130
    %p132 = scmp.ne.s32.totalorder %s124, %s126
    %p133 = scmp.eq.s32.totalorder %s22, 1
    %p134 = por %p132, %p133
    %p135 = scmp.ne.s32.totalorder %s126, %s127
    %p136 = scmp.eq.s32.totalorder %s22, 0
    %p137 = por %p135, %p136
    %p138 = scmp.ne.s32.totalorder %s126, %s127
    %p139 = scmp.eq.s32.totalorder %s23, 1
    %p140 = por %p138, %p139
    %p142 = scmp.ne.s32.totalorder %s127, %s141
    %p143 = scmp.eq.s32.totalorder %s23, 0
    %p144 = por %p142, %p143
    %s146 = sadd.s32 %s145, 1
    %p149 = scmp.eq.s32.totalorder %s17, 1
    %p150 = scmp.ne.s32.totalorder %s145, %s147
    %p151 = scmp.eq.s32.totalorder %s17, 0
    %p152 = por %p150, %p151
    %p153 = scmp.ne.s32.totalorder %s145, %s147
    %p154 = scmp.eq.s32.totalorder %s22, 1
    %p155 = por %p153, %p154
    %p156 = scmp.ne.s32.totalorder %s147, %s148
    %p157 = scmp.eq.s32.totalorder %s22, 0
    %p158 = por %p156, %p157
    %p159 = scmp.ne.s32.totalorder %s147, %s148
    %p160 = scmp.eq.s32.totalorder %s23, 1
    %p161 = por %p159, %p160
    %p163 = scmp.ne.s32.totalorder %s148, %s162
    %p164 = scmp.eq.s32.totalorder %s23, 0
    %p165 = por %p163, %p164
    %s167 = sadd.s32 %s166, 1
    %p170 = scmp.eq.s32.totalorder %s17, 1
    %p171 = scmp.ne.s32.totalorder %s166, %s168
    %p172 = scmp.eq.s32.totalorder %s17, 0
    %p173 = por %p171, %p172
    %p174 = scmp.ne.s32.totalorder %s166, %s168
    %p175 = scmp.eq.s32.totalorder %s22, 1
    %p176 = por %p174, %p175
    %p177 = scmp.ne.s32.totalorder %s168, %s169
    %p178 = scmp.eq.s32.totalorder %s22, 0
    %p179 = por %p177, %p178
    %p180 = scmp.ne.s32.totalorder %s168, %s169
    %p181 = scmp.eq.s32.totalorder %s23, 1
    %p182 = por %p180, %p181
    %p184 = scmp.ne.s32.totalorder %s169, %s183
    %p185 = scmp.eq.s32.totalorder %s23, 0
    %p186 = por %p184, %p185
    %s188 = sadd.s32 %s187, 1
    %p191 = scmp.eq.s32.totalorder %s17, 1
    %p192 = scmp.ne.s32.totalorder %s187, %s189
    %p193 = scmp.eq.s32.totalorder %s17, 0
    %p194 = por %p192, %p193
    %p195 = scmp.ne.s32.totalorder %s187, %s189
    %p196 = scmp.eq.s32.totalorder %s22, 1
    %p197 = por %p195, %p196
    %p198 = scmp.ne.s32.totalorder %s189, %s190
    %p199 = scmp.eq.s32.totalorder %s22, 0
    %p200 = por %p198, %p199
    %p201 = scmp.ne.s32.totalorder %s189, %s190
    %p202 = scmp.eq.s32.totalorder %s23, 1
    %p203 = por %p201, %p202
    %p205 = scmp.ne.s32.totalorder %s190, %s204
    %p206 = scmp.eq.s32.totalorder %s23, 0
    %p207 = por %p205, %p206
    %s209 = sadd.s32 %s208, 1
    %p212 = scmp.eq.s32.totalorder %s17, 1
    %p213 = scmp.ne.s32.totalorder %s208, %s210
    %p214 = scmp.eq.s32.totalorder %s17, 0
    %p215 = por %p213, %p214
    %p216 = scmp.ne.s32.totalorder %s208, %s210
    %p217 = scmp.eq.s32.totalorder %s22, 1
    %p218 = por %p216, %p217
    %p219 = scmp.ne.s32.totalorder %s210, %s211
    %p220 = scmp.eq.s32.totalorder %s22, 0
    %p221 = por %p219, %p220
    %p222 = scmp.ne.s32.totalorder %s210, %s211
    %p223 = scmp.eq.s32.totalorder %s23, 1
    %p224 = por %p222, %p223
    %p226 = scmp.ne.s32.totalorder %s211, %s225
    %p227 = scmp.eq.s32.totalorder %s23, 0
    %p228 = por %p226, %p227
    %s230 = sadd.s32 %s229, 1
    %p233 = scmp.eq.s32.totalorder %s17, 1
    %p234 = scmp.ne.s32.totalorder %s229, %s231
    %p235 = scmp.eq.s32.totalorder %s17, 0
    %p236 = por %p234, %p235
    %p237 = scmp.ne.s32.totalorder %s229, %s231
    %p238 = scmp.eq.s32.totalorder %s22, 1
    %p239 = por %p237, %p238
    %p240 = scmp.ne.s32.totalorder %s231, %s232
    %p241 = scmp.eq.s32.totalorder %s22, 0
    %p242 = por %p240, %p241
    %p243 = scmp.ne.s32.totalorder %s231, %s232
    %p244 = scmp.eq.s32.totalorder %s23, 1
    %p245 = por %p243, %p244
    %p247 = scmp.ne.s32.totalorder %s232, %s246
    %p248 = scmp.eq.s32.totalorder %s23, 0
    %p249 = por %p247, %p248
    %s251 = sadd.s32 %s250, 1
    %p254 = scmp.eq.s32.totalorder %s17, 1
    %p255 = scmp.ne.s32.totalorder %s250, %s252
    %p256 = scmp.eq.s32.totalorder %s17, 0
    %p257 = por %p255, %p256
    %p258 = scmp.ne.s32.totalorder %s250, %s252
    %p259 = scmp.eq.s32.totalorder %s22, 1
    %p260 = por %p258, %p259
    %p261 = scmp.ne.s32.totalorder %s252, %s253
    %p262 = scmp.eq.s32.totalorder %s22, 0
    %p263 = por %p261, %p262
    %p264 = scmp.ne.s32.totalorder %s252, %s253
    %p265 = scmp.eq.s32.totalorder %s23, 1
    %p266 = por %p264, %p265
    %p268 = scmp.ne.s32.totalorder %s253, %s267
    %p269 = scmp.eq.s32.totalorder %s23, 0
    %p270 = por %p268, %p269
    %s272 = sadd.s32 %s271, 1
    %p275 = scmp.eq.s32.totalorder %s17, 1
    %p276 = scmp.ne.s32.totalorder %s271, %s273
    %p277 = scmp.eq.s32.totalorder %s17, 0
    %p278 = por %p276, %p277
    %p279 = scmp.ne.s32.totalorder %s271, %s273
    %p280 = scmp.eq.s32.totalorder %s22, 1
    %p281 = por %p279, %p280
    %p282 = scmp.ne.s32.totalorder %s273, %s274
    %p283 = scmp.eq.s32.totalorder %s22, 0
    %p284 = por %p282, %p283
    %p285 = scmp.ne.s32.totalorder %s273, %s274
    %p286 = scmp.eq.s32.totalorder %s23, 1
    %p287 = por %p285, %p286
    %p289 = scmp.ne.s32.totalorder %s274, %s288
    %p290 = scmp.eq.s32.totalorder %s23, 0
    %p291 = por %p289, %p290
    %p292 = scmp.le.s32.totalorder 1, %s17
    %p293 = scmp.lt.s32.totalorder %s17, 3
    %p294 = pnand %p292, %p293
    %p295 = pneg %p294
    // Predicated region
    $region9: #{tpu_custom_call.1} parent=5 // pred_check
      _
    $region10: #{tpu_custom_call.1} parent=5 // pred_check_branch
      %297 = sbr.rel (%p294) target = $region12
    $region11: #{tpu_custom_call.1} parent=5 // pred_region
      %s298 = ssub.s32 %s17, 1
      // Predicated region
      $region13: #{tpu_custom_call.1} parent=11 // pred_check
        %p299 = pneg %p116
      $region14: #{tpu_custom_call.1} parent=11 // pred_check_branch
        %301 = sbr.rel (%p299) target = $region16
      $region15: #{tpu_custom_call.1} parent=11 // pred_region
        _
      $region16: #{tpu_custom_call.1} parent=11 // pred_fallthru
        _
      // Predicated region
      $region17: #{tpu_custom_call.1} parent=11 // pred_check
        %p302 = pneg %p137
      $region18: #{tpu_custom_call.1} parent=11 // pred_check_branch
        %304 = sbr.rel (%p302) target = $region20
      $region19: #{tpu_custom_call.1} parent=11 // pred_region
        _
      $region20: #{tpu_custom_call.1} parent=11 // pred_fallthru
        _
      // Predicated region
      $region21: #{tpu_custom_call.1} parent=11 // pred_check
        %p305 = pneg %p158
      $region22: #{tpu_custom_call.1} parent=11 // pred_check_branch
        %307 = sbr.rel (%p305) target = $region24
      $region23: #{tpu_custom_call.1} parent=11 // pred_region
        _
      $region24: #{tpu_custom_call.1} parent=11 // pred_fallthru
        _
      // Predicated region
      $region25: #{tpu_custom_call.1} parent=11 // pred_check
        %p308 = pneg %p179
      $region26: #{tpu_custom_call.1} parent=11 // pred_check_branch
        %310 = sbr.rel (%p308) target = $region28
      $region27: #{tpu_custom_call.1} parent=11 // pred_region
        _
      $region28: #{tpu_custom_call.1} parent=11 // pred_fallthru
        _
      // Predicated region
      $region29: #{tpu_custom_call.1} parent=11 // pred_check
        %p311 = pneg %p200
      $region30: #{tpu_custom_call.1} parent=11 // pred_check_branch
        %313 = sbr.rel (%p311) target = $region32
      $region31: #{tpu_custom_call.1} parent=11 // pred_region
        _
      $region32: #{tpu_custom_call.1} parent=11 // pred_fallthru
        _
      // Predicated region
      $region33: #{tpu_custom_call.1} parent=11 // pred_check
        %p314 = pneg %p221
      $region34: #{tpu_custom_call.1} parent=11 // pred_check_branch
        %316 = sbr.rel (%p314) target = $region36
      $region35: #{tpu_custom_call.1} parent=11 // pred_region
        _
      $region36: #{tpu_custom_call.1} parent=11 // pred_fallthru
        _
      // Predicated region
      $region37: #{tpu_custom_call.1} parent=11 // pred_check
        %p317 = pneg %p242
      $region38: #{tpu_custom_call.1} parent=11 // pred_check_branch
        %319 = sbr.rel (%p317) target = $region40
      $region39: #{tpu_custom_call.1} parent=11 // pred_region
        _
      $region40: #{tpu_custom_call.1} parent=11 // pred_fallthru
        _
      // Predicated region
      $region41: #{tpu_custom_call.1} parent=11 // pred_check
        %p320 = pneg %p263
      $region42: #{tpu_custom_call.1} parent=11 // pred_check_branch
        %322 = sbr.rel (%p320) target = $region44
      $region43: #{tpu_custom_call.1} parent=11 // pred_region
        _
      $region44: #{tpu_custom_call.1} parent=11 // pred_fallthru
        _
    $region12: #{tpu_custom_call.1} parent=5 // pred_fallthru
      _
    %p323 = scmp.lt.s32.totalorder %s17, 2
    // Predicated region
    $region45: #{tpu_custom_call.1} parent=5 // pred_check
      %p324 = pneg %p323
    $region46: #{tpu_custom_call.1} parent=5 // pred_check_branch
      %326 = sbr.rel (%p324) target = $region48
    $region47: #{tpu_custom_call.1} parent=5 // pred_region
      // Predicated region
      $region49: #{tpu_custom_call.1} parent=47 // pred_check
        %p327 = pneg %p37
      $region50: #{tpu_custom_call.1} parent=47 // pred_check_branch
        %329 = sbr.rel (%p327) target = $region52
      $region51: #{tpu_custom_call.1} parent=47 // pred_region
        %s330 = smul.u32 16, %s17
        %p331 = scmp.lt.s32.totalorder %s330, 31
        %s332 = scalar_select %p331, %s330, 31
        %s333 = smul.addr %s332, 8
        %s334 = scalar_lea.vmem %s0, %s333
        %s335 = smul.u32 16, %s17
      $region52: #{tpu_custom_call.1} parent=47 // pred_fallthru
        _
      // Predicated region
      $region53: #{tpu_custom_call.1} parent=47 // pred_check
        %p336 = pneg %p63
      $region54: #{tpu_custom_call.1} parent=47 // pred_check_branch
        %338 = sbr.rel (%p336) target = $region56
      $region55: #{tpu_custom_call.1} parent=47 // pred_region
        %s339 = smul.u32 16, %s17
        %p340 = scmp.lt.s32.totalorder %s339, 31
        %s341 = scalar_select %p340, %s339, 31
        %s342 = smul.addr %s341, 8
        %s343 = scalar_lea.vmem %s1, %s342
        %s344 = smul.u32 16, %s17
      $region56: #{tpu_custom_call.1} parent=47 // pred_fallthru
        _
      // Predicated region
      $region57: #{tpu_custom_call.1} parent=47 // pred_check
        %p345 = pneg %p89
      $region58: #{tpu_custom_call.1} parent=47 // pred_check_branch
        %347 = sbr.rel (%p345) target = $region60
      $region59: #{tpu_custom_call.1} parent=47 // pred_region
        %p348 = scmp.lt.s32.totalorder %s17, 1
        %s349 = scalar_select %p348, %s17, 1
        %s350 = scalar_lea.vmem %s2, %s349
      $region60: #{tpu_custom_call.1} parent=47 // pred_fallthru
        _
    $region48: #{tpu_custom_call.1} parent=5 // pred_fallthru
      _
    %p351 = scmp.le.s32.totalorder 1, %s17
    %p352 = scmp.lt.s32.totalorder %s17, 3
    %p353 = pnand %p351, %p352
    %p354 = pneg %p353
    // Predicated region
    $region61: #{tpu_custom_call.1} parent=5 // pred_check
      _
    $region62: #{tpu_custom_call.1} parent=5 // pred_check_branch
      %356 = sbr.rel (%p353) target = $region64
    $region63: #{tpu_custom_call.1} parent=5 // pred_region
      %s357 = ssub.s32 %s17, 1
      %s358 = smul.u32 16, %s22
      %p359 = scmp.lt.s32.totalorder %s358, 31
      %s360 = scalar_select %p359, %s358, 31
      %s361 = smul.addr %s360, 8
      %s362 = scalar_lea.vmem %s0, %s361
      %p363 = pneg %p43
      %p364 = pneg %p40
      %s365 = smul.u32 16, %s22
      %p366 = scmp.lt.s32.totalorder %s365, 31
      %s367 = scalar_select %p366, %s365, 31
      %s368 = smul.addr %s367, 8
      %s369 = scalar_lea.vmem %s1, %s368
      %p370 = pneg %p69
      %p371 = pneg %p66
      %p372 = scmp.lt.s32.totalorder %s22, 1
      %s373 = scalar_select %p372, %s22, 1
      %s374 = scalar_lea.vmem %s2, %s373
      %p375 = pneg %p95
      %p376 = pneg %p92
      %p377 = pneg %p116
      %p378 = pneg %p113
      %p379 = pneg %p137
      %p380 = pneg %p134
      %p381 = pneg %p158
      %p382 = pneg %p155
      %p383 = pneg %p179
      %p384 = pneg %p176
      %p385 = pneg %p200
      %p386 = pneg %p197
      %p387 = pneg %p221
      %p388 = pneg %p218
      %p389 = pneg %p242
      %p390 = pneg %p239
      %p391 = pneg %p263
      %p392 = pneg %p260
      %p393 = pneg %p284
      %p394 = pneg %p281
      %s395 = smul.u32 16, %s22
      %p396 = scmp.lt.s32.totalorder %s395, 31
      %s397 = scalar_select %p396, %s395, 31
      %s398 = smul.addr %s397, 8
      %s399 = scalar_lea.vmem %s0, %s398
      %s400 = smul.u32 16, %s22
      %s401 = smul.u32 16, %s22
      %p402 = scmp.lt.s32.totalorder %s401, 31
      %s403 = scalar_select %p402, %s401, 31
      %s404 = smul.addr %s403, 8
      %s405 = scalar_lea.vmem %s1, %s404
      %s406 = smul.u32 16, %s22
      %p407 = scmp.lt.s32.totalorder %s22, 1
      %s408 = scalar_select %p407, %s22, 1
      %s409 = scalar_lea.vmem %s2, %s408
      %p410 = scmp.eq.s32.totalorder %s22, 0
      // Predicated region
      $region65: #{tpu_custom_call.1} parent=63 // pred_check
        %p411 = pneg %p410
      $region66: #{tpu_custom_call.1} parent=63 // pred_check_branch
        %413 = sbr.rel (%p411) target = $region68
      $region67: #{tpu_custom_call.1} parent=63 // pred_region
        %vm414 = vcmask 15360
        %415 = vst.msk [vmem:[#allocation2] sm:$0xff] %vm414, -1e+30
        %416 = vst.msk [vmem:[#allocation2 + $0x8] sm:$0xff] %vm414, -1e+30
        %417 = vst.msk [vmem:[#allocation2 + $0x10] sm:$0xff] %vm414, -1e+30
        %418 = vst.msk [vmem:[#allocation2 + $0x18] sm:$0xff] %vm414, -1e+30
        %419 = vst.msk [vmem:[#allocation2 + $0x20] sm:$0xff] %vm414, -1e+30
        %420 = vst.msk [vmem:[#allocation2 + $0x28] sm:$0xff] %vm414, -1e+30
        %421 = vst.msk [vmem:[#allocation2 + $0x30] sm:$0xff] %vm414, -1e+30
        %422 = vst.msk [vmem:[#allocation2 + $0x38] sm:$0xff] %vm414, -1e+30
        %vm423 = vcmask 277504
        %424 = vst.msk [vmem:[#allocation3] sm:$0xff] %vm423, 0.0
        %425 = vst.msk [vmem:[#allocation3 + $0x8] sm:$0xff] %vm423, 0.0
        %426 = vst.msk [vmem:[#allocation3 + $0x10] sm:$0xff] %vm423, 0.0
        %427 = vst.msk [vmem:[#allocation3 + $0x18] sm:$0xff] %vm423, 0.0
        %428 = vst.msk [vmem:[#allocation3 + $0x20] sm:$0xff] %vm423, 0.0
        %429 = vst.msk [vmem:[#allocation3 + $0x28] sm:$0xff] %vm423, 0.0
        %430 = vst.msk [vmem:[#allocation3 + $0x30] sm:$0xff] %vm423, 0.0
        %431 = vst.msk [vmem:[#allocation3 + $0x38] sm:$0xff] %vm423, 0.0
      $region68: #{tpu_custom_call.1} parent=63 // pred_fallthru
        _
      %v432 = vld [vmem:[%s399] sm:$0xff]
      %v433 = vld [vmem:[%s399 + $0x8] sm:$0xff]
      %v434 = vld [vmem:[%s399 + $0x10] sm:$0xff]
      %v435 = vld [vmem:[%s399 + $0x18] sm:$0xff]
      %v436 = vld [vmem:[%s399 + $0x20] sm:$0xff]
      %v437 = vld [vmem:[%s399 + $0x28] sm:$0xff]
      %v438 = vld [vmem:[%s399 + $0x30] sm:$0xff]
      %v439 = vld [vmem:[%s399 + $0x38] sm:$0xff]
      %v440 = vld [vmem:[%s399 + $0x40] sm:$0xff]
      %v441 = vld [vmem:[%s399 + $0x48] sm:$0xff]
      %v442 = vld [vmem:[%s399 + $0x50] sm:$0xff]
      %v443 = vld [vmem:[%s399 + $0x58] sm:$0xff]
      %v444 = vld [vmem:[%s399 + $0x60] sm:$0xff]
      %v445 = vld [vmem:[%s399 + $0x68] sm:$0xff]
      %v446 = vld [vmem:[%s399 + $0x70] sm:$0xff]
      %v447 = vld [vmem:[%s399 + $0x78] sm:$0xff]
      %v448 = vlaneseq
      %v449 = vand.u32 %v448, 127
      %450 = vset.pattern.permute.xlu0 0
      %451 = vperm.xlu0 %450, %v432
      %v452 = vpop.permute.xlu0 %451
      %453 = vset.pattern.permute.xlu0 0
      %454 = vperm.xlu0 %453, %v433
      %v455 = vpop.permute.xlu0 %454
      %456 = vset.pattern.permute.xlu0 0
      %457 = vperm.xlu0 %456, %v434
      %v458 = vpop.permute.xlu0 %457
      %459 = vset.pattern.permute.xlu0 0
      %460 = vperm.xlu0 %459, %v435
      %v461 = vpop.permute.xlu0 %460
      %462 = vset.pattern.permute.xlu0 0
      %463 = vperm.xlu0 %462, %v436
      %v464 = vpop.permute.xlu0 %463
      %465 = vset.pattern.permute.xlu0 0
      %466 = vperm.xlu0 %465, %v437
      %v467 = vpop.permute.xlu0 %466
      %468 = vset.pattern.permute.xlu0 0
      %469 = vperm.xlu0 %468, %v438
      %v470 = vpop.permute.xlu0 %469
      %471 = vset.pattern.permute.xlu0 0
      %472 = vperm.xlu0 %471, %v439
      %v473 = vpop.permute.xlu0 %472
      %474 = vset.pattern.permute.xlu0 0
      %475 = vperm.xlu0 %474, %v440
      %v476 = vpop.permute.xlu0 %475
      %477 = vset.pattern.permute.xlu0 0
      %478 = vperm.xlu0 %477, %v441
      %v479 = vpop.permute.xlu0 %478
      %480 = vset.pattern.permute.xlu0 0
      %481 = vperm.xlu0 %480, %v442
      %v482 = vpop.permute.xlu0 %481
      %483 = vset.pattern.permute.xlu0 0
      %484 = vperm.xlu0 %483, %v443
      %v485 = vpop.permute.xlu0 %484
      %486 = vset.pattern.permute.xlu0 0
      %487 = vperm.xlu0 %486, %v444
      %v488 = vpop.permute.xlu0 %487
      %489 = vset.pattern.permute.xlu0 0
      %490 = vperm.xlu0 %489, %v445
      %v491 = vpop.permute.xlu0 %490
      %492 = vset.pattern.permute.xlu0 0
      %493 = vperm.xlu0 %492, %v446
      %v494 = vpop.permute.xlu0 %493
      %495 = vset.pattern.permute.xlu0 0
      %496 = vperm.xlu0 %495, %v447
      %v497 = vpop.permute.xlu0 %496
      %vm498 = vcmp.eq.s32.totalorder %v449, %v452
      %vm499 = vcmp.eq.s32.totalorder %v449, %v455
      %vm500 = vcmp.eq.s32.totalorder %v449, %v458
      %vm501 = vcmp.eq.s32.totalorder %v449, %v461
      %vm502 = vcmp.eq.s32.totalorder %v449, %v464
      %vm503 = vcmp.eq.s32.totalorder %v449, %v467
      %vm504 = vcmp.eq.s32.totalorder %v449, %v470
      %vm505 = vcmp.eq.s32.totalorder %v449, %v473
      %vm506 = vcmp.eq.s32.totalorder %v449, %v476
      %vm507 = vcmp.eq.s32.totalorder %v449, %v479
      %vm508 = vcmp.eq.s32.totalorder %v449, %v482
      %vm509 = vcmp.eq.s32.totalorder %v449, %v485
      %vm510 = vcmp.eq.s32.totalorder %v449, %v488
      %vm511 = vcmp.eq.s32.totalorder %v449, %v491
      %vm512 = vcmp.eq.s32.totalorder %v449, %v494
      %vm513 = vcmp.eq.s32.totalorder %v449, %v497
      %514 = vset.pattern.permute.xlu0 1
      %515 = vperm.xlu0 %514, %v432
      %v516 = vpop.permute.xlu0 %515
      %517 = vset.pattern.permute.xlu0 1
      %518 = vperm.xlu0 %517, %v433
      %v519 = vpop.permute.xlu0 %518
      %520 = vset.pattern.permute.xlu0 1
      %521 = vperm.xlu0 %520, %v434
      %v522 = vpop.permute.xlu0 %521
      %523 = vset.pattern.permute.xlu0 1
      %524 = vperm.xlu0 %523, %v435
      %v525 = vpop.permute.xlu0 %524
      %526 = vset.pattern.permute.xlu0 1
      %527 = vperm.xlu0 %526, %v436
      %v528 = vpop.permute.xlu0 %527
      %529 = vset.pattern.permute.xlu0 1
      %530 = vperm.xlu0 %529, %v437
      %v531 = vpop.permute.xlu0 %530
      %532 = vset.pattern.permute.xlu0 1
      %533 = vperm.xlu0 %532, %v438
      %v534 = vpop.permute.xlu0 %533
      %535 = vset.pattern.permute.xlu0 1
      %536 = vperm.xlu0 %535, %v439
      %v537 = vpop.permute.xlu0 %536
      %538 = vset.pattern.permute.xlu0 1
      %539 = vperm.xlu0 %538, %v440
      %v540 = vpop.permute.xlu0 %539
      %541 = vset.pattern.permute.xlu0 1
      %542 = vperm.xlu0 %541, %v441
      %v543 = vpop.permute.xlu0 %542
      %544 = vset.pattern.permute.xlu0 1
      %545 = vperm.xlu0 %544, %v442
      %v546 = vpop.permute.xlu0 %545
      %547 = vset.pattern.permute.xlu0 1
      %548 = vperm.xlu0 %547, %v443
      %v549 = vpop.permute.xlu0 %548
      %550 = vset.pattern.permute.xlu0 1
      %551 = vperm.xlu0 %550, %v444
      %v552 = vpop.permute.xlu0 %551
      %553 = vset.pattern.permute.xlu0 1
      %554 = vperm.xlu0 %553, %v445
      %v555 = vpop.permute.xlu0 %554
      %556 = vset.pattern.permute.xlu0 1
      %557 = vperm.xlu0 %556, %v446
      %v558 = vpop.permute.xlu0 %557
      %559 = vset.pattern.permute.xlu0 1
      %560 = vperm.xlu0 %559, %v447
      %v561 = vpop.permute.xlu0 %560
      %vm562 = vcmp.eq.s32.totalorder %v449, %v516
      %vm563 = vcmp.eq.s32.totalorder %v449, %v519
      %vm564 = vcmp.eq.s32.totalorder %v449, %v522
      %vm565 = vcmp.eq.s32.totalorder %v449, %v525
      %vm566 = vcmp.eq.s32.totalorder %v449, %v528
      %vm567 = vcmp.eq.s32.totalorder %v449, %v531
      %vm568 = vcmp.eq.s32.totalorder %v449, %v534
      %vm569 = vcmp.eq.s32.totalorder %v449, %v537
      %vm570 = vcmp.eq.s32.totalorder %v449, %v540
      %vm571 = vcmp.eq.s32.totalorder %v449, %v543
      %vm572 = vcmp.eq.s32.totalorder %v449, %v546
      %vm573 = vcmp.eq.s32.totalorder %v449, %v549
      %vm574 = vcmp.eq.s32.totalorder %v449, %v552
      %vm575 = vcmp.eq.s32.totalorder %v449, %v555
      %vm576 = vcmp.eq.s32.totalorder %v449, %v558
      %vm577 = vcmp.eq.s32.totalorder %v449, %v561
      %v578 = vsel %vm498, 1, 0
      %v579 = vsel %vm499, 1, 0
      %v580 = vsel %vm500, 1, 0
      %v581 = vsel %vm501, 1, 0
      %v582 = vsel %vm502, 1, 0
      %v583 = vsel %vm503, 1, 0
      %v584 = vsel %vm504, 1, 0
      %v585 = vsel %vm505, 1, 0
      %v586 = vsel %vm506, 1, 0
      %v587 = vsel %vm507, 1, 0
      %v588 = vsel %vm508, 1, 0
      %v589 = vsel %vm509, 1, 0
      %v590 = vsel %vm510, 1, 0
      %v591 = vsel %vm511, 1, 0
      %v592 = vsel %vm512, 1, 0
      %v593 = vsel %vm513, 1, 0
      %v594 = vcvt.s32.f32 %v578
      %v595 = vcvt.s32.f32 %v579
      %v596 = vcvt.s32.f32 %v580
      %v597 = vcvt.s32.f32 %v581
      %v598 = vcvt.s32.f32 %v582
      %v599 = vcvt.s32.f32 %v583
      %v600 = vcvt.s32.f32 %v584
      %v601 = vcvt.s32.f32 %v585
      %v602 = vcvt.s32.f32 %v586
      %v603 = vcvt.s32.f32 %v587
      %v604 = vcvt.s32.f32 %v588
      %v605 = vcvt.s32.f32 %v589
      %v606 = vcvt.s32.f32 %v590
      %v607 = vcvt.s32.f32 %v591
      %v608 = vcvt.s32.f32 %v592
      %v609 = vcvt.s32.f32 %v593
      %v610 = vsel %vm562, 1, 0
      %v611 = vsel %vm563, 1, 0
      %v612 = vsel %vm564, 1, 0
      %v613 = vsel %vm565, 1, 0
      %v614 = vsel %vm566, 1, 0
      %v615 = vsel %vm567, 1, 0
      %v616 = vsel %vm568, 1, 0
      %v617 = vsel %vm569, 1, 0
      %v618 = vsel %vm570, 1, 0
      %v619 = vsel %vm571, 1, 0
      %v620 = vsel %vm572, 1, 0
      %v621 = vsel %vm573, 1, 0
      %v622 = vsel %vm574, 1, 0
      %v623 = vsel %vm575, 1, 0
      %v624 = vsel %vm576, 1, 0
      %v625 = vsel %vm577, 1, 0
      %v626 = vcvt.s32.f32 %v610
      %v627 = vcvt.s32.f32 %v611
      %v628 = vcvt.s32.f32 %v612
      %v629 = vcvt.s32.f32 %v613
      %v630 = vcvt.s32.f32 %v614
      %v631 = vcvt.s32.f32 %v615
      %v632 = vcvt.s32.f32 %v616
      %v633 = vcvt.s32.f32 %v617
      %v634 = vcvt.s32.f32 %v618
      %v635 = vcvt.s32.f32 %v619
      %v636 = vcvt.s32.f32 %v620
      %v637 = vcvt.s32.f32 %v621
      %v638 = vcvt.s32.f32 %v622
      %v639 = vcvt.s32.f32 %v623
      %v640 = vcvt.s32.f32 %v624
      %v641 = vcvt.s32.f32 %v625
      %v642 = vlaneseq
      %v643 = vshrl.u32 %v642, 7
      %v644 = vadd.s32 %v643, 8
      %v645 = vadd.s32 %v643, 16
      %v646 = vadd.s32 %v643, 24
      %v647 = vadd.s32 %v643, 32
      %v648 = vadd.s32 %v643, 40
      %v649 = vadd.s32 %v643, 48
      %v650 = vadd.s32 %v643, 56
      %v651 = vld [vmem:[%s409] sm:$0x1]
      %v652 = vlaneseq
      %v653 = vshrl.u32 %v652, 7
      %v654 = vsub.s32 0, %v653
      %v655 = vrot.slane %v651, %v654
      %vm656 = vcmp.eq.s32.totalorder %v643, %v655
      %vm657 = vcmp.eq.s32.totalorder %v644, %v655
      %vm658 = vcmp.eq.s32.totalorder %v645, %v655
      %vm659 = vcmp.eq.s32.totalorder %v646, %v655
      %vm660 = vcmp.eq.s32.totalorder %v647, %v655
      %vm661 = vcmp.eq.s32.totalorder %v648, %v655
      %vm662 = vcmp.eq.s32.totalorder %v649, %v655
      %vm663 = vcmp.eq.s32.totalorder %v650, %v655
      %v664 = vsel %vm656, 1, 0
      %v665 = vsel %vm657, 1, 0
      %v666 = vsel %vm658, 1, 0
      %v667 = vsel %vm659, 1, 0
      %v668 = vsel %vm660, 1, 0
      %v669 = vsel %vm661, 1, 0
      %v670 = vsel %vm662, 1, 0
      %v671 = vsel %vm663, 1, 0
      %v672 = vcvt.s32.f32 %v664
      %v673 = vcvt.s32.f32 %v665
      %v674 = vcvt.s32.f32 %v666
      %v675 = vcvt.s32.f32 %v667
      %v676 = vcvt.s32.f32 %v668
      %v677 = vcvt.s32.f32 %v669
      %v678 = vcvt.s32.f32 %v670
      %v679 = vcvt.s32.f32 %v671
      %v680 = vld [vmem:[%s3] sm:$0xff]
      %v681 = vld [vmem:[%s3 + $0x8] sm:$0xff]
      %v682 = vld [vmem:[%s3 + $0x10] sm:$0xff]
      %v683 = vld [vmem:[%s3 + $0x18] sm:$0xff]
      %v684 = vld [vmem:[%s3 + $0x20] sm:$0xff]
      %v685 = vld [vmem:[%s3 + $0x28] sm:$0xff]
      %v686 = vld [vmem:[%s3 + $0x30] sm:$0xff]
      %v687 = vld [vmem:[%s3 + $0x38] sm:$0xff]
      %vm688 = vcmask 523264
      %v690 = vsel %vm688, %v626, 0
      %v693 = vsel %vm688, %v627, 0
      %v696 = vsel %vm688, %v628, 0
      %v699 = vsel %vm688, %v629, 0
      %v702 = vsel %vm688, %v630, 0
      %v705 = vsel %vm688, %v631, 0
      %v708 = vsel %vm688, %v632, 0
      %v711 = vsel %vm688, %v633, 0
      %v714 = vsel %vm688, %v634, 0
      %v717 = vsel %vm688, %v635, 0
      %v720 = vsel %vm688, %v636, 0
      %v723 = vsel %vm688, %v637, 0
      %v726 = vsel %vm688, %v638, 0
      %v729 = vsel %vm688, %v639, 0
      %v732 = vsel %vm688, %v640, 0
      %v735 = vsel %vm688, %v641, 0
      %737 = vmatprep.subr.mxu0 0.0
      %738 = vmatpush1.msra.mxu0 %v680
      %739 = vmatprep.subr.mxu0 0.0
      %740 = vmatpush1.msra.mxu0 %v681
      %741 = vmatprep.subr.mxu0 0.0
      %742 = vmatpush1.msra.mxu0 %v682
      %743 = vmatprep.subr.mxu0 0.0
      %744 = vmatpush1.msra.mxu0 %v683
      %745 = vmatprep.subr.mxu0 0.0
      %746 = vmatpush1.msra.mxu0 %v684
      %747 = vmatprep.subr.mxu0 0.0
      %748 = vmatpush1.msra.mxu0 %v685
      %749 = vmatprep.subr.mxu0 0.0
      %750 = vmatpush1.msra.mxu0 %v686
      %751 = vmatprep.subr.mxu0 0.0
      %752 = vmatpush1.msra.mxu0 %v687
      %753 = vmatprep.subr.mxu0 0.0
      %754 = vmatpush1.msra.mxu0 0.0
      %755 = vmatprep.subr.mxu0 0.0
      %756 = vmatpush1.msra.mxu0 0.0
      %757 = vmatprep.subr.mxu0 0.0
      %758 = vmatpush1.msra.mxu0 0.0
      %759 = vmatprep.subr.mxu0 0.0
      %760 = vmatpush1.msra.mxu0 0.0
      %761 = vmatprep.subr.mxu0 0.0
      %762 = vmatpush1.msra.mxu0 0.0
      %763 = vmatprep.subr.mxu0 0.0
      %764 = vmatpush1.msra.mxu0 0.0
      %765 = vmatprep.subr.mxu0 0.0
      %766 = vmatpush1.msra.mxu0 0.0
      %767 = vmatprep.subr.mxu0 0.0
      %768 = vmatpush1.msra.mxu0 0.0
      %769 = vmatprep.subr.mxu0 0.0
      %770 = vmatpush1.msra.mxu0 0.0
      %771 = vmatprep.subr.mxu0 0.0
      %772 = vmatpush1.msra.mxu0 0.0
      %773 = vmatprep.subr.mxu0 0.0
      %774 = vmatpush1.msra.mxu0 0.0
      %775 = vmatprep.subr.mxu0 0.0
      %776 = vmatpush1.msra.mxu0 0.0
      %777 = vmatprep.subr.mxu0 0.0
      %778 = vmatpush1.msra.mxu0 0.0
      %779 = vmatprep.subr.mxu0 0.0
      %780 = vmatpush1.msra.mxu0 0.0
      %781 = vmatprep.subr.mxu0 0.0
      %782 = vmatpush1.msra.mxu0 0.0
      %783 = vmatprep.subr.mxu0 0.0
      %784 = vmatpush1.msra.mxu0 0.0
      %785 = vmatprep.subr.mxu0 0.0
      %786 = vmatpush1.msra.mxu0 0.0
      %787 = vmatprep.subr.mxu0 0.0
      %788 = vmatpush1.msra.mxu0 0.0
      %789 = vmatprep.subr.mxu0 0.0
      %790 = vmatpush1.msra.mxu0 0.0
      %791 = vmatprep.subr.mxu0 0.0
      %792 = vmatpush1.msra.mxu0 0.0
      %793 = vmatprep.subr.mxu0 0.0
      %794 = vmatpush1.msra.mxu0 0.0
      %795 = vmatprep.subr.mxu0 0.0
      %796 = vmatpush1.msra.mxu0 0.0
      %797 = vmatprep.subr.mxu0 0.0
      %798 = vmatpush1.msra.mxu0 0.0
      %799 = vmatprep.subr.mxu0 0.0
      %800 = vmatpush1.msra.mxu0 0.0
      %801 = vmatprep.mubr.f32.mxu0 0.0
      %802 = vmatmul.mubr.f32.gmra.mrb[0].mxu0 %v690
      %v803 = vpop.f32.mrb[0].mxu0
      %v804 = vadd.f32 0.0, %v803
      %v805 = vpop.f32.mrb[0].mxu0
      %806 = vmatprep.mubr.f32.mxu0 0.0
      %807 = vmatmul.mubr.f32.gmra.mrb[0].mxu0 %v693
      %v808 = vpop.f32.mrb[0].mxu0
      %v809 = vadd.f32 0.0, %v808
      %v810 = vpop.f32.mrb[0].mxu0
      %811 = vmatprep.mubr.f32.mxu0 0.0
      %812 = vmatmul.mubr.f32.gmra.mrb[0].mxu0 %v696
      %v813 = vpop.f32.mrb[0].mxu0
      %v814 = vadd.f32 0.0, %v813
      %v815 = vpop.f32.mrb[0].mxu0
      %816 = vmatprep.mubr.f32.mxu0 0.0
      %817 = vmatmul.mubr.f32.gmra.mrb[0].mxu0 %v699
      %v818 = vpop.f32.mrb[0].mxu0
      %v819 = vadd.f32 0.0, %v818
      %v820 = vpop.f32.mrb[0].mxu0
      %821 = vmatprep.mubr.f32.mxu0 0.0
      %822 = vmatmul.mubr.f32.gmra.mrb[0].mxu0 %v702
      %v823 = vpop.f32.mrb[0].mxu0
      %v824 = vadd.f32 0.0, %v823
      %v825 = vpop.f32.mrb[0].mxu0
      %826 = vmatprep.mubr.f32.mxu0 0.0
      %827 = vmatmul.mubr.f32.gmra.mrb[0].mxu0 %v705
      %v828 = vpop.f32.mrb[0].mxu0
      %v829 = vadd.f32 0.0, %v828
      %v830 = vpop.f32.mrb[0].mxu0
      %831 = vmatprep.mubr.f32.mxu0 0.0
      %832 = vmatmul.mubr.f32.gmra.mrb[0].mxu0 %v708
      %v833 = vpop.f32.mrb[0].mxu0
      %v834 = vadd.f32 0.0, %v833
      %v835 = vpop.f32.mrb[0].mxu0
      %836 = vmatprep.mubr.f32.mxu0 0.0
      %837 = vmatmul.mubr.f32.gmra.mrb[0].mxu0 %v711
      %v838 = vpop.f32.mrb[0].mxu0
      %v839 = vadd.f32 0.0, %v838
      %v840 = vpop.f32.mrb[0].mxu0
      %841 = vmatprep.mubr.f32.mxu0 0.0
      %842 = vmatmul.mubr.f32.gmra.mrb[0].mxu0 %v714
      %v843 = vpop.f32.mrb[0].mxu0
      %v844 = vadd.f32 0.0, %v843
      %v845 = vpop.f32.mrb[0].mxu0
      %846 = vmatprep.mubr.f32.mxu0 0.0
      %847 = vmatmul.mubr.f32.gmra.mrb[0].mxu0 %v717
      %v848 = vpop.f32.mrb[0].mxu0
      %v849 = vadd.f32 0.0, %v848
      %v850 = vpop.f32.mrb[0].mxu0
      %851 = vmatprep.mubr.f32.mxu0 0.0
      %852 = vmatmul.mubr.f32.gmra.mrb[0].mxu0 %v720
      %v853 = vpop.f32.mrb[0].mxu0
      %v854 = vadd.f32 0.0, %v853
      %v855 = vpop.f32.mrb[0].mxu0
      %856 = vmatprep.mubr.f32.mxu0 0.0
      %857 = vmatmul.mubr.f32.gmra.mrb[0].mxu0 %v723
      %v858 = vpop.f32.mrb[0].mxu0
      %v859 = vadd.f32 0.0, %v858
      %v860 = vpop.f32.mrb[0].mxu0
      %861 = vmatprep.mubr.f32.mxu0 0.0
      %862 = vmatmul.mubr.f32.gmra.mrb[0].mxu0 %v726
      %v863 = vpop.f32.mrb[0].mxu0
      %v864 = vadd.f32 0.0, %v863
      %v865 = vpop.f32.mrb[0].mxu0
      %866 = vmatprep.mubr.f32.mxu0 0.0
      %867 = vmatmul.mubr.f32.gmra.mrb[0].mxu0 %v729
      %v868 = vpop.f32.mrb[0].mxu0
      %v869 = vadd.f32 0.0, %v868
      %v870 = vpop.f32.mrb[0].mxu0
      %871 = vmatprep.mubr.f32.mxu0 0.0
      %872 = vmatmul.mubr.f32.gmra.mrb[0].mxu0 %v732
      %v873 = vpop.f32.mrb[0].mxu0
      %v874 = vadd.f32 0.0, %v873
      %v875 = vpop.f32.mrb[0].mxu0
      %876 = vmatprep.mubr.f32.mxu0 0.0
      %877 = vmatmul.mubr.f32.gmra.mrb[0].mxu0 %v735
      %v878 = vpop.f32.mrb[0].mxu0
      %v879 = vadd.f32 0.0, %v878
      %v880 = vpop.f32.mrb[0].mxu0
      %881 = vdwg.mxu0
      %v882 = vld [vmem:[%s4] sm:$0xff]
      %v883 = vld [vmem:[%s4 + $0x8] sm:$0xff]
      %v884 = vld [vmem:[%s4 + $0x10] sm:$0xff]
      %v885 = vld [vmem:[%s4 + $0x18] sm:$0xff]
      %v886 = vld [vmem:[%s4 + $0x20] sm:$0xff]
      %v887 = vld [vmem:[%s4 + $0x28] sm:$0xff]
      %v888 = vld [vmem:[%s4 + $0x30] sm:$0xff]
      %v889 = vld [vmem:[%s4 + $0x38] sm:$0xff]
      %v891 = vsel %vm688, %v594, 0
      %v894 = vsel %vm688, %v595, 0
      %v897 = vsel %vm688, %v596, 0
      %v900 = vsel %vm688, %v597, 0
      %v903 = vsel %vm688, %v598, 0
      %v906 = vsel %vm688, %v599, 0
      %v909 = vsel %vm688, %v600, 0
      %v912 = vsel %vm688, %v601, 0
      %v915 = vsel %vm688, %v602, 0
      %v918 = vsel %vm688, %v603, 0
      %v921 = vsel %vm688, %v604, 0
      %v924 = vsel %vm688, %v605, 0
      %v927 = vsel %vm688, %v606, 0
      %v930 = vsel %vm688, %v607, 0
      %v933 = vsel %vm688, %v608, 0
      %v936 = vsel %vm688, %v609, 0
      %938 = vmatprep.subr.mxu0 0.0
      %939 = vmatpush1.msra.mxu0 %v882
      %940 = vmatprep.subr.mxu0 0.0
      %941 = vmatpush1.msra.mxu0 %v883
      %942 = vmatprep.subr.mxu0 0.0
      %943 = vmatpush1.msra.mxu0 %v884
      %944 = vmatprep.subr.mxu0 0.0
      %945 = vmatpush1.msra.mxu0 %v885
      %946 = vmatprep.subr.mxu0 0.0
      %947 = vmatpush1.msra.mxu0 %v886
      %948 = vmatprep.subr.mxu0 0.0
      %949 = vmatpush1.msra.mxu0 %v887
      %950 = vmatprep.subr.mxu0 0.0
      %951 = vmatpush1.msra.mxu0 %v888
      %952 = vmatprep.subr.mxu0 0.0
      %953 = vmatpush1.msra.mxu0 %v889
      %954 = vmatprep.subr.mxu0 0.0
      %955 = vmatpush1.msra.mxu0 0.0
      %956 = vmatprep.subr.mxu0 0.0
      %957 = vmatpush1.msra.mxu0 0.0
      %958 = vmatprep.subr.mxu0 0.0
      %959 = vmatpush1.msra.mxu0 0.0
      %960 = vmatprep.subr.mxu0 0.0
      %961 = vmatpush1.msra.mxu0 0.0
      %962 = vmatprep.subr.mxu0 0.0
      %963 = vmatpush1.msra.mxu0 0.0
      %964 = vmatprep.subr.mxu0 0.0
      %965 = vmatpush1.msra.mxu0 0.0
      %966 = vmatprep.subr.mxu0 0.0
      %967 = vmatpush1.msra.mxu0 0.0
      %968 = vmatprep.subr.mxu0 0.0
      %969 = vmatpush1.msra.mxu0 0.0
      %970 = vmatprep.subr.mxu0 0.0
      %971 = vmatpush1.msra.mxu0 0.0
      %972 = vmatprep.subr.mxu0 0.0
      %973 = vmatpush1.msra.mxu0 0.0
      %974 = vmatprep.subr.mxu0 0.0
      %975 = vmatpush1.msra.mxu0 0.0
      %976 = vmatprep.subr.mxu0 0.0
      %977 = vmatpush1.msra.mxu0 0.0
      %978 = vmatprep.subr.mxu0 0.0
      %979 = vmatpush1.msra.mxu0 0.0
      %980 = vmatprep.subr.mxu0 0.0
      %981 = vmatpush1.msra.mxu0 0.0
      %982 = vmatprep.subr.mxu0 0.0
      %983 = vmatpush1.msra.mxu0 0.0
      %984 = vmatprep.subr.mxu0 0.0
      %985 = vmatpush1.msra.mxu0 0.0
      %986 = vmatprep.subr.mxu0 0.0
      %987 = vmatpush1.msra.mxu0 0.0
      %988 = vmatprep.subr.mxu0 0.0
      %989 = vmatpush1.msra.mxu0 0.0
      %990 = vmatprep.subr.mxu0 0.0
      %991 = vmatpush1.msra.mxu0 0.0
      %992 = vmatprep.subr.mxu0 0.0
      %993 = vmatpush1.msra.mxu0 0.0
      %994 = vmatprep.subr.mxu0 0.0
      %995 = vmatpush1.msra.mxu0 0.0
      %996 = vmatprep.subr.mxu0 0.0
      %997 = vmatpush1.msra.mxu0 0.0
      %998 = vmatprep.subr.mxu0 0.0
      %999 = vmatpush1.msra.mxu0 0.0
      %1000 = vmatprep.subr.mxu0 0.0
      %1001 = vmatpush1.msra.mxu0 0.0
      %1002 = vmatprep.mubr.f32.mxu0 0.0
      %1003 = vmatmul.mubr.f32.gmra.mrb[0].mxu0 %v891
      %v1004 = vpop.f32.mrb[0].mxu0
      %v1005 = vadd.f32 0.0, %v1004
      %v1006 = vpop.f32.mrb[0].mxu0
      %1007 = vmatprep.mubr.f32.mxu0 0.0
      %1008 = vmatmul.mubr.f32.gmra.mrb[0].mxu0 %v894
      %v1009 = vpop.f32.mrb[0].mxu0
      %v1010 = vadd.f32 0.0, %v1009
      %v1011 = vpop.f32.mrb[0].mxu0
      %1012 = vmatprep.mubr.f32.mxu0 0.0
      %1013 = vmatmul.mubr.f32.gmra.mrb[0].mxu0 %v897
      %v1014 = vpop.f32.mrb[0].mxu0
      %v1015 = vadd.f32 0.0, %v1014
      %v1016 = vpop.f32.mrb[0].mxu0
      %1017 = vmatprep.mubr.f32.mxu0 0.0
      %1018 = vmatmul.mubr.f32.gmra.mrb[0].mxu0 %v900
      %v1019 = vpop.f32.mrb[0].mxu0
      %v1020 = vadd.f32 0.0, %v1019
      %v1021 = vpop.f32.mrb[0].mxu0
      %1022 = vmatprep.mubr.f32.mxu0 0.0
      %1023 = vmatmul.mubr.f32.gmra.mrb[0].mxu0 %v903
      %v1024 = vpop.f32.mrb[0].mxu0
      %v1025 = vadd.f32 0.0, %v1024
      %v1026 = vpop.f32.mrb[0].mxu0
      %1027 = vmatprep.mubr.f32.mxu0 0.0
      %1028 = vmatmul.mubr.f32.gmra.mrb[0].mxu0 %v906
      %v1029 = vpop.f32.mrb[0].mxu0
      %v1030 = vadd.f32 0.0, %v1029
      %v1031 = vpop.f32.mrb[0].mxu0
      %1032 = vmatprep.mubr.f32.mxu0 0.0
      %1033 = vmatmul.mubr.f32.gmra.mrb[0].mxu0 %v909
      %v1034 = vpop.f32.mrb[0].mxu0
      %v1035 = vadd.f32 0.0, %v1034
      %v1036 = vpop.f32.mrb[0].mxu0
      %1037 = vmatprep.mubr.f32.mxu0 0.0
      %1038 = vmatmul.mubr.f32.gmra.mrb[0].mxu0 %v912
      %v1039 = vpop.f32.mrb[0].mxu0
      %v1040 = vadd.f32 0.0, %v1039
      %v1041 = vpop.f32.mrb[0].mxu0
      %1042 = vmatprep.mubr.f32.mxu0 0.0
      %1043 = vmatmul.mubr.f32.gmra.mrb[0].mxu0 %v915
      %v1044 = vpop.f32.mrb[0].mxu0
      %v1045 = vadd.f32 0.0, %v1044
      %v1046 = vpop.f32.mrb[0].mxu0
      %1047 = vmatprep.mubr.f32.mxu0 0.0
      %1048 = vmatmul.mubr.f32.gmra.mrb[0].mxu0 %v918
      %v1049 = vpop.f32.mrb[0].mxu0
      %v1050 = vadd.f32 0.0, %v1049
      %v1051 = vpop.f32.mrb[0].mxu0
      %1052 = vmatprep.mubr.f32.mxu0 0.0
      %1053 = vmatmul.mubr.f32.gmra.mrb[0].mxu0 %v921
      %v1054 = vpop.f32.mrb[0].mxu0
      %v1055 = vadd.f32 0.0, %v1054
      %v1056 = vpop.f32.mrb[0].mxu0
      %1057 = vmatprep.mubr.f32.mxu0 0.0
      %1058 = vmatmul.mubr.f32.gmra.mrb[0].mxu0 %v924
      %v1059 = vpop.f32.mrb[0].mxu0
      %v1060 = vadd.f32 0.0, %v1059
      %v1061 = vpop.f32.mrb[0].mxu0
      %1062 = vmatprep.mubr.f32.mxu0 0.0
      %1063 = vmatmul.mubr.f32.gmra.mrb[0].mxu0 %v927
      %v1064 = vpop.f32.mrb[0].mxu0
      %v1065 = vadd.f32 0.0, %v1064
      %v1066 = vpop.f32.mrb[0].mxu0
      %1067 = vmatprep.mubr.f32.mxu0 0.0
      %1068 = vmatmul.mubr.f32.gmra.mrb[0].mxu0 %v930
      %v1069 = vpop.f32.mrb[0].mxu0
      %v1070 = vadd.f32 0.0, %v1069
      %v1071 = vpop.f32.mrb[0].mxu0
      %1072 = vmatprep.mubr.f32.mxu0 0.0
      %1073 = vmatmul.mubr.f32.gmra.mrb[0].mxu0 %v933
      %v1074 = vpop.f32.mrb[0].mxu0
      %v1075 = vadd.f32 0.0, %v1074
      %v1076 = vpop.f32.mrb[0].mxu0
      %1077 = vmatprep.mubr.f32.mxu0 0.0
      %1078 = vmatmul.mubr.f32.gmra.mrb[0].mxu0 %v936
      %v1079 = vpop.f32.mrb[0].mxu0
      %v1080 = vadd.f32 0.0, %v1079
      %v1081 = vpop.f32.mrb[0].mxu0
      %1082 = vdwg.mxu0
      %v1083 = vld [vmem:[%s405] sm:$0xff]
      %v1084 = vld [vmem:[%s405 + $0x8] sm:$0xff]
      %v1085 = vld [vmem:[%s405 + $0x10] sm:$0xff]
      %v1086 = vld [vmem:[%s405 + $0x18] sm:$0xff]
      %v1087 = vld [vmem:[%s405 + $0x20] sm:$0xff]
      %v1088 = vld [vmem:[%s405 + $0x28] sm:$0xff]
      %v1089 = vld [vmem:[%s405 + $0x30] sm:$0xff]
      %v1090 = vld [vmem:[%s405 + $0x38] sm:$0xff]
      %v1091 = vld [vmem:[%s405 + $0x40] sm:$0xff]
      %v1092 = vld [vmem:[%s405 + $0x48] sm:$0xff]
      %v1093 = vld [vmem:[%s405 + $0x50] sm:$0xff]
      %v1094 = vld [vmem:[%s405 + $0x58] sm:$0xff]
      %v1095 = vld [vmem:[%s405 + $0x60] sm:$0xff]
      %v1096 = vld [vmem:[%s405 + $0x68] sm:$0xff]
      %v1097 = vld [vmem:[%s405 + $0x70] sm:$0xff]
      %v1098 = vld [vmem:[%s405 + $0x78] sm:$0xff]
      %1115 = vrot.lane.b32.xlu0 %v1083, 48
      %v1116 = vpop.permute.xlu0 %1115
      %1117 = vrot.lane.b32.xlu0 %v1084, 48
      %v1118 = vpop.permute.xlu0 %1117
      %1119 = vrot.lane.b32.xlu0 %v1085, 48
      %v1120 = vpop.permute.xlu0 %1119
      %1121 = vrot.lane.b32.xlu0 %v1086, 48
      %v1122 = vpop.permute.xlu0 %1121
      %1123 = vrot.lane.b32.xlu0 %v1087, 48
      %v1124 = vpop.permute.xlu0 %1123
      %1125 = vrot.lane.b32.xlu0 %v1088, 48
      %v1126 = vpop.permute.xlu0 %1125
      %1127 = vrot.lane.b32.xlu0 %v1089, 48
      %v1128 = vpop.permute.xlu0 %1127
      %1129 = vrot.lane.b32.xlu0 %v1090, 48
      %v1130 = vpop.permute.xlu0 %1129
      %1131 = vrot.lane.b32.xlu0 %v1091, 48
      %v1132 = vpop.permute.xlu0 %1131
      %1133 = vrot.lane.b32.xlu0 %v1092, 48
      %v1134 = vpop.permute.xlu0 %1133
      %1135 = vrot.lane.b32.xlu0 %v1093, 48
      %v1136 = vpop.permute.xlu0 %1135
      %1137 = vrot.lane.b32.xlu0 %v1094, 48
      %v1138 = vpop.permute.xlu0 %1137
      %1139 = vrot.lane.b32.xlu0 %v1095, 48
      %v1140 = vpop.permute.xlu0 %1139
      %1141 = vrot.lane.b32.xlu0 %v1096, 48
      %v1142 = vpop.permute.xlu0 %1141
      %1143 = vrot.lane.b32.xlu0 %v1097, 48
      %v1144 = vpop.permute.xlu0 %1143
      %1145 = vrot.lane.b32.xlu0 %v1098, 48
      %v1146 = vpop.permute.xlu0 %1145
      %v1163 = vsub.f32 %v1005, %v1116
      %v1164 = vsub.f32 %v1010, %v1118
      %v1165 = vsub.f32 %v1015, %v1120
      %v1166 = vsub.f32 %v1020, %v1122
      %v1167 = vsub.f32 %v1025, %v1124
      %v1168 = vsub.f32 %v1030, %v1126
      %v1169 = vsub.f32 %v1035, %v1128
      %v1170 = vsub.f32 %v1040, %v1130
      %v1171 = vsub.f32 %v1045, %v1132
      %v1172 = vsub.f32 %v1050, %v1134
      %v1173 = vsub.f32 %v1055, %v1136
      %v1174 = vsub.f32 %v1060, %v1138
      %v1175 = vsub.f32 %v1065, %v1140
      %v1176 = vsub.f32 %v1070, %v1142
      %v1177 = vsub.f32 %v1075, %v1144
      %v1178 = vsub.f32 %v1080, %v1146
      %v1179 = vld [vmem:[%s6] sm:$0x1]
      %1181 = vset.pattern.permute.xlu0 64
      %1182 = vperm.xlu0 %1181, %v1163
      %v1183 = vpop.permute.xlu0 %1182
      %1186 = vset.pattern.permute.xlu0 64
      %1187 = vperm.xlu0 %1186, %v1164
      %v1188 = vpop.permute.xlu0 %1187
      %1191 = vset.pattern.permute.xlu0 64
      %1192 = vperm.xlu0 %1191, %v1165
      %v1193 = vpop.permute.xlu0 %1192
      %1196 = vset.pattern.permute.xlu0 64
      %1197 = vperm.xlu0 %1196, %v1166
      %v1198 = vpop.permute.xlu0 %1197
      %1201 = vset.pattern.permute.xlu0 64
      %1202 = vperm.xlu0 %1201, %v1167
      %v1203 = vpop.permute.xlu0 %1202
      %1206 = vset.pattern.permute.xlu0 64
      %1207 = vperm.xlu0 %1206, %v1168
      %v1208 = vpop.permute.xlu0 %1207
      %1211 = vset.pattern.permute.xlu0 64
      %1212 = vperm.xlu0 %1211, %v1169
      %v1213 = vpop.permute.xlu0 %1212
      %1216 = vset.pattern.permute.xlu0 64
      %1217 = vperm.xlu0 %1216, %v1170
      %v1218 = vpop.permute.xlu0 %1217
      %1221 = vset.pattern.permute.xlu0 64
      %1222 = vperm.xlu0 %1221, %v1171
      %v1223 = vpop.permute.xlu0 %1222
      %1226 = vset.pattern.permute.xlu0 64
      %1227 = vperm.xlu0 %1226, %v1172
      %v1228 = vpop.permute.xlu0 %1227
      %1231 = vset.pattern.permute.xlu0 64
      %1232 = vperm.xlu0 %1231, %v1173
      %v1233 = vpop.permute.xlu0 %1232
      %1236 = vset.pattern.permute.xlu0 64
      %1237 = vperm.xlu0 %1236, %v1174
      %v1238 = vpop.permute.xlu0 %1237
      %1241 = vset.pattern.permute.xlu0 64
      %1242 = vperm.xlu0 %1241, %v1175
      %v1243 = vpop.permute.xlu0 %1242
      %1246 = vset.pattern.permute.xlu0 64
      %1247 = vperm.xlu0 %1246, %v1176
      %v1248 = vpop.permute.xlu0 %1247
      %1251 = vset.pattern.permute.xlu0 64
      %1252 = vperm.xlu0 %1251, %v1177
      %v1253 = vpop.permute.xlu0 %1252
      %1256 = vset.pattern.permute.xlu0 64
      %1257 = vperm.xlu0 %1256, %v1178
      %v1258 = vpop.permute.xlu0 %1257
      %v1261 = vlaneseq
      %v1262 = vshrl.u32 %v1261, 7
      %v1263 = vsub.s32 0, %v1262
      %v1264 = vrot.slane %v1179, %v1263
      %v1266 = vmul.f32 %v1183, %v1264
      %v1267 = vmul.f32 %v1188, %v1264
      %v1268 = vmul.f32 %v1193, %v1264
      %v1269 = vmul.f32 %v1198, %v1264
      %v1270 = vmul.f32 %v1203, %v1264
      %v1271 = vmul.f32 %v1208, %v1264
      %v1272 = vmul.f32 %v1213, %v1264
      %v1273 = vmul.f32 %v1218, %v1264
      %v1274 = vmul.f32 %v1223, %v1264
      %v1275 = vmul.f32 %v1228, %v1264
      %v1276 = vmul.f32 %v1233, %v1264
      %v1277 = vmul.f32 %v1238, %v1264
      %v1278 = vmul.f32 %v1243, %v1264
      %v1279 = vmul.f32 %v1248, %v1264
      %v1280 = vmul.f32 %v1253, %v1264
      %v1281 = vmul.f32 %v1258, %v1264
      %v1282 = vld [vmem:[%s7] sm:$0x1]
      %v1284 = vlaneseq
      %v1285 = vshrl.u32 %v1284, 7
      %v1286 = vsub.s32 0, %v1285
      %v1287 = vrot.slane %v1282, %v1286
      %v1289 = vadd.f32 %v1266, %v1287
      %v1290 = vadd.f32 %v1267, %v1287
      %v1291 = vadd.f32 %v1268, %v1287
      %v1292 = vadd.f32 %v1269, %v1287
      %v1293 = vadd.f32 %v1270, %v1287
      %v1294 = vadd.f32 %v1271, %v1287
      %v1295 = vadd.f32 %v1272, %v1287
      %v1296 = vadd.f32 %v1273, %v1287
      %v1297 = vadd.f32 %v1274, %v1287
      %v1298 = vadd.f32 %v1275, %v1287
      %v1299 = vadd.f32 %v1276, %v1287
      %v1300 = vadd.f32 %v1277, %v1287
      %v1301 = vadd.f32 %v1278, %v1287
      %v1302 = vadd.f32 %v1279, %v1287
      %v1303 = vadd.f32 %v1280, %v1287
      %v1304 = vadd.f32 %v1281, %v1287
      %v1305 = vand.u32 2147483647, %v1289
      %vm1306 = vcmp.le.f32.partialorder %v1305, 0.7853982
      %vm1307 = vcmp.lt.s32.totalorder %v1289, 0
      %v1308 = vand.u32 %v1289, 2139095040
      %v1309 = vshrl.u32 %v1308, 23
      %v1310 = vsub.s32 %v1309, 127
      %v1311 = vand.u32 2147483647, %v1289
      %v1312 = vand.u32 %v1311, 8388607
      %v1313 = vor.u32 %v1312, 8388608
      %v1314 = vsub.s32 0, %v1313
      %v1315 = vadd.s32 %v1310, 1
      %vm1316 = vcmp.gt.s32.totalorder %v1315, 0
      %v1317 = vsel %vm1316, %v1315, 0
      %v1318 = vshrl.u32 %v1317, 5
      %v1319 = vand.u32 %v1317, 31
      %v1320 = vsub.s32 32, %v1319
      %v1321 = vshrl.u32 683565275, %v1320
      %v1322 = vshll.u32 683565275, %v1319
      %v1323 = vshrl.u32 2475754826, %v1320
      %v1324 = vor.u32 %v1322, %v1323
      %v1325 = vshll.u32 2475754826, %v1319
      %v1326 = vshrl.u32 2131351028, %v1320
      %v1327 = vor.u32 %v1325, %v1326
      %v1328 = vshll.u32 2131351028, %v1319
      %v1329 = vshrl.u32 2102212464, %v1320
      %v1330 = vor.u32 %v1328, %v1329
      %v1331 = vshll.u32 2102212464, %v1319
      %v1332 = vshrl.u32 920167782, %v1320
      %v1333 = vor.u32 %v1331, %v1332
      %v1334 = vshll.u32 920167782, %v1319
      %v1335 = vshrl.u32 1326507024, %v1320
      %v1336 = vor.u32 %v1334, %v1335
      %vm1337 = vcmp.lt.s32.totalorder %v1318, 1
      %vm1338 = vcmp.lt.s32.totalorder %v1318, 2
      %vm1339 = vcmp.lt.s32.totalorder %v1318, 3
      %vm1340 = vcmp.lt.s32.totalorder %v1318, 4
      %v1341 = vsel %vm1337, %v1321, %v1324
      %v1342 = vsel %vm1340, %v1330, 2102212464
      %v1343 = vsel %vm1339, %v1327, %v1342
      %v1344 = vsel %vm1338, %v1341, %v1343
      %v1345 = vsel %vm1337, %v1324, %v1327
      %v1346 = vsel %vm1340, %v1333, 920167782
      %v1347 = vsel %vm1339, %v1330, %v1346
      %v1348 = vsel %vm1338, %v1345, %v1347
      %v1349 = vsel %vm1337, %v1327, %v1330
      %v1350 = vsel %vm1340, %v1336, 1326507024
      %v1351 = vsel %vm1339, %v1333, %v1350
      %v1352 = vsel %vm1338, %v1349, %v1351
      %v1353 = vshll.u32 %v1313, 8
      %v1354 = vmul.u32.u64.compose %v1353, %v1352
      %v1355 = vextract.low.u32 %v1354
      %v1356 = vextract.high.u32 %v1354
      %v1357 = vmul.u32.u64.compose %v1353, %v1348
      %v1358 = vextract.low.u32 %v1357
      %v1359 = vextract.high.u32 %v1357
      %v1360 = vmul.u32 %v1353, %v1344
      %v1361 = vadd.s32 %v1356, %v1358
      %vm1362 = vc.u32 %v1356, %v1358
      %v1363 = vadd.s32 %v1359, 1
      %v1364 = vsel %vm1362, %v1363, %v1359
      %v1365 = vadd.s32 %v1360, %v1364
      %v1366 = vadd.s32 %v1365, 536870912
      %v1367 = vshrl.u32 %v1366, 30
      %v1368 = vshll.u32 %v1367, 30
      %v1369 = vsub.s32 %v1365, %v1368
      %vm1370 = vcmp.lt.s32.totalorder %v1369, 0
      %v1371 = vsub.s32 0, %v1369
      %v1372 = vsel %vm1370, %v1371, %v1369
      %v1373 = vclz %v1372
      %v1374 = vsub.s32 %v1373, 2
      %vm1375 = vcmp.gt.s32.totalorder 0, %v1374
      %v1376 = vsel %vm1375, 0, %v1374
      %v1377 = vsub.s32 32, %v1376
      %v1378 = vshll.u32 %v1369, %v1376
      %v1379 = vshrl.u32 %v1361, %v1377
      %v1380 = vor.u32 %v1378, %v1379
      %v1381 = vsub.s32 4294967266, %v1376
      %v1382 = vadd.s32 %v1381, 127
      %v1383 = vshll.u32 %v1382, 23
      %v1384 = vor.u32 4788187, %v1383
      %v1385 = vand.u32 2147483647, %v1384
      %v1387 = vcvt.s32.f32 %v1380
      %v1388 = vmul.f32 %v1387, %v1385
      %v1389 = vxor.u32 %v1388, 2147483648
      %v1390 = vsel %vm1307, %v1389, %v1388
      %v1391 = vsub.s32 4, %v1367
      %v1392 = vsel %vm1307, %v1391, %v1367
      %v1393 = vsel %vm1306, %v1289, %v1390
      %v1394 = vsel %vm1306, 0, %v1392
      %v1395 = vcosq.f32.pop %v1393
      %v1396 = vsinq.f32.pop %v1393
      %vm1397 = vweird.f32 %v1289
      %v1398 = vand.u32 %v1394, 3
      %vm1399 = vcmp.lt.s32.totalorder %v1398, 2
      %vm1400 = vcmp.eq.s32.totalorder %v1398, 0
      %v1401 = vxor.u32 %v1396, 2147483648
      %v1402 = vsel %vm1400, %v1395, %v1401
      %vm1403 = vcmp.eq.s32.totalorder %v1398, 2
      %v1404 = vxor.u32 %v1395, 2147483648
      %v1405 = vsel %vm1403, %v1404, %v1396
      %v1406 = vsel %vm1399, %v1402, %v1405
      %v1407 = vsel %vm1397, nan, %v1406
      %v1408 = vand.u32 2147483647, %v1290
      %vm1409 = vcmp.le.f32.partialorder %v1408, 0.7853982
      %vm1410 = vcmp.lt.s32.totalorder %v1290, 0
      %v1411 = vand.u32 %v1290, 2139095040
      %v1412 = vshrl.u32 %v1411, 23
      %v1413 = vsub.s32 %v1412, 127
      %v1414 = vand.u32 2147483647, %v1290
      %v1415 = vand.u32 %v1414, 8388607
      %v1416 = vor.u32 %v1415, 8388608
      %v1417 = vsub.s32 0, %v1416
      %v1418 = vadd.s32 %v1413, 1
      %vm1419 = vcmp.gt.s32.totalorder %v1418, 0
      %v1420 = vsel %vm1419, %v1418, 0
      %v1421 = vshrl.u32 %v1420, 5
      %v1422 = vand.u32 %v1420, 31
      %v1423 = vsub.s32 32, %v1422
      %v1424 = vshrl.u32 683565275, %v1423
      %v1425 = vshll.u32 683565275, %v1422
      %v1426 = vshrl.u32 2475754826, %v1423
      %v1427 = vor.u32 %v1425, %v1426
      %v1428 = vshll.u32 2475754826, %v1422
      %v1429 = vshrl.u32 2131351028, %v1423
      %v1430 = vor.u32 %v1428, %v1429
      %v1431 = vshll.u32 2131351028, %v1422
      %v1432 = vshrl.u32 2102212464, %v1423
      %v1433 = vor.u32 %v1431, %v1432
      %v1434 = vshll.u32 2102212464, %v1422
      %v1435 = vshrl.u32 920167782, %v1423
      %v1436 = vor.u32 %v1434, %v1435
      %v1437 = vshll.u32 920167782, %v1422
      %v1438 = vshrl.u32 1326507024, %v1423
      %v1439 = vor.u32 %v1437, %v1438
      %vm1440 = vcmp.lt.s32.totalorder %v1421, 1
      %vm1441 = vcmp.lt.s32.totalorder %v1421, 2
      %vm1442 = vcmp.lt.s32.totalorder %v1421, 3
      %vm1443 = vcmp.lt.s32.totalorder %v1421, 4
      %v1444 = vsel %vm1440, %v1424, %v1427
      %v1445 = vsel %vm1443, %v1433, 2102212464
      %v1446 = vsel %vm1442, %v1430, %v1445
      %v1447 = vsel %vm1441, %v1444, %v1446
      %v1448 = vsel %vm1440, %v1427, %v1430
      %v1449 = vsel %vm1443, %v1436, 920167782
      %v1450 = vsel %vm1442, %v1433, %v1449
      %v1451 = vsel %vm1441, %v1448, %v1450
      %v1452 = vsel %vm1440, %v1430, %v1433
      %v1453 = vsel %vm1443, %v1439, 1326507024
      %v1454 = vsel %vm1442, %v1436, %v1453
      %v1455 = vsel %vm1441, %v1452, %v1454
      %v1456 = vshll.u32 %v1416, 8
      %v1457 = vmul.u32.u64.compose %v1456, %v1455
      %v1458 = vextract.low.u32 %v1457
      %v1459 = vextract.high.u32 %v1457
      %v1460 = vmul.u32.u64.compose %v1456, %v1451
      %v1461 = vextract.low.u32 %v1460
      %v1462 = vextract.high.u32 %v1460
      %v1463 = vmul.u32 %v1456, %v1447
      %v1464 = vadd.s32 %v1459, %v1461
      %vm1465 = vc.u32 %v1459, %v1461
      %v1466 = vadd.s32 %v1462, 1
      %v1467 = vsel %vm1465, %v1466, %v1462
      %v1468 = vadd.s32 %v1463, %v1467
      %v1469 = vadd.s32 %v1468, 536870912
      %v1470 = vshrl.u32 %v1469, 30
      %v1471 = vshll.u32 %v1470, 30
      %v1472 = vsub.s32 %v1468, %v1471
      %vm1473 = vcmp.lt.s32.totalorder %v1472, 0
      %v1474 = vsub.s32 0, %v1472
      %v1475 = vsel %vm1473, %v1474, %v1472
      %v1476 = vclz %v1475
      %v1477 = vsub.s32 %v1476, 2
      %vm1478 = vcmp.gt.s32.totalorder 0, %v1477
      %v1479 = vsel %vm1478, 0, %v1477
      %v1480 = vsub.s32 32, %v1479
      %v1481 = vshll.u32 %v1472, %v1479
      %v1482 = vshrl.u32 %v1464, %v1480
      %v1483 = vor.u32 %v1481, %v1482
      %v1484 = vsub.s32 4294967266, %v1479
      %v1485 = vadd.s32 %v1484, 127
      %v1486 = vshll.u32 %v1485, 23
      %v1487 = vor.u32 4788187, %v1486
      %v1488 = vand.u32 2147483647, %v1487
      %v1490 = vcvt.s32.f32 %v1483
      %v1491 = vmul.f32 %v1490, %v1488
      %v1492 = vxor.u32 %v1491, 2147483648
      %v1493 = vsel %vm1410, %v1492, %v1491
      %v1494 = vsub.s32 4, %v1470
      %v1495 = vsel %vm1410, %v1494, %v1470
      %v1496 = vsel %vm1409, %v1290, %v1493
      %v1497 = vsel %vm1409, 0, %v1495
      %v1498 = vcosq.f32.pop %v1496
      %v1499 = vsinq.f32.pop %v1496
      %vm1500 = vweird.f32 %v1290
      %v1501 = vand.u32 %v1497, 3
      %vm1502 = vcmp.lt.s32.totalorder %v1501, 2
      %vm1503 = vcmp.eq.s32.totalorder %v1501, 0
      %v1504 = vxor.u32 %v1499, 2147483648
      %v1505 = vsel %vm1503, %v1498, %v1504
      %vm1506 = vcmp.eq.s32.totalorder %v1501, 2
      %v1507 = vxor.u32 %v1498, 2147483648
      %v1508 = vsel %vm1506, %v1507, %v1499
      %v1509 = vsel %vm1502, %v1505, %v1508
      %v1510 = vsel %vm1500, nan, %v1509
      %v1511 = vand.u32 2147483647, %v1291
      %vm1512 = vcmp.le.f32.partialorder %v1511, 0.7853982
      %vm1513 = vcmp.lt.s32.totalorder %v1291, 0
      %v1514 = vand.u32 %v1291, 2139095040
      %v1515 = vshrl.u32 %v1514, 23
      %v1516 = vsub.s32 %v1515, 127
      %v1517 = vand.u32 2147483647, %v1291
      %v1518 = vand.u32 %v1517, 8388607
      %v1519 = vor.u32 %v1518, 8388608
      %v1520 = vsub.s32 0, %v1519
      %v1521 = vadd.s32 %v1516, 1
      %vm1522 = vcmp.gt.s32.totalorder %v1521, 0
      %v1523 = vsel %vm1522, %v1521, 0
      %v1524 = vshrl.u32 %v1523, 5
      %v1525 = vand.u32 %v1523, 31
      %v1526 = vsub.s32 32, %v1525
      %v1527 = vshrl.u32 683565275, %v1526
      %v1528 = vshll.u32 683565275, %v1525
      %v1529 = vshrl.u32 2475754826, %v1526
      %v1530 = vor.u32 %v1528, %v1529
      %v1531 = vshll.u32 2475754826, %v1525
      %v1532 = vshrl.u32 2131351028, %v1526
      %v1533 = vor.u32 %v1531, %v1532
      %v1534 = vshll.u32 2131351028, %v1525
      %v1535 = vshrl.u32 2102212464, %v1526
      %v1536 = vor.u32 %v1534, %v1535
      %v1537 = vshll.u32 2102212464, %v1525
      %v1538 = vshrl.u32 920167782, %v1526
      %v1539 = vor.u32 %v1537, %v1538
      %v1540 = vshll.u32 920167782, %v1525
      %v1541 = vshrl.u32 1326507024, %v1526
      %v1542 = vor.u32 %v1540, %v1541
      %vm1543 = vcmp.lt.s32.totalorder %v1524, 1
      %vm1544 = vcmp.lt.s32.totalorder %v1524, 2
      %vm1545 = vcmp.lt.s32.totalorder %v1524, 3
      %vm1546 = vcmp.lt.s32.totalorder %v1524, 4
      %v1547 = vsel %vm1543, %v1527, %v1530
      %v1548 = vsel %vm1546, %v1536, 2102212464
      %v1549 = vsel %vm1545, %v1533, %v1548
      %v1550 = vsel %vm1544, %v1547, %v1549
      %v1551 = vsel %vm1543, %v1530, %v1533
      %v1552 = vsel %vm1546, %v1539, 920167782
      %v1553 = vsel %vm1545, %v1536, %v1552
      %v1554 = vsel %vm1544, %v1551, %v1553
      %v1555 = vsel %vm1543, %v1533, %v1536
      %v1556 = vsel %vm1546, %v1542, 1326507024
      %v1557 = vsel %vm1545, %v1539, %v1556
      %v1558 = vsel %vm1544, %v1555, %v1557
      %v1559 = vshll.u32 %v1519, 8
      %v1560 = vmul.u32.u64.compose %v1559, %v1558
      %v1561 = vextract.low.u32 %v1560
      %v1562 = vextract.high.u32 %v1560
      %v1563 = vmul.u32.u64.compose %v1559, %v1554
      %v1564 = vextract.low.u32 %v1563
      %v1565 = vextract.high.u32 %v1563
      %v1566 = vmul.u32 %v1559, %v1550
      %v1567 = vadd.s32 %v1562, %v1564
      %vm1568 = vc.u32 %v1562, %v1564
      %v1569 = vadd.s32 %v1565, 1
      %v1570 = vsel %vm1568, %v1569, %v1565
      %v1571 = vadd.s32 %v1566, %v1570
      %v1572 = vadd.s32 %v1571, 536870912
      %v1573 = vshrl.u32 %v1572, 30
      %v1574 = vshll.u32 %v1573, 30
      %v1575 = vsub.s32 %v1571, %v1574
      %vm1576 = vcmp.lt.s32.totalorder %v1575, 0
      %v1577 = vsub.s32 0, %v1575
      %v1578 = vsel %vm1576, %v1577, %v1575
      %v1579 = vclz %v1578
      %v1580 = vsub.s32 %v1579, 2
      %vm1581 = vcmp.gt.s32.totalorder 0, %v1580
      %v1582 = vsel %vm1581, 0, %v1580
      %v1583 = vsub.s32 32, %v1582
      %v1584 = vshll.u32 %v1575, %v1582
      %v1585 = vshrl.u32 %v1567, %v1583
      %v1586 = vor.u32 %v1584, %v1585
      %v1587 = vsub.s32 4294967266, %v1582
      %v1588 = vadd.s32 %v1587, 127
      %v1589 = vshll.u32 %v1588, 23
      %v1590 = vor.u32 4788187, %v1589
      %v1591 = vand.u32 2147483647, %v1590
      %v1593 = vcvt.s32.f32 %v1586
      %v1594 = vmul.f32 %v1593, %v1591
      %v1595 = vxor.u32 %v1594, 2147483648
      %v1596 = vsel %vm1513, %v1595, %v1594
      %v1597 = vsub.s32 4, %v1573
      %v1598 = vsel %vm1513, %v1597, %v1573
      %v1599 = vsel %vm1512, %v1291, %v1596
      %v1600 = vsel %vm1512, 0, %v1598
      %v1601 = vcosq.f32.pop %v1599
      %v1602 = vsinq.f32.pop %v1599
      %vm1603 = vweird.f32 %v1291
      %v1604 = vand.u32 %v1600, 3
      %vm1605 = vcmp.lt.s32.totalorder %v1604, 2
      %vm1606 = vcmp.eq.s32.totalorder %v1604, 0
      %v1607 = vxor.u32 %v1602, 2147483648
      %v1608 = vsel %vm1606, %v1601, %v1607
      %vm1609 = vcmp.eq.s32.totalorder %v1604, 2
      %v1610 = vxor.u32 %v1601, 2147483648
      %v1611 = vsel %vm1609, %v1610, %v1602
      %v1612 = vsel %vm1605, %v1608, %v1611
      %v1613 = vsel %vm1603, nan, %v1612
      %v1614 = vand.u32 2147483647, %v1292
      %vm1615 = vcmp.le.f32.partialorder %v1614, 0.7853982
      %vm1616 = vcmp.lt.s32.totalorder %v1292, 0
      %v1617 = vand.u32 %v1292, 2139095040
      %v1618 = vshrl.u32 %v1617, 23
      %v1619 = vsub.s32 %v1618, 127
      %v1620 = vand.u32 2147483647, %v1292
      %v1621 = vand.u32 %v1620, 8388607
      %v1622 = vor.u32 %v1621, 8388608
      %v1623 = vsub.s32 0, %v1622
      %v1624 = vadd.s32 %v1619, 1
      %vm1625 = vcmp.gt.s32.totalorder %v1624, 0
      %v1626 = vsel %vm1625, %v1624, 0
      %v1627 = vshrl.u32 %v1626, 5
      %v1628 = vand.u32 %v1626, 31
      %v1629 = vsub.s32 32, %v1628
      %v1630 = vshrl.u32 683565275, %v1629
      %v1631 = vshll.u32 683565275, %v1628
      %v1632 = vshrl.u32 2475754826, %v1629
      %v1633 = vor.u32 %v1631, %v1632
      %v1634 = vshll.u32 2475754826, %v1628
      %v1635 = vshrl.u32 2131351028, %v1629
      %v1636 = vor.u32 %v1634, %v1635
      %v1637 = vshll.u32 2131351028, %v1628
      %v1638 = vshrl.u32 2102212464, %v1629
      %v1639 = vor.u32 %v1637, %v1638
      %v1640 = vshll.u32 2102212464, %v1628
      %v1641 = vshrl.u32 920167782, %v1629
      %v1642 = vor.u32 %v1640, %v1641
      %v1643 = vshll.u32 920167782, %v1628
      %v1644 = vshrl.u32 1326507024, %v1629
      %v1645 = vor.u32 %v1643, %v1644
      %vm1646 = vcmp.lt.s32.totalorder %v1627, 1
      %vm1647 = vcmp.lt.s32.totalorder %v1627, 2
      %vm1648 = vcmp.lt.s32.totalorder %v1627, 3
      %vm1649 = vcmp.lt.s32.totalorder %v1627, 4
      %v1650 = vsel %vm1646, %v1630, %v1633
      %v1651 = vsel %vm1649, %v1639, 2102212464
      %v1652 = vsel %vm1648, %v1636, %v1651
      %v1653 = vsel %vm1647, %v1650, %v1652
      %v1654 = vsel %vm1646, %v1633, %v1636
      %v1655 = vsel %vm1649, %v1642, 920167782
      %v1656 = vsel %vm1648, %v1639, %v1655
      %v1657 = vsel %vm1647, %v1654, %v1656
      %v1658 = vsel %vm1646, %v1636, %v1639
      %v1659 = vsel %vm1649, %v1645, 1326507024
      %v1660 = vsel %vm1648, %v1642, %v1659
      %v1661 = vsel %vm1647, %v1658, %v1660
      %v1662 = vshll.u32 %v1622, 8
      %v1663 = vmul.u32.u64.compose %v1662, %v1661
      %v1664 = vextract.low.u32 %v1663
      %v1665 = vextract.high.u32 %v1663
      %v1666 = vmul.u32.u64.compose %v1662, %v1657
      %v1667 = vextract.low.u32 %v1666
      %v1668 = vextract.high.u32 %v1666
      %v1669 = vmul.u32 %v1662, %v1653
      %v1670 = vadd.s32 %v1665, %v1667
      %vm1671 = vc.u32 %v1665, %v1667
      %v1672 = vadd.s32 %v1668, 1
      %v1673 = vsel %vm1671, %v1672, %v1668
      %v1674 = vadd.s32 %v1669, %v1673
      %v1675 = vadd.s32 %v1674, 536870912
      %v1676 = vshrl.u32 %v1675, 30
      %v1677 = vshll.u32 %v1676, 30
      %v1678 = vsub.s32 %v1674, %v1677
      %vm1679 = vcmp.lt.s32.totalorder %v1678, 0
      %v1680 = vsub.s32 0, %v1678
      %v1681 = vsel %vm1679, %v1680, %v1678
      %v1682 = vclz %v1681
      %v1683 = vsub.s32 %v1682, 2
      %vm1684 = vcmp.gt.s32.totalorder 0, %v1683
      %v1685 = vsel %vm1684, 0, %v1683
      %v1686 = vsub.s32 32, %v1685
      %v1687 = vshll.u32 %v1678, %v1685
      %v1688 = vshrl.u32 %v1670, %v1686
      %v1689 = vor.u32 %v1687, %v1688
      %v1690 = vsub.s32 4294967266, %v1685
      %v1691 = vadd.s32 %v1690, 127
      %v1692 = vshll.u32 %v1691, 23
      %v1693 = vor.u32 4788187, %v1692
      %v1694 = vand.u32 2147483647, %v1693
      %v1696 = vcvt.s32.f32 %v1689
      %v1697 = vmul.f32 %v1696, %v1694
      %v1698 = vxor.u32 %v1697, 2147483648
      %v1699 = vsel %vm1616, %v1698, %v1697
      %v1700 = vsub.s32 4, %v1676
      %v1701 = vsel %vm1616, %v1700, %v1676
      %v1702 = vsel %vm1615, %v1292, %v1699
      %v1703 = vsel %vm1615, 0, %v1701
      %v1704 = vcosq.f32.pop %v1702
      %v1705 = vsinq.f32.pop %v1702
      %vm1706 = vweird.f32 %v1292
      %v1707 = vand.u32 %v1703, 3
      %vm1708 = vcmp.lt.s32.totalorder %v1707, 2
      %vm1709 = vcmp.eq.s32.totalorder %v1707, 0
      %v1710 = vxor.u32 %v1705, 2147483648
      %v1711 = vsel %vm1709, %v1704, %v1710
      %vm1712 = vcmp.eq.s32.totalorder %v1707, 2
      %v1713 = vxor.u32 %v1704, 2147483648
      %v1714 = vsel %vm1712, %v1713, %v1705
      %v1715 = vsel %vm1708, %v1711, %v1714
      %v1716 = vsel %vm1706, nan, %v1715
      %v1717 = vand.u32 2147483647, %v1293
      %vm1718 = vcmp.le.f32.partialorder %v1717, 0.7853982
      %vm1719 = vcmp.lt.s32.totalorder %v1293, 0
      %v1720 = vand.u32 %v1293, 2139095040
      %v1721 = vshrl.u32 %v1720, 23
      %v1722 = vsub.s32 %v1721, 127
      %v1723 = vand.u32 2147483647, %v1293
      %v1724 = vand.u32 %v1723, 8388607
      %v1725 = vor.u32 %v1724, 8388608
      %v1726 = vsub.s32 0, %v1725
      %v1727 = vadd.s32 %v1722, 1
      %vm1728 = vcmp.gt.s32.totalorder %v1727, 0
      %v1729 = vsel %vm1728, %v1727, 0
      %v1730 = vshrl.u32 %v1729, 5
      %v1731 = vand.u32 %v1729, 31
      %v1732 = vsub.s32 32, %v1731
      %v1733 = vshrl.u32 683565275, %v1732
      %v1734 = vshll.u32 683565275, %v1731
      %v1735 = vshrl.u32 2475754826, %v1732
      %v1736 = vor.u32 %v1734, %v1735
      %v1737 = vshll.u32 2475754826, %v1731
      %v1738 = vshrl.u32 2131351028, %v1732
      %v1739 = vor.u32 %v1737, %v1738
      %v1740 = vshll.u32 2131351028, %v1731
      %v1741 = vshrl.u32 2102212464, %v1732
      %v1742 = vor.u32 %v1740, %v1741
      %v1743 = vshll.u32 2102212464, %v1731
      %v1744 = vshrl.u32 920167782, %v1732
      %v1745 = vor.u32 %v1743, %v1744
      %v1746 = vshll.u32 920167782, %v1731
      %v1747 = vshrl.u32 1326507024, %v1732
      %v1748 = vor.u32 %v1746, %v1747
      %vm1749 = vcmp.lt.s32.totalorder %v1730, 1
      %vm1750 = vcmp.lt.s32.totalorder %v1730, 2
      %vm1751 = vcmp.lt.s32.totalorder %v1730, 3
      %vm1752 = vcmp.lt.s32.totalorder %v1730, 4
      %v1753 = vsel %vm1749, %v1733, %v1736
      %v1754 = vsel %vm1752, %v1742, 2102212464
      %v1755 = vsel %vm1751, %v1739, %v1754
      %v1756 = vsel %vm1750, %v1753, %v1755
      %v1757 = vsel %vm1749, %v1736, %v1739
      %v1758 = vsel %vm1752, %v1745, 920167782
      %v1759 = vsel %vm1751, %v1742, %v1758
      %v1760 = vsel %vm1750, %v1757, %v1759
      %v1761 = vsel %vm1749, %v1739, %v1742
      %v1762 = vsel %vm1752, %v1748, 1326507024
      %v1763 = vsel %vm1751, %v1745, %v1762
      %v1764 = vsel %vm1750, %v1761, %v1763
      %v1765 = vshll.u32 %v1725, 8
      %v1766 = vmul.u32.u64.compose %v1765, %v1764
      %v1767 = vextract.low.u32 %v1766
      %v1768 = vextract.high.u32 %v1766
      %v1769 = vmul.u32.u64.compose %v1765, %v1760
      %v1770 = vextract.low.u32 %v1769
      %v1771 = vextract.high.u32 %v1769
      %v1772 = vmul.u32 %v1765, %v1756
      %v1773 = vadd.s32 %v1768, %v1770
      %vm1774 = vc.u32 %v1768, %v1770
      %v1775 = vadd.s32 %v1771, 1
      %v1776 = vsel %vm1774, %v1775, %v1771
      %v1777 = vadd.s32 %v1772, %v1776
      %v1778 = vadd.s32 %v1777, 536870912
      %v1779 = vshrl.u32 %v1778, 30
      %v1780 = vshll.u32 %v1779, 30
      %v1781 = vsub.s32 %v1777, %v1780
      %vm1782 = vcmp.lt.s32.totalorder %v1781, 0
      %v1783 = vsub.s32 0, %v1781
      %v1784 = vsel %vm1782, %v1783, %v1781
      %v1785 = vclz %v1784
      %v1786 = vsub.s32 %v1785, 2
      %vm1787 = vcmp.gt.s32.totalorder 0, %v1786
      %v1788 = vsel %vm1787, 0, %v1786
      %v1789 = vsub.s32 32, %v1788
      %v1790 = vshll.u32 %v1781, %v1788
      %v1791 = vshrl.u32 %v1773, %v1789
      %v1792 = vor.u32 %v1790, %v1791
      %v1793 = vsub.s32 4294967266, %v1788
      %v1794 = vadd.s32 %v1793, 127
      %v1795 = vshll.u32 %v1794, 23
      %v1796 = vor.u32 4788187, %v1795
      %v1797 = vand.u32 2147483647, %v1796
      %v1799 = vcvt.s32.f32 %v1792
      %v1800 = vmul.f32 %v1799, %v1797
      %v1801 = vxor.u32 %v1800, 2147483648
      %v1802 = vsel %vm1719, %v1801, %v1800
      %v1803 = vsub.s32 4, %v1779
      %v1804 = vsel %vm1719, %v1803, %v1779
      %v1805 = vsel %vm1718, %v1293, %v1802
      %v1806 = vsel %vm1718, 0, %v1804
      %v1807 = vcosq.f32.pop %v1805
      %v1808 = vsinq.f32.pop %v1805
      %vm1809 = vweird.f32 %v1293
      %v1810 = vand.u32 %v1806, 3
      %vm1811 = vcmp.lt.s32.totalorder %v1810, 2
      %vm1812 = vcmp.eq.s32.totalorder %v1810, 0
      %v1813 = vxor.u32 %v1808, 2147483648
      %v1814 = vsel %vm1812, %v1807, %v1813
      %vm1815 = vcmp.eq.s32.totalorder %v1810, 2
      %v1816 = vxor.u32 %v1807, 2147483648
      %v1817 = vsel %vm1815, %v1816, %v1808
      %v1818 = vsel %vm1811, %v1814, %v1817
      %v1819 = vsel %vm1809, nan, %v1818
      %v1820 = vand.u32 2147483647, %v1294
      %vm1821 = vcmp.le.f32.partialorder %v1820, 0.7853982
      %vm1822 = vcmp.lt.s32.totalorder %v1294, 0
      %v1823 = vand.u32 %v1294, 2139095040
      %v1824 = vshrl.u32 %v1823, 23
      %v1825 = vsub.s32 %v1824, 127
      %v1826 = vand.u32 2147483647, %v1294
      %v1827 = vand.u32 %v1826, 8388607
      %v1828 = vor.u32 %v1827, 8388608
      %v1829 = vsub.s32 0, %v1828
      %v1830 = vadd.s32 %v1825, 1
      %vm1831 = vcmp.gt.s32.totalorder %v1830, 0
      %v1832 = vsel %vm1831, %v1830, 0
      %v1833 = vshrl.u32 %v1832, 5
      %v1834 = vand.u32 %v1832, 31
      %v1835 = vsub.s32 32, %v1834
      %v1836 = vshrl.u32 683565275, %v1835
      %v1837 = vshll.u32 683565275, %v1834
      %v1838 = vshrl.u32 2475754826, %v1835
      %v1839 = vor.u32 %v1837, %v1838
      %v1840 = vshll.u32 2475754826, %v1834
      %v1841 = vshrl.u32 2131351028, %v1835
      %v1842 = vor.u32 %v1840, %v1841
      %v1843 = vshll.u32 2131351028, %v1834
      %v1844 = vshrl.u32 2102212464, %v1835
      %v1845 = vor.u32 %v1843, %v1844
      %v1846 = vshll.u32 2102212464, %v1834
      %v1847 = vshrl.u32 920167782, %v1835
      %v1848 = vor.u32 %v1846, %v1847
      %v1849 = vshll.u32 920167782, %v1834
      %v1850 = vshrl.u32 1326507024, %v1835
      %v1851 = vor.u32 %v1849, %v1850
      %vm1852 = vcmp.lt.s32.totalorder %v1833, 1
      %vm1853 = vcmp.lt.s32.totalorder %v1833, 2
      %vm1854 = vcmp.lt.s32.totalorder %v1833, 3
      %vm1855 = vcmp.lt.s32.totalorder %v1833, 4
      %v1856 = vsel %vm1852, %v1836, %v1839
      %v1857 = vsel %vm1855, %v1845, 2102212464
      %v1858 = vsel %vm1854, %v1842, %v1857
      %v1859 = vsel %vm1853, %v1856, %v1858
      %v1860 = vsel %vm1852, %v1839, %v1842
      %v1861 = vsel %vm1855, %v1848, 920167782
      %v1862 = vsel %vm1854, %v1845, %v1861
      %v1863 = vsel %vm1853, %v1860, %v1862
      %v1864 = vsel %vm1852, %v1842, %v1845
      %v1865 = vsel %vm1855, %v1851, 1326507024
      %v1866 = vsel %vm1854, %v1848, %v1865
      %v1867 = vsel %vm1853, %v1864, %v1866
      %v1868 = vshll.u32 %v1828, 8
      %v1869 = vmul.u32.u64.compose %v1868, %v1867
      %v1870 = vextract.low.u32 %v1869
      %v1871 = vextract.high.u32 %v1869
      %v1872 = vmul.u32.u64.compose %v1868, %v1863
      %v1873 = vextract.low.u32 %v1872
      %v1874 = vextract.high.u32 %v1872
      %v1875 = vmul.u32 %v1868, %v1859
      %v1876 = vadd.s32 %v1871, %v1873
      %vm1877 = vc.u32 %v1871, %v1873
      %v1878 = vadd.s32 %v1874, 1
      %v1879 = vsel %vm1877, %v1878, %v1874
      %v1880 = vadd.s32 %v1875, %v1879
      %v1881 = vadd.s32 %v1880, 536870912
      %v1882 = vshrl.u32 %v1881, 30
      %v1883 = vshll.u32 %v1882, 30
      %v1884 = vsub.s32 %v1880, %v1883
      %vm1885 = vcmp.lt.s32.totalorder %v1884, 0
      %v1886 = vsub.s32 0, %v1884
      %v1887 = vsel %vm1885, %v1886, %v1884
      %v1888 = vclz %v1887
      %v1889 = vsub.s32 %v1888, 2
      %vm1890 = vcmp.gt.s32.totalorder 0, %v1889
      %v1891 = vsel %vm1890, 0, %v1889
      %v1892 = vsub.s32 32, %v1891
      %v1893 = vshll.u32 %v1884, %v1891
      %v1894 = vshrl.u32 %v1876, %v1892
      %v1895 = vor.u32 %v1893, %v1894
      %v1896 = vsub.s32 4294967266, %v1891
      %v1897 = vadd.s32 %v1896, 127
      %v1898 = vshll.u32 %v1897, 23
      %v1899 = vor.u32 4788187, %v1898
      %v1900 = vand.u32 2147483647, %v1899
      %v1902 = vcvt.s32.f32 %v1895
      %v1903 = vmul.f32 %v1902, %v1900
      %v1904 = vxor.u32 %v1903, 2147483648
      %v1905 = vsel %vm1822, %v1904, %v1903
      %v1906 = vsub.s32 4, %v1882
      %v1907 = vsel %vm1822, %v1906, %v1882
      %v1908 = vsel %vm1821, %v1294, %v1905
      %v1909 = vsel %vm1821, 0, %v1907
      %v1910 = vcosq.f32.pop %v1908
      %v1911 = vsinq.f32.pop %v1908
      %vm1912 = vweird.f32 %v1294
      %v1913 = vand.u32 %v1909, 3
      %vm1914 = vcmp.lt.s32.totalorder %v1913, 2
      %vm1915 = vcmp.eq.s32.totalorder %v1913, 0
      %v1916 = vxor.u32 %v1911, 2147483648
      %v1917 = vsel %vm1915, %v1910, %v1916
      %vm1918 = vcmp.eq.s32.totalorder %v1913, 2
      %v1919 = vxor.u32 %v1910, 2147483648
      %v1920 = vsel %vm1918, %v1919, %v1911
      %v1921 = vsel %vm1914, %v1917, %v1920
      %v1922 = vsel %vm1912, nan, %v1921
      %v1923 = vand.u32 2147483647, %v1295
      %vm1924 = vcmp.le.f32.partialorder %v1923, 0.7853982
      %vm1925 = vcmp.lt.s32.totalorder %v1295, 0
      %v1926 = vand.u32 %v1295, 2139095040
      %v1927 = vshrl.u32 %v1926, 23
      %v1928 = vsub.s32 %v1927, 127
      %v1929 = vand.u32 2147483647, %v1295
      %v1930 = vand.u32 %v1929, 8388607
      %v1931 = vor.u32 %v1930, 8388608
      %v1932 = vsub.s32 0, %v1931
      %v1933 = vadd.s32 %v1928, 1
      %vm1934 = vcmp.gt.s32.totalorder %v1933, 0
      %v1935 = vsel %vm1934, %v1933, 0
      %v1936 = vshrl.u32 %v1935, 5
      %v1937 = vand.u32 %v1935, 31
      %v1938 = vsub.s32 32, %v1937
      %v1939 = vshrl.u32 683565275, %v1938
      %v1940 = vshll.u32 683565275, %v1937
      %v1941 = vshrl.u32 2475754826, %v1938
      %v1942 = vor.u32 %v1940, %v1941
      %v1943 = vshll.u32 2475754826, %v1937
      %v1944 = vshrl.u32 2131351028, %v1938
      %v1945 = vor.u32 %v1943, %v1944
      %v1946 = vshll.u32 2131351028, %v1937
      %v1947 = vshrl.u32 2102212464, %v1938
      %v1948 = vor.u32 %v1946, %v1947
      %v1949 = vshll.u32 2102212464, %v1937
      %v1950 = vshrl.u32 920167782, %v1938
      %v1951 = vor.u32 %v1949, %v1950
      %v1952 = vshll.u32 920167782, %v1937
      %v1953 = vshrl.u32 1326507024, %v1938
      %v1954 = vor.u32 %v1952, %v1953
      %vm1955 = vcmp.lt.s32.totalorder %v1936, 1
      %vm1956 = vcmp.lt.s32.totalorder %v1936, 2
      %vm1957 = vcmp.lt.s32.totalorder %v1936, 3
      %vm1958 = vcmp.lt.s32.totalorder %v1936, 4
      %v1959 = vsel %vm1955, %v1939, %v1942
      %v1960 = vsel %vm1958, %v1948, 2102212464
      %v1961 = vsel %vm1957, %v1945, %v1960
      %v1962 = vsel %vm1956, %v1959, %v1961
      %v1963 = vsel %vm1955, %v1942, %v1945
      %v1964 = vsel %vm1958, %v1951, 920167782
      %v1965 = vsel %vm1957, %v1948, %v1964
      %v1966 = vsel %vm1956, %v1963, %v1965
      %v1967 = vsel %vm1955, %v1945, %v1948
      %v1968 = vsel %vm1958, %v1954, 1326507024
      %v1969 = vsel %vm1957, %v1951, %v1968
      %v1970 = vsel %vm1956, %v1967, %v1969
      %v1971 = vshll.u32 %v1931, 8
      %v1972 = vmul.u32.u64.compose %v1971, %v1970
      %v1973 = vextract.low.u32 %v1972
      %v1974 = vextract.high.u32 %v1972
      %v1975 = vmul.u32.u64.compose %v1971, %v1966
      %v1976 = vextract.low.u32 %v1975
      %v1977 = vextract.high.u32 %v1975
      %v1978 = vmul.u32 %v1971, %v1962
      %v1979 = vadd.s32 %v1974, %v1976
      %vm1980 = vc.u32 %v1974, %v1976
      %v1981 = vadd.s32 %v1977, 1
      %v1982 = vsel %vm1980, %v1981, %v1977
      %v1983 = vadd.s32 %v1978, %v1982
      %v1984 = vadd.s32 %v1983, 536870912
      %v1985 = vshrl.u32 %v1984, 30
      %v1986 = vshll.u32 %v1985, 30
      %v1987 = vsub.s32 %v1983, %v1986
      %vm1988 = vcmp.lt.s32.totalorder %v1987, 0
      %v1989 = vsub.s32 0, %v1987
      %v1990 = vsel %vm1988, %v1989, %v1987
      %v1991 = vclz %v1990
      %v1992 = vsub.s32 %v1991, 2
      %vm1993 = vcmp.gt.s32.totalorder 0, %v1992
      %v1994 = vsel %vm1993, 0, %v1992
      %v1995 = vsub.s32 32, %v1994
      %v1996 = vshll.u32 %v1987, %v1994
      %v1997 = vshrl.u32 %v1979, %v1995
      %v1998 = vor.u32 %v1996, %v1997
      %v1999 = vsub.s32 4294967266, %v1994
      %v2000 = vadd.s32 %v1999, 127
      %v2001 = vshll.u32 %v2000, 23
      %v2002 = vor.u32 4788187, %v2001
      %v2003 = vand.u32 2147483647, %v2002
      %v2005 = vcvt.s32.f32 %v1998
      %v2006 = vmul.f32 %v2005, %v2003
      %v2007 = vxor.u32 %v2006, 2147483648
      %v2008 = vsel %vm1925, %v2007, %v2006
      %v2009 = vsub.s32 4, %v1985
      %v2010 = vsel %vm1925, %v2009, %v1985
      %v2011 = vsel %vm1924, %v1295, %v2008
      %v2012 = vsel %vm1924, 0, %v2010
      %v2013 = vcosq.f32.pop %v2011
      %v2014 = vsinq.f32.pop %v2011
      %vm2015 = vweird.f32 %v1295
      %v2016 = vand.u32 %v2012, 3
      %vm2017 = vcmp.lt.s32.totalorder %v2016, 2
      %vm2018 = vcmp.eq.s32.totalorder %v2016, 0
      %v2019 = vxor.u32 %v2014, 2147483648
      %v2020 = vsel %vm2018, %v2013, %v2019
      %vm2021 = vcmp.eq.s32.totalorder %v2016, 2
      %v2022 = vxor.u32 %v2013, 2147483648
      %v2023 = vsel %vm2021, %v2022, %v2014
      %v2024 = vsel %vm2017, %v2020, %v2023
      %v2025 = vsel %vm2015, nan, %v2024
      %v2026 = vand.u32 2147483647, %v1296
      %vm2027 = vcmp.le.f32.partialorder %v2026, 0.7853982
      %vm2028 = vcmp.lt.s32.totalorder %v1296, 0
      %v2029 = vand.u32 %v1296, 2139095040
      %v2030 = vshrl.u32 %v2029, 23
      %v2031 = vsub.s32 %v2030, 127
      %v2032 = vand.u32 2147483647, %v1296
      %v2033 = vand.u32 %v2032, 8388607
      %v2034 = vor.u32 %v2033, 8388608
      %v2035 = vsub.s32 0, %v2034
      %v2036 = vadd.s32 %v2031, 1
      %vm2037 = vcmp.gt.s32.totalorder %v2036, 0
      %v2038 = vsel %vm2037, %v2036, 0
      %v2039 = vshrl.u32 %v2038, 5
      %v2040 = vand.u32 %v2038, 31
      %v2041 = vsub.s32 32, %v2040
      %v2042 = vshrl.u32 683565275, %v2041
      %v2043 = vshll.u32 683565275, %v2040
      %v2044 = vshrl.u32 2475754826, %v2041
      %v2045 = vor.u32 %v2043, %v2044
      %v2046 = vshll.u32 2475754826, %v2040
      %v2047 = vshrl.u32 2131351028, %v2041
      %v2048 = vor.u32 %v2046, %v2047
      %v2049 = vshll.u32 2131351028, %v2040
      %v2050 = vshrl.u32 2102212464, %v2041
      %v2051 = vor.u32 %v2049, %v2050
      %v2052 = vshll.u32 2102212464, %v2040
      %v2053 = vshrl.u32 920167782, %v2041
      %v2054 = vor.u32 %v2052, %v2053
      %v2055 = vshll.u32 920167782, %v2040
      %v2056 = vshrl.u32 1326507024, %v2041
      %v2057 = vor.u32 %v2055, %v2056
      %vm2058 = vcmp.lt.s32.totalorder %v2039, 1
      %vm2059 = vcmp.lt.s32.totalorder %v2039, 2
      %vm2060 = vcmp.lt.s32.totalorder %v2039, 3
      %vm2061 = vcmp.lt.s32.totalorder %v2039, 4
      %v2062 = vsel %vm2058, %v2042, %v2045
      %v2063 = vsel %vm2061, %v2051, 2102212464
      %v2064 = vsel %vm2060, %v2048, %v2063
      %v2065 = vsel %vm2059, %v2062, %v2064
      %v2066 = vsel %vm2058, %v2045, %v2048
      %v2067 = vsel %vm2061, %v2054, 920167782
      %v2068 = vsel %vm2060, %v2051, %v2067
      %v2069 = vsel %vm2059, %v2066, %v2068
      %v2070 = vsel %vm2058, %v2048, %v2051
      %v2071 = vsel %vm2061, %v2057, 1326507024
      %v2072 = vsel %vm2060, %v2054, %v2071
      %v2073 = vsel %vm2059, %v2070, %v2072
      %v2074 = vshll.u32 %v2034, 8
      %v2075 = vmul.u32.u64.compose %v2074, %v2073
      %v2076 = vextract.low.u32 %v2075
      %v2077 = vextract.high.u32 %v2075
      %v2078 = vmul.u32.u64.compose %v2074, %v2069
      %v2079 = vextract.low.u32 %v2078
      %v2080 = vextract.high.u32 %v2078
      %v2081 = vmul.u32 %v2074, %v2065
      %v2082 = vadd.s32 %v2077, %v2079
      %vm2083 = vc.u32 %v2077, %v2079
      %v2084 = vadd.s32 %v2080, 1
      %v2085 = vsel %vm2083, %v2084, %v2080
      %v2086 = vadd.s32 %v2081, %v2085
      %v2087 = vadd.s32 %v2086, 536870912
      %v2088 = vshrl.u32 %v2087, 30
      %v2089 = vshll.u32 %v2088, 30
      %v2090 = vsub.s32 %v2086, %v2089
      %vm2091 = vcmp.lt.s32.totalorder %v2090, 0
      %v2092 = vsub.s32 0, %v2090
      %v2093 = vsel %vm2091, %v2092, %v2090
      %v2094 = vclz %v2093
      %v2095 = vsub.s32 %v2094, 2
      %vm2096 = vcmp.gt.s32.totalorder 0, %v2095
      %v2097 = vsel %vm2096, 0, %v2095
      %v2098 = vsub.s32 32, %v2097
      %v2099 = vshll.u32 %v2090, %v2097
      %v2100 = vshrl.u32 %v2082, %v2098
      %v2101 = vor.u32 %v2099, %v2100
      %v2102 = vsub.s32 4294967266, %v2097
      %v2103 = vadd.s32 %v2102, 127
      %v2104 = vshll.u32 %v2103, 23
      %v2105 = vor.u32 4788187, %v2104
      %v2106 = vand.u32 2147483647, %v2105
      %v2108 = vcvt.s32.f32 %v2101
      %v2109 = vmul.f32 %v2108, %v2106
      %v2110 = vxor.u32 %v2109, 2147483648
      %v2111 = vsel %vm2028, %v2110, %v2109
      %v2112 = vsub.s32 4, %v2088
      %v2113 = vsel %vm2028, %v2112, %v2088
      %v2114 = vsel %vm2027, %v1296, %v2111
      %v2115 = vsel %vm2027, 0, %v2113
      %v2116 = vcosq.f32.pop %v2114
      %v2117 = vsinq.f32.pop %v2114
      %vm2118 = vweird.f32 %v1296
      %v2119 = vand.u32 %v2115, 3
      %vm2120 = vcmp.lt.s32.totalorder %v2119, 2
      %vm2121 = vcmp.eq.s32.totalorder %v2119, 0
      %v2122 = vxor.u32 %v2117, 2147483648
      %v2123 = vsel %vm2121, %v2116, %v2122
      %vm2124 = vcmp.eq.s32.totalorder %v2119, 2
      %v2125 = vxor.u32 %v2116, 2147483648
      %v2126 = vsel %vm2124, %v2125, %v2117
      %v2127 = vsel %vm2120, %v2123, %v2126
      %v2128 = vsel %vm2118, nan, %v2127
      %v2129 = vand.u32 2147483647, %v1297
      %vm2130 = vcmp.le.f32.partialorder %v2129, 0.7853982
      %vm2131 = vcmp.lt.s32.totalorder %v1297, 0
      %v2132 = vand.u32 %v1297, 2139095040
      %v2133 = vshrl.u32 %v2132, 23
      %v2134 = vsub.s32 %v2133, 127
      %v2135 = vand.u32 2147483647, %v1297
      %v2136 = vand.u32 %v2135, 8388607
      %v2137 = vor.u32 %v2136, 8388608
      %v2138 = vsub.s32 0, %v2137
      %v2139 = vadd.s32 %v2134, 1
      %vm2140 = vcmp.gt.s32.totalorder %v2139, 0
      %v2141 = vsel %vm2140, %v2139, 0
      %v2142 = vshrl.u32 %v2141, 5
      %v2143 = vand.u32 %v2141, 31
      %v2144 = vsub.s32 32, %v2143
      %v2145 = vshrl.u32 683565275, %v2144
      %v2146 = vshll.u32 683565275, %v2143
      %v2147 = vshrl.u32 2475754826, %v2144
      %v2148 = vor.u32 %v2146, %v2147
      %v2149 = vshll.u32 2475754826, %v2143
      %v2150 = vshrl.u32 2131351028, %v2144
      %v2151 = vor.u32 %v2149, %v2150
      %v2152 = vshll.u32 2131351028, %v2143
      %v2153 = vshrl.u32 2102212464, %v2144
      %v2154 = vor.u32 %v2152, %v2153
      %v2155 = vshll.u32 2102212464, %v2143
      %v2156 = vshrl.u32 920167782, %v2144
      %v2157 = vor.u32 %v2155, %v2156
      %v2158 = vshll.u32 920167782, %v2143
      %v2159 = vshrl.u32 1326507024, %v2144
      %v2160 = vor.u32 %v2158, %v2159
      %vm2161 = vcmp.lt.s32.totalorder %v2142, 1
      %vm2162 = vcmp.lt.s32.totalorder %v2142, 2
      %vm2163 = vcmp.lt.s32.totalorder %v2142, 3
      %vm2164 = vcmp.lt.s32.totalorder %v2142, 4
      %v2165 = vsel %vm2161, %v2145, %v2148
      %v2166 = vsel %vm2164, %v2154, 2102212464
      %v2167 = vsel %vm2163, %v2151, %v2166
      %v2168 = vsel %vm2162, %v2165, %v2167
      %v2169 = vsel %vm2161, %v2148, %v2151
      %v2170 = vsel %vm2164, %v2157, 920167782
      %v2171 = vsel %vm2163, %v2154, %v2170
      %v2172 = vsel %vm2162, %v2169, %v2171
      %v2173 = vsel %vm2161, %v2151, %v2154
      %v2174 = vsel %vm2164, %v2160, 1326507024
      %v2175 = vsel %vm2163, %v2157, %v2174
      %v2176 = vsel %vm2162, %v2173, %v2175
      %v2177 = vshll.u32 %v2137, 8
      %v2178 = vmul.u32.u64.compose %v2177, %v2176
      %v2179 = vextract.low.u32 %v2178
      %v2180 = vextract.high.u32 %v2178
      %v2181 = vmul.u32.u64.compose %v2177, %v2172
      %v2182 = vextract.low.u32 %v2181
      %v2183 = vextract.high.u32 %v2181
      %v2184 = vmul.u32 %v2177, %v2168
      %v2185 = vadd.s32 %v2180, %v2182
      %vm2186 = vc.u32 %v2180, %v2182
      %v2187 = vadd.s32 %v2183, 1
      %v2188 = vsel %vm2186, %v2187, %v2183
      %v2189 = vadd.s32 %v2184, %v2188
      %v2190 = vadd.s32 %v2189, 536870912
      %v2191 = vshrl.u32 %v2190, 30
      %v2192 = vshll.u32 %v2191, 30
      %v2193 = vsub.s32 %v2189, %v2192
      %vm2194 = vcmp.lt.s32.totalorder %v2193, 0
      %v2195 = vsub.s32 0, %v2193
      %v2196 = vsel %vm2194, %v2195, %v2193
      %v2197 = vclz %v2196
      %v2198 = vsub.s32 %v2197, 2
      %vm2199 = vcmp.gt.s32.totalorder 0, %v2198
      %v2200 = vsel %vm2199, 0, %v2198
      %v2201 = vsub.s32 32, %v2200
      %v2202 = vshll.u32 %v2193, %v2200
      %v2203 = vshrl.u32 %v2185, %v2201
      %v2204 = vor.u32 %v2202, %v2203
      %v2205 = vsub.s32 4294967266, %v2200
      %v2206 = vadd.s32 %v2205, 127
      %v2207 = vshll.u32 %v2206, 23
      %v2208 = vor.u32 4788187, %v2207
      %v2209 = vand.u32 2147483647, %v2208
      %v2211 = vcvt.s32.f32 %v2204
      %v2212 = vmul.f32 %v2211, %v2209
      %v2213 = vxor.u32 %v2212, 2147483648
      %v2214 = vsel %vm2131, %v2213, %v2212
      %v2215 = vsub.s32 4, %v2191
      %v2216 = vsel %vm2131, %v2215, %v2191
      %v2217 = vsel %vm2130, %v1297, %v2214
      %v2218 = vsel %vm2130, 0, %v2216
      %v2219 = vcosq.f32.pop %v2217
      %v2220 = vsinq.f32.pop %v2217
      %vm2221 = vweird.f32 %v1297
      %v2222 = vand.u32 %v2218, 3
      %vm2223 = vcmp.lt.s32.totalorder %v2222, 2
      %vm2224 = vcmp.eq.s32.totalorder %v2222, 0
      %v2225 = vxor.u32 %v2220, 2147483648
      %v2226 = vsel %vm2224, %v2219, %v2225
      %vm2227 = vcmp.eq.s32.totalorder %v2222, 2
      %v2228 = vxor.u32 %v2219, 2147483648
      %v2229 = vsel %vm2227, %v2228, %v2220
      %v2230 = vsel %vm2223, %v2226, %v2229
      %v2231 = vsel %vm2221, nan, %v2230
      %v2232 = vand.u32 2147483647, %v1298
      %vm2233 = vcmp.le.f32.partialorder %v2232, 0.7853982
      %vm2234 = vcmp.lt.s32.totalorder %v1298, 0
      %v2235 = vand.u32 %v1298, 2139095040
      %v2236 = vshrl.u32 %v2235, 23
      %v2237 = vsub.s32 %v2236, 127
      %v2238 = vand.u32 2147483647, %v1298
      %v2239 = vand.u32 %v2238, 8388607
      %v2240 = vor.u32 %v2239, 8388608
      %v2241 = vsub.s32 0, %v2240
      %v2242 = vadd.s32 %v2237, 1
      %vm2243 = vcmp.gt.s32.totalorder %v2242, 0
      %v2244 = vsel %vm2243, %v2242, 0
      %v2245 = vshrl.u32 %v2244, 5
      %v2246 = vand.u32 %v2244, 31
      %v2247 = vsub.s32 32, %v2246
      %v2248 = vshrl.u32 683565275, %v2247
      %v2249 = vshll.u32 683565275, %v2246
      %v2250 = vshrl.u32 2475754826, %v2247
      %v2251 = vor.u32 %v2249, %v2250
      %v2252 = vshll.u32 2475754826, %v2246
      %v2253 = vshrl.u32 2131351028, %v2247
      %v2254 = vor.u32 %v2252, %v2253
      %v2255 = vshll.u32 2131351028, %v2246
      %v2256 = vshrl.u32 2102212464, %v2247
      %v2257 = vor.u32 %v2255, %v2256
      %v2258 = vshll.u32 2102212464, %v2246
      %v2259 = vshrl.u32 920167782, %v2247
      %v2260 = vor.u32 %v2258, %v2259
      %v2261 = vshll.u32 920167782, %v2246
      %v2262 = vshrl.u32 1326507024, %v2247
      %v2263 = vor.u32 %v2261, %v2262
      %vm2264 = vcmp.lt.s32.totalorder %v2245, 1
      %vm2265 = vcmp.lt.s32.totalorder %v2245, 2
      %vm2266 = vcmp.lt.s32.totalorder %v2245, 3
      %vm2267 = vcmp.lt.s32.totalorder %v2245, 4
      %v2268 = vsel %vm2264, %v2248, %v2251
      %v2269 = vsel %vm2267, %v2257, 2102212464
      %v2270 = vsel %vm2266, %v2254, %v2269
      %v2271 = vsel %vm2265, %v2268, %v2270
      %v2272 = vsel %vm2264, %v2251, %v2254
      %v2273 = vsel %vm2267, %v2260, 920167782
      %v2274 = vsel %vm2266, %v2257, %v2273
      %v2275 = vsel %vm2265, %v2272, %v2274
      %v2276 = vsel %vm2264, %v2254, %v2257
      %v2277 = vsel %vm2267, %v2263, 1326507024
      %v2278 = vsel %vm2266, %v2260, %v2277
      %v2279 = vsel %vm2265, %v2276, %v2278
      %v2280 = vshll.u32 %v2240, 8
      %v2281 = vmul.u32.u64.compose %v2280, %v2279
      %v2282 = vextract.low.u32 %v2281
      %v2283 = vextract.high.u32 %v2281
      %v2284 = vmul.u32.u64.compose %v2280, %v2275
      %v2285 = vextract.low.u32 %v2284
      %v2286 = vextract.high.u32 %v2284
      %v2287 = vmul.u32 %v2280, %v2271
      %v2288 = vadd.s32 %v2283, %v2285
      %vm2289 = vc.u32 %v2283, %v2285
      %v2290 = vadd.s32 %v2286, 1
      %v2291 = vsel %vm2289, %v2290, %v2286
      %v2292 = vadd.s32 %v2287, %v2291
      %v2293 = vadd.s32 %v2292, 536870912
      %v2294 = vshrl.u32 %v2293, 30
      %v2295 = vshll.u32 %v2294, 30
      %v2296 = vsub.s32 %v2292, %v2295
      %vm2297 = vcmp.lt.s32.totalorder %v2296, 0
      %v2298 = vsub.s32 0, %v2296
      %v2299 = vsel %vm2297, %v2298, %v2296
      %v2300 = vclz %v2299
      %v2301 = vsub.s32 %v2300, 2
      %vm2302 = vcmp.gt.s32.totalorder 0, %v2301
      %v2303 = vsel %vm2302, 0, %v2301
      %v2304 = vsub.s32 32, %v2303
      %v2305 = vshll.u32 %v2296, %v2303
      %v2306 = vshrl.u32 %v2288, %v2304
      %v2307 = vor.u32 %v2305, %v2306
      %v2308 = vsub.s32 4294967266, %v2303
      %v2309 = vadd.s32 %v2308, 127
      %v2310 = vshll.u32 %v2309, 23
      %v2311 = vor.u32 4788187, %v2310
      %v2312 = vand.u32 2147483647, %v2311
      %v2314 = vcvt.s32.f32 %v2307
      %v2315 = vmul.f32 %v2314, %v2312
      %v2316 = vxor.u32 %v2315, 2147483648
      %v2317 = vsel %vm2234, %v2316, %v2315
      %v2318 = vsub.s32 4, %v2294
      %v2319 = vsel %vm2234, %v2318, %v2294
      %v2320 = vsel %vm2233, %v1298, %v2317
      %v2321 = vsel %vm2233, 0, %v2319
      %v2322 = vcosq.f32.pop %v2320
      %v2323 = vsinq.f32.pop %v2320
      %vm2324 = vweird.f32 %v1298
      %v2325 = vand.u32 %v2321, 3
      %vm2326 = vcmp.lt.s32.totalorder %v2325, 2
      %vm2327 = vcmp.eq.s32.totalorder %v2325, 0
      %v2328 = vxor.u32 %v2323, 2147483648
      %v2329 = vsel %vm2327, %v2322, %v2328
      %vm2330 = vcmp.eq.s32.totalorder %v2325, 2
      %v2331 = vxor.u32 %v2322, 2147483648
      %v2332 = vsel %vm2330, %v2331, %v2323
      %v2333 = vsel %vm2326, %v2329, %v2332
      %v2334 = vsel %vm2324, nan, %v2333
      %v2335 = vand.u32 2147483647, %v1299
      %vm2336 = vcmp.le.f32.partialorder %v2335, 0.7853982
      %vm2337 = vcmp.lt.s32.totalorder %v1299, 0
      %v2338 = vand.u32 %v1299, 2139095040
      %v2339 = vshrl.u32 %v2338, 23
      %v2340 = vsub.s32 %v2339, 127
      %v2341 = vand.u32 2147483647, %v1299
      %v2342 = vand.u32 %v2341, 8388607
      %v2343 = vor.u32 %v2342, 8388608
      %v2344 = vsub.s32 0, %v2343
      %v2345 = vadd.s32 %v2340, 1
      %vm2346 = vcmp.gt.s32.totalorder %v2345, 0
      %v2347 = vsel %vm2346, %v2345, 0
      %v2348 = vshrl.u32 %v2347, 5
      %v2349 = vand.u32 %v2347, 31
      %v2350 = vsub.s32 32, %v2349
      %v2351 = vshrl.u32 683565275, %v2350
      %v2352 = vshll.u32 683565275, %v2349
      %v2353 = vshrl.u32 2475754826, %v2350
      %v2354 = vor.u32 %v2352, %v2353
      %v2355 = vshll.u32 2475754826, %v2349
      %v2356 = vshrl.u32 2131351028, %v2350
      %v2357 = vor.u32 %v2355, %v2356
      %v2358 = vshll.u32 2131351028, %v2349
      %v2359 = vshrl.u32 2102212464, %v2350
      %v2360 = vor.u32 %v2358, %v2359
      %v2361 = vshll.u32 2102212464, %v2349
      %v2362 = vshrl.u32 920167782, %v2350
      %v2363 = vor.u32 %v2361, %v2362
      %v2364 = vshll.u32 920167782, %v2349
      %v2365 = vshrl.u32 1326507024, %v2350
      %v2366 = vor.u32 %v2364, %v2365
      %vm2367 = vcmp.lt.s32.totalorder %v2348, 1
      %vm2368 = vcmp.lt.s32.totalorder %v2348, 2
      %vm2369 = vcmp.lt.s32.totalorder %v2348, 3
      %vm2370 = vcmp.lt.s32.totalorder %v2348, 4
      %v2371 = vsel %vm2367, %v2351, %v2354
      %v2372 = vsel %vm2370, %v2360, 2102212464
      %v2373 = vsel %vm2369, %v2357, %v2372
      %v2374 = vsel %vm2368, %v2371, %v2373
      %v2375 = vsel %vm2367, %v2354, %v2357
      %v2376 = vsel %vm2370, %v2363, 920167782
      %v2377 = vsel %vm2369, %v2360, %v2376
      %v2378 = vsel %vm2368, %v2375, %v2377
      %v2379 = vsel %vm2367, %v2357, %v2360
      %v2380 = vsel %vm2370, %v2366, 1326507024
      %v2381 = vsel %vm2369, %v2363, %v2380
      %v2382 = vsel %vm2368, %v2379, %v2381
      %v2383 = vshll.u32 %v2343, 8
      %v2384 = vmul.u32.u64.compose %v2383, %v2382
      %v2385 = vextract.low.u32 %v2384
      %v2386 = vextract.high.u32 %v2384
      %v2387 = vmul.u32.u64.compose %v2383, %v2378
      %v2388 = vextract.low.u32 %v2387
      %v2389 = vextract.high.u32 %v2387
      %v2390 = vmul.u32 %v2383, %v2374
      %v2391 = vadd.s32 %v2386, %v2388
      %vm2392 = vc.u32 %v2386, %v2388
      %v2393 = vadd.s32 %v2389, 1
      %v2394 = vsel %vm2392, %v2393, %v2389
      %v2395 = vadd.s32 %v2390, %v2394
      %v2396 = vadd.s32 %v2395, 536870912
      %v2397 = vshrl.u32 %v2396, 30
      %v2398 = vshll.u32 %v2397, 30
      %v2399 = vsub.s32 %v2395, %v2398
      %vm2400 = vcmp.lt.s32.totalorder %v2399, 0
      %v2401 = vsub.s32 0, %v2399
      %v2402 = vsel %vm2400, %v2401, %v2399
      %v2403 = vclz %v2402
      %v2404 = vsub.s32 %v2403, 2
      %vm2405 = vcmp.gt.s32.totalorder 0, %v2404
      %v2406 = vsel %vm2405, 0, %v2404
      %v2407 = vsub.s32 32, %v2406
      %v2408 = vshll.u32 %v2399, %v2406
      %v2409 = vshrl.u32 %v2391, %v2407
      %v2410 = vor.u32 %v2408, %v2409
      %v2411 = vsub.s32 4294967266, %v2406
      %v2412 = vadd.s32 %v2411, 127
      %v2413 = vshll.u32 %v2412, 23
      %v2414 = vor.u32 4788187, %v2413
      %v2415 = vand.u32 2147483647, %v2414
      %v2417 = vcvt.s32.f32 %v2410
      %v2418 = vmul.f32 %v2417, %v2415
      %v2419 = vxor.u32 %v2418, 2147483648
      %v2420 = vsel %vm2337, %v2419, %v2418
      %v2421 = vsub.s32 4, %v2397
      %v2422 = vsel %vm2337, %v2421, %v2397
      %v2423 = vsel %vm2336, %v1299, %v2420
      %v2424 = vsel %vm2336, 0, %v2422
      %v2425 = vcosq.f32.pop %v2423
      %v2426 = vsinq.f32.pop %v2423
      %vm2427 = vweird.f32 %v1299
      %v2428 = vand.u32 %v2424, 3
      %vm2429 = vcmp.lt.s32.totalorder %v2428, 2
      %vm2430 = vcmp.eq.s32.totalorder %v2428, 0
      %v2431 = vxor.u32 %v2426, 2147483648
      %v2432 = vsel %vm2430, %v2425, %v2431
      %vm2433 = vcmp.eq.s32.totalorder %v2428, 2
      %v2434 = vxor.u32 %v2425, 2147483648
      %v2435 = vsel %vm2433, %v2434, %v2426
      %v2436 = vsel %vm2429, %v2432, %v2435
      %v2437 = vsel %vm2427, nan, %v2436
      %v2438 = vand.u32 2147483647, %v1300
      %vm2439 = vcmp.le.f32.partialorder %v2438, 0.7853982
      %vm2440 = vcmp.lt.s32.totalorder %v1300, 0
      %v2441 = vand.u32 %v1300, 2139095040
      %v2442 = vshrl.u32 %v2441, 23
      %v2443 = vsub.s32 %v2442, 127
      %v2444 = vand.u32 2147483647, %v1300
      %v2445 = vand.u32 %v2444, 8388607
      %v2446 = vor.u32 %v2445, 8388608
      %v2447 = vsub.s32 0, %v2446
      %v2448 = vadd.s32 %v2443, 1
      %vm2449 = vcmp.gt.s32.totalorder %v2448, 0
      %v2450 = vsel %vm2449, %v2448, 0
      %v2451 = vshrl.u32 %v2450, 5
      %v2452 = vand.u32 %v2450, 31
      %v2453 = vsub.s32 32, %v2452
      %v2454 = vshrl.u32 683565275, %v2453
      %v2455 = vshll.u32 683565275, %v2452
      %v2456 = vshrl.u32 2475754826, %v2453
      %v2457 = vor.u32 %v2455, %v2456
      %v2458 = vshll.u32 2475754826, %v2452
      %v2459 = vshrl.u32 2131351028, %v2453
      %v2460 = vor.u32 %v2458, %v2459
      %v2461 = vshll.u32 2131351028, %v2452
      %v2462 = vshrl.u32 2102212464, %v2453
      %v2463 = vor.u32 %v2461, %v2462
      %v2464 = vshll.u32 2102212464, %v2452
      %v2465 = vshrl.u32 920167782, %v2453
      %v2466 = vor.u32 %v2464, %v2465
      %v2467 = vshll.u32 920167782, %v2452
      %v2468 = vshrl.u32 1326507024, %v2453
      %v2469 = vor.u32 %v2467, %v2468
      %vm2470 = vcmp.lt.s32.totalorder %v2451, 1
      %vm2471 = vcmp.lt.s32.totalorder %v2451, 2
      %vm2472 = vcmp.lt.s32.totalorder %v2451, 3
      %vm2473 = vcmp.lt.s32.totalorder %v2451, 4
      %v2474 = vsel %vm2470, %v2454, %v2457
      %v2475 = vsel %vm2473, %v2463, 2102212464
      %v2476 = vsel %vm2472, %v2460, %v2475
      %v2477 = vsel %vm2471, %v2474, %v2476
      %v2478 = vsel %vm2470, %v2457, %v2460
      %v2479 = vsel %vm2473, %v2466, 920167782
      %v2480 = vsel %vm2472, %v2463, %v2479
      %v2481 = vsel %vm2471, %v2478, %v2480
      %v2482 = vsel %vm2470, %v2460, %v2463
      %v2483 = vsel %vm2473, %v2469, 1326507024
      %v2484 = vsel %vm2472, %v2466, %v2483
      %v2485 = vsel %vm2471, %v2482, %v2484
      %v2486 = vshll.u32 %v2446, 8
      %v2487 = vmul.u32.u64.compose %v2486, %v2485
      %v2488 = vextract.low.u32 %v2487
      %v2489 = vextract.high.u32 %v2487
      %v2490 = vmul.u32.u64.compose %v2486, %v2481
      %v2491 = vextract.low.u32 %v2490
      %v2492 = vextract.high.u32 %v2490
      %v2493 = vmul.u32 %v2486, %v2477
      %v2494 = vadd.s32 %v2489, %v2491
      %vm2495 = vc.u32 %v2489, %v2491
      %v2496 = vadd.s32 %v2492, 1
      %v2497 = vsel %vm2495, %v2496, %v2492
      %v2498 = vadd.s32 %v2493, %v2497
      %v2499 = vadd.s32 %v2498, 536870912
      %v2500 = vshrl.u32 %v2499, 30
      %v2501 = vshll.u32 %v2500, 30
      %v2502 = vsub.s32 %v2498, %v2501
      %vm2503 = vcmp.lt.s32.totalorder %v2502, 0
      %v2504 = vsub.s32 0, %v2502
      %v2505 = vsel %vm2503, %v2504, %v2502
      %v2506 = vclz %v2505
      %v2507 = vsub.s32 %v2506, 2
      %vm2508 = vcmp.gt.s32.totalorder 0, %v2507
      %v2509 = vsel %vm2508, 0, %v2507
      %v2510 = vsub.s32 32, %v2509
      %v2511 = vshll.u32 %v2502, %v2509
      %v2512 = vshrl.u32 %v2494, %v2510
      %v2513 = vor.u32 %v2511, %v2512
      %v2514 = vsub.s32 4294967266, %v2509
      %v2515 = vadd.s32 %v2514, 127
      %v2516 = vshll.u32 %v2515, 23
      %v2517 = vor.u32 4788187, %v2516
      %v2518 = vand.u32 2147483647, %v2517
      %v2520 = vcvt.s32.f32 %v2513
      %v2521 = vmul.f32 %v2520, %v2518
      %v2522 = vxor.u32 %v2521, 2147483648
      %v2523 = vsel %vm2440, %v2522, %v2521
      %v2524 = vsub.s32 4, %v2500
      %v2525 = vsel %vm2440, %v2524, %v2500
      %v2526 = vsel %vm2439, %v1300, %v2523
      %v2527 = vsel %vm2439, 0, %v2525
      %v2528 = vcosq.f32.pop %v2526
      %v2529 = vsinq.f32.pop %v2526
      %vm2530 = vweird.f32 %v1300
      %v2531 = vand.u32 %v2527, 3
      %vm2532 = vcmp.lt.s32.totalorder %v2531, 2
      %vm2533 = vcmp.eq.s32.totalorder %v2531, 0
      %v2534 = vxor.u32 %v2529, 2147483648
      %v2535 = vsel %vm2533, %v2528, %v2534
      %vm2536 = vcmp.eq.s32.totalorder %v2531, 2
      %v2537 = vxor.u32 %v2528, 2147483648
      %v2538 = vsel %vm2536, %v2537, %v2529
      %v2539 = vsel %vm2532, %v2535, %v2538
      %v2540 = vsel %vm2530, nan, %v2539
      %v2541 = vand.u32 2147483647, %v1301
      %vm2542 = vcmp.le.f32.partialorder %v2541, 0.7853982
      %vm2543 = vcmp.lt.s32.totalorder %v1301, 0
      %v2544 = vand.u32 %v1301, 2139095040
      %v2545 = vshrl.u32 %v2544, 23
      %v2546 = vsub.s32 %v2545, 127
      %v2547 = vand.u32 2147483647, %v1301
      %v2548 = vand.u32 %v2547, 8388607
      %v2549 = vor.u32 %v2548, 8388608
      %v2550 = vsub.s32 0, %v2549
      %v2551 = vadd.s32 %v2546, 1
      %vm2552 = vcmp.gt.s32.totalorder %v2551, 0
      %v2553 = vsel %vm2552, %v2551, 0
      %v2554 = vshrl.u32 %v2553, 5
      %v2555 = vand.u32 %v2553, 31
      %v2556 = vsub.s32 32, %v2555
      %v2557 = vshrl.u32 683565275, %v2556
      %v2558 = vshll.u32 683565275, %v2555
      %v2559 = vshrl.u32 2475754826, %v2556
      %v2560 = vor.u32 %v2558, %v2559
      %v2561 = vshll.u32 2475754826, %v2555
      %v2562 = vshrl.u32 2131351028, %v2556
      %v2563 = vor.u32 %v2561, %v2562
      %v2564 = vshll.u32 2131351028, %v2555
      %v2565 = vshrl.u32 2102212464, %v2556
      %v2566 = vor.u32 %v2564, %v2565
      %v2567 = vshll.u32 2102212464, %v2555
      %v2568 = vshrl.u32 920167782, %v2556
      %v2569 = vor.u32 %v2567, %v2568
      %v2570 = vshll.u32 920167782, %v2555
      %v2571 = vshrl.u32 1326507024, %v2556
      %v2572 = vor.u32 %v2570, %v2571
      %vm2573 = vcmp.lt.s32.totalorder %v2554, 1
      %vm2574 = vcmp.lt.s32.totalorder %v2554, 2
      %vm2575 = vcmp.lt.s32.totalorder %v2554, 3
      %vm2576 = vcmp.lt.s32.totalorder %v2554, 4
      %v2577 = vsel %vm2573, %v2557, %v2560
      %v2578 = vsel %vm2576, %v2566, 2102212464
      %v2579 = vsel %vm2575, %v2563, %v2578
      %v2580 = vsel %vm2574, %v2577, %v2579
      %v2581 = vsel %vm2573, %v2560, %v2563
      %v2582 = vsel %vm2576, %v2569, 920167782
      %v2583 = vsel %vm2575, %v2566, %v2582
      %v2584 = vsel %vm2574, %v2581, %v2583
      %v2585 = vsel %vm2573, %v2563, %v2566
      %v2586 = vsel %vm2576, %v2572, 1326507024
      %v2587 = vsel %vm2575, %v2569, %v2586
      %v2588 = vsel %vm2574, %v2585, %v2587
      %v2589 = vshll.u32 %v2549, 8
      %v2590 = vmul.u32.u64.compose %v2589, %v2588
      %v2591 = vextract.low.u32 %v2590
      %v2592 = vextract.high.u32 %v2590
      %v2593 = vmul.u32.u64.compose %v2589, %v2584
      %v2594 = vextract.low.u32 %v2593
      %v2595 = vextract.high.u32 %v2593
      %v2596 = vmul.u32 %v2589, %v2580
      %v2597 = vadd.s32 %v2592, %v2594
      %vm2598 = vc.u32 %v2592, %v2594
      %v2599 = vadd.s32 %v2595, 1
      %v2600 = vsel %vm2598, %v2599, %v2595
      %v2601 = vadd.s32 %v2596, %v2600
      %v2602 = vadd.s32 %v2601, 536870912
      %v2603 = vshrl.u32 %v2602, 30
      %v2604 = vshll.u32 %v2603, 30
      %v2605 = vsub.s32 %v2601, %v2604
      %vm2606 = vcmp.lt.s32.totalorder %v2605, 0
      %v2607 = vsub.s32 0, %v2605
      %v2608 = vsel %vm2606, %v2607, %v2605
      %v2609 = vclz %v2608
      %v2610 = vsub.s32 %v2609, 2
      %vm2611 = vcmp.gt.s32.totalorder 0, %v2610
      %v2612 = vsel %vm2611, 0, %v2610
      %v2613 = vsub.s32 32, %v2612
      %v2614 = vshll.u32 %v2605, %v2612
      %v2615 = vshrl.u32 %v2597, %v2613
      %v2616 = vor.u32 %v2614, %v2615
      %v2617 = vsub.s32 4294967266, %v2612
      %v2618 = vadd.s32 %v2617, 127
      %v2619 = vshll.u32 %v2618, 23
      %v2620 = vor.u32 4788187, %v2619
      %v2621 = vand.u32 2147483647, %v2620
      %v2623 = vcvt.s32.f32 %v2616
      %v2624 = vmul.f32 %v2623, %v2621
      %v2625 = vxor.u32 %v2624, 2147483648
      %v2626 = vsel %vm2543, %v2625, %v2624
      %v2627 = vsub.s32 4, %v2603
      %v2628 = vsel %vm2543, %v2627, %v2603
      %v2629 = vsel %vm2542, %v1301, %v2626
      %v2630 = vsel %vm2542, 0, %v2628
      %v2631 = vcosq.f32.pop %v2629
      %v2632 = vsinq.f32.pop %v2629
      %vm2633 = vweird.f32 %v1301
      %v2634 = vand.u32 %v2630, 3
      %vm2635 = vcmp.lt.s32.totalorder %v2634, 2
      %vm2636 = vcmp.eq.s32.totalorder %v2634, 0
      %v2637 = vxor.u32 %v2632, 2147483648
      %v2638 = vsel %vm2636, %v2631, %v2637
      %vm2639 = vcmp.eq.s32.totalorder %v2634, 2
      %v2640 = vxor.u32 %v2631, 2147483648
      %v2641 = vsel %vm2639, %v2640, %v2632
      %v2642 = vsel %vm2635, %v2638, %v2641
      %v2643 = vsel %vm2633, nan, %v2642
      %v2644 = vand.u32 2147483647, %v1302
      %vm2645 = vcmp.le.f32.partialorder %v2644, 0.7853982
      %vm2646 = vcmp.lt.s32.totalorder %v1302, 0
      %v2647 = vand.u32 %v1302, 2139095040
      %v2648 = vshrl.u32 %v2647, 23
      %v2649 = vsub.s32 %v2648, 127
      %v2650 = vand.u32 2147483647, %v1302
      %v2651 = vand.u32 %v2650, 8388607
      %v2652 = vor.u32 %v2651, 8388608
      %v2653 = vsub.s32 0, %v2652
      %v2654 = vadd.s32 %v2649, 1
      %vm2655 = vcmp.gt.s32.totalorder %v2654, 0
      %v2656 = vsel %vm2655, %v2654, 0
      %v2657 = vshrl.u32 %v2656, 5
      %v2658 = vand.u32 %v2656, 31
      %v2659 = vsub.s32 32, %v2658
      %v2660 = vshrl.u32 683565275, %v2659
      %v2661 = vshll.u32 683565275, %v2658
      %v2662 = vshrl.u32 2475754826, %v2659
      %v2663 = vor.u32 %v2661, %v2662
      %v2664 = vshll.u32 2475754826, %v2658
      %v2665 = vshrl.u32 2131351028, %v2659
      %v2666 = vor.u32 %v2664, %v2665
      %v2667 = vshll.u32 2131351028, %v2658
      %v2668 = vshrl.u32 2102212464, %v2659
      %v2669 = vor.u32 %v2667, %v2668
      %v2670 = vshll.u32 2102212464, %v2658
      %v2671 = vshrl.u32 920167782, %v2659
      %v2672 = vor.u32 %v2670, %v2671
      %v2673 = vshll.u32 920167782, %v2658
      %v2674 = vshrl.u32 1326507024, %v2659
      %v2675 = vor.u32 %v2673, %v2674
      %vm2676 = vcmp.lt.s32.totalorder %v2657, 1
      %vm2677 = vcmp.lt.s32.totalorder %v2657, 2
      %vm2678 = vcmp.lt.s32.totalorder %v2657, 3
      %vm2679 = vcmp.lt.s32.totalorder %v2657, 4
      %v2680 = vsel %vm2676, %v2660, %v2663
      %v2681 = vsel %vm2679, %v2669, 2102212464
      %v2682 = vsel %vm2678, %v2666, %v2681
      %v2683 = vsel %vm2677, %v2680, %v2682
      %v2684 = vsel %vm2676, %v2663, %v2666
      %v2685 = vsel %vm2679, %v2672, 920167782
      %v2686 = vsel %vm2678, %v2669, %v2685
      %v2687 = vsel %vm2677, %v2684, %v2686
      %v2688 = vsel %vm2676, %v2666, %v2669
      %v2689 = vsel %vm2679, %v2675, 1326507024
      %v2690 = vsel %vm2678, %v2672, %v2689
      %v2691 = vsel %vm2677, %v2688, %v2690
      %v2692 = vshll.u32 %v2652, 8
      %v2693 = vmul.u32.u64.compose %v2692, %v2691
      %v2694 = vextract.low.u32 %v2693
      %v2695 = vextract.high.u32 %v2693
      %v2696 = vmul.u32.u64.compose %v2692, %v2687
      %v2697 = vextract.low.u32 %v2696
      %v2698 = vextract.high.u32 %v2696
      %v2699 = vmul.u32 %v2692, %v2683
      %v2700 = vadd.s32 %v2695, %v2697
      %vm2701 = vc.u32 %v2695, %v2697
      %v2702 = vadd.s32 %v2698, 1
      %v2703 = vsel %vm2701, %v2702, %v2698
      %v2704 = vadd.s32 %v2699, %v2703
      %v2705 = vadd.s32 %v2704, 536870912
      %v2706 = vshrl.u32 %v2705, 30
      %v2707 = vshll.u32 %v2706, 30
      %v2708 = vsub.s32 %v2704, %v2707
      %vm2709 = vcmp.lt.s32.totalorder %v2708, 0
      %v2710 = vsub.s32 0, %v2708
      %v2711 = vsel %vm2709, %v2710, %v2708
      %v2712 = vclz %v2711
      %v2713 = vsub.s32 %v2712, 2
      %vm2714 = vcmp.gt.s32.totalorder 0, %v2713
      %v2715 = vsel %vm2714, 0, %v2713
      %v2716 = vsub.s32 32, %v2715
      %v2717 = vshll.u32 %v2708, %v2715
      %v2718 = vshrl.u32 %v2700, %v2716
      %v2719 = vor.u32 %v2717, %v2718
      %v2720 = vsub.s32 4294967266, %v2715
      %v2721 = vadd.s32 %v2720, 127
      %v2722 = vshll.u32 %v2721, 23
      %v2723 = vor.u32 4788187, %v2722
      %v2724 = vand.u32 2147483647, %v2723
      %v2726 = vcvt.s32.f32 %v2719
      %v2727 = vmul.f32 %v2726, %v2724
      %v2728 = vxor.u32 %v2727, 2147483648
      %v2729 = vsel %vm2646, %v2728, %v2727
      %v2730 = vsub.s32 4, %v2706
      %v2731 = vsel %vm2646, %v2730, %v2706
      %v2732 = vsel %vm2645, %v1302, %v2729
      %v2733 = vsel %vm2645, 0, %v2731
      %v2734 = vcosq.f32.pop %v2732
      %v2735 = vsinq.f32.pop %v2732
      %vm2736 = vweird.f32 %v1302
      %v2737 = vand.u32 %v2733, 3
      %vm2738 = vcmp.lt.s32.totalorder %v2737, 2
      %vm2739 = vcmp.eq.s32.totalorder %v2737, 0
      %v2740 = vxor.u32 %v2735, 2147483648
      %v2741 = vsel %vm2739, %v2734, %v2740
      %vm2742 = vcmp.eq.s32.totalorder %v2737, 2
      %v2743 = vxor.u32 %v2734, 2147483648
      %v2744 = vsel %vm2742, %v2743, %v2735
      %v2745 = vsel %vm2738, %v2741, %v2744
      %v2746 = vsel %vm2736, nan, %v2745
      %v2747 = vand.u32 2147483647, %v1303
      %vm2748 = vcmp.le.f32.partialorder %v2747, 0.7853982
      %vm2749 = vcmp.lt.s32.totalorder %v1303, 0
      %v2750 = vand.u32 %v1303, 2139095040
      %v2751 = vshrl.u32 %v2750, 23
      %v2752 = vsub.s32 %v2751, 127
      %v2753 = vand.u32 2147483647, %v1303
      %v2754 = vand.u32 %v2753, 8388607
      %v2755 = vor.u32 %v2754, 8388608
      %v2756 = vsub.s32 0, %v2755
      %v2757 = vadd.s32 %v2752, 1
      %vm2758 = vcmp.gt.s32.totalorder %v2757, 0
      %v2759 = vsel %vm2758, %v2757, 0
      %v2760 = vshrl.u32 %v2759, 5
      %v2761 = vand.u32 %v2759, 31
      %v2762 = vsub.s32 32, %v2761
      %v2763 = vshrl.u32 683565275, %v2762
      %v2764 = vshll.u32 683565275, %v2761
      %v2765 = vshrl.u32 2475754826, %v2762
      %v2766 = vor.u32 %v2764, %v2765
      %v2767 = vshll.u32 2475754826, %v2761
      %v2768 = vshrl.u32 2131351028, %v2762
      %v2769 = vor.u32 %v2767, %v2768
      %v2770 = vshll.u32 2131351028, %v2761
      %v2771 = vshrl.u32 2102212464, %v2762
      %v2772 = vor.u32 %v2770, %v2771
      %v2773 = vshll.u32 2102212464, %v2761
      %v2774 = vshrl.u32 920167782, %v2762
      %v2775 = vor.u32 %v2773, %v2774
      %v2776 = vshll.u32 920167782, %v2761
      %v2777 = vshrl.u32 1326507024, %v2762
      %v2778 = vor.u32 %v2776, %v2777
      %vm2779 = vcmp.lt.s32.totalorder %v2760, 1
      %vm2780 = vcmp.lt.s32.totalorder %v2760, 2
      %vm2781 = vcmp.lt.s32.totalorder %v2760, 3
      %vm2782 = vcmp.lt.s32.totalorder %v2760, 4
      %v2783 = vsel %vm2779, %v2763, %v2766
      %v2784 = vsel %vm2782, %v2772, 2102212464
      %v2785 = vsel %vm2781, %v2769, %v2784
      %v2786 = vsel %vm2780, %v2783, %v2785
      %v2787 = vsel %vm2779, %v2766, %v2769
      %v2788 = vsel %vm2782, %v2775, 920167782
      %v2789 = vsel %vm2781, %v2772, %v2788
      %v2790 = vsel %vm2780, %v2787, %v2789
      %v2791 = vsel %vm2779, %v2769, %v2772
      %v2792 = vsel %vm2782, %v2778, 1326507024
      %v2793 = vsel %vm2781, %v2775, %v2792
      %v2794 = vsel %vm2780, %v2791, %v2793
      %v2795 = vshll.u32 %v2755, 8
      %v2796 = vmul.u32.u64.compose %v2795, %v2794
      %v2797 = vextract.low.u32 %v2796
      %v2798 = vextract.high.u32 %v2796
      %v2799 = vmul.u32.u64.compose %v2795, %v2790
      %v2800 = vextract.low.u32 %v2799
      %v2801 = vextract.high.u32 %v2799
      %v2802 = vmul.u32 %v2795, %v2786
      %v2803 = vadd.s32 %v2798, %v2800
      %vm2804 = vc.u32 %v2798, %v2800
      %v2805 = vadd.s32 %v2801, 1
      %v2806 = vsel %vm2804, %v2805, %v2801
      %v2807 = vadd.s32 %v2802, %v2806
      %v2808 = vadd.s32 %v2807, 536870912
      %v2809 = vshrl.u32 %v2808, 30
      %v2810 = vshll.u32 %v2809, 30
      %v2811 = vsub.s32 %v2807, %v2810
      %vm2812 = vcmp.lt.s32.totalorder %v2811, 0
      %v2813 = vsub.s32 0, %v2811
      %v2814 = vsel %vm2812, %v2813, %v2811
      %v2815 = vclz %v2814
      %v2816 = vsub.s32 %v2815, 2
      %vm2817 = vcmp.gt.s32.totalorder 0, %v2816
      %v2818 = vsel %vm2817, 0, %v2816
      %v2819 = vsub.s32 32, %v2818
      %v2820 = vshll.u32 %v2811, %v2818
      %v2821 = vshrl.u32 %v2803, %v2819
      %v2822 = vor.u32 %v2820, %v2821
      %v2823 = vsub.s32 4294967266, %v2818
      %v2824 = vadd.s32 %v2823, 127
      %v2825 = vshll.u32 %v2824, 23
      %v2826 = vor.u32 4788187, %v2825
      %v2827 = vand.u32 2147483647, %v2826
      %v2829 = vcvt.s32.f32 %v2822
      %v2830 = vmul.f32 %v2829, %v2827
      %v2831 = vxor.u32 %v2830, 2147483648
      %v2832 = vsel %vm2749, %v2831, %v2830
      %v2833 = vsub.s32 4, %v2809
      %v2834 = vsel %vm2749, %v2833, %v2809
      %v2835 = vsel %vm2748, %v1303, %v2832
      %v2836 = vsel %vm2748, 0, %v2834
      %v2837 = vcosq.f32.pop %v2835
      %v2838 = vsinq.f32.pop %v2835
      %vm2839 = vweird.f32 %v1303
      %v2840 = vand.u32 %v2836, 3
      %vm2841 = vcmp.lt.s32.totalorder %v2840, 2
      %vm2842 = vcmp.eq.s32.totalorder %v2840, 0
      %v2843 = vxor.u32 %v2838, 2147483648
      %v2844 = vsel %vm2842, %v2837, %v2843
      %vm2845 = vcmp.eq.s32.totalorder %v2840, 2
      %v2846 = vxor.u32 %v2837, 2147483648
      %v2847 = vsel %vm2845, %v2846, %v2838
      %v2848 = vsel %vm2841, %v2844, %v2847
      %v2849 = vsel %vm2839, nan, %v2848
      %v2850 = vand.u32 2147483647, %v1304
      %vm2851 = vcmp.le.f32.partialorder %v2850, 0.7853982
      %vm2852 = vcmp.lt.s32.totalorder %v1304, 0
      %v2853 = vand.u32 %v1304, 2139095040
      %v2854 = vshrl.u32 %v2853, 23
      %v2855 = vsub.s32 %v2854, 127
      %v2856 = vand.u32 2147483647, %v1304
      %v2857 = vand.u32 %v2856, 8388607
      %v2858 = vor.u32 %v2857, 8388608
      %v2859 = vsub.s32 0, %v2858
      %v2860 = vadd.s32 %v2855, 1
      %vm2861 = vcmp.gt.s32.totalorder %v2860, 0
      %v2862 = vsel %vm2861, %v2860, 0
      %v2863 = vshrl.u32 %v2862, 5
      %v2864 = vand.u32 %v2862, 31
      %v2865 = vsub.s32 32, %v2864
      %v2866 = vshrl.u32 683565275, %v2865
      %v2867 = vshll.u32 683565275, %v2864
      %v2868 = vshrl.u32 2475754826, %v2865
      %v2869 = vor.u32 %v2867, %v2868
      %v2870 = vshll.u32 2475754826, %v2864
      %v2871 = vshrl.u32 2131351028, %v2865
      %v2872 = vor.u32 %v2870, %v2871
      %v2873 = vshll.u32 2131351028, %v2864
      %v2874 = vshrl.u32 2102212464, %v2865
      %v2875 = vor.u32 %v2873, %v2874
      %v2876 = vshll.u32 2102212464, %v2864
      %v2877 = vshrl.u32 920167782, %v2865
      %v2878 = vor.u32 %v2876, %v2877
      %v2879 = vshll.u32 920167782, %v2864
      %v2880 = vshrl.u32 1326507024, %v2865
      %v2881 = vor.u32 %v2879, %v2880
      %vm2882 = vcmp.lt.s32.totalorder %v2863, 1
      %vm2883 = vcmp.lt.s32.totalorder %v2863, 2
      %vm2884 = vcmp.lt.s32.totalorder %v2863, 3
      %vm2885 = vcmp.lt.s32.totalorder %v2863, 4
      %v2886 = vsel %vm2882, %v2866, %v2869
      %v2887 = vsel %vm2885, %v2875, 2102212464
      %v2888 = vsel %vm2884, %v2872, %v2887
      %v2889 = vsel %vm2883, %v2886, %v2888
      %v2890 = vsel %vm2882, %v2869, %v2872
      %v2891 = vsel %vm2885, %v2878, 920167782
      %v2892 = vsel %vm2884, %v2875, %v2891
      %v2893 = vsel %vm2883, %v2890, %v2892
      %v2894 = vsel %vm2882, %v2872, %v2875
      %v2895 = vsel %vm2885, %v2881, 1326507024
      %v2896 = vsel %vm2884, %v2878, %v2895
      %v2897 = vsel %vm2883, %v2894, %v2896
      %v2898 = vshll.u32 %v2858, 8
      %v2899 = vmul.u32.u64.compose %v2898, %v2897
      %v2900 = vextract.low.u32 %v2899
      %v2901 = vextract.high.u32 %v2899
      %v2902 = vmul.u32.u64.compose %v2898, %v2893
      %v2903 = vextract.low.u32 %v2902
      %v2904 = vextract.high.u32 %v2902
      %v2905 = vmul.u32 %v2898, %v2889
      %v2906 = vadd.s32 %v2901, %v2903
      %vm2907 = vc.u32 %v2901, %v2903
      %v2908 = vadd.s32 %v2904, 1
      %v2909 = vsel %vm2907, %v2908, %v2904
      %v2910 = vadd.s32 %v2905, %v2909
      %v2911 = vadd.s32 %v2910, 536870912
      %v2912 = vshrl.u32 %v2911, 30
      %v2913 = vshll.u32 %v2912, 30
      %v2914 = vsub.s32 %v2910, %v2913
      %vm2915 = vcmp.lt.s32.totalorder %v2914, 0
      %v2916 = vsub.s32 0, %v2914
      %v2917 = vsel %vm2915, %v2916, %v2914
      %v2918 = vclz %v2917
      %v2919 = vsub.s32 %v2918, 2
      %vm2920 = vcmp.gt.s32.totalorder 0, %v2919
      %v2921 = vsel %vm2920, 0, %v2919
      %v2922 = vsub.s32 32, %v2921
      %v2923 = vshll.u32 %v2914, %v2921
      %v2924 = vshrl.u32 %v2906, %v2922
      %v2925 = vor.u32 %v2923, %v2924
      %v2926 = vsub.s32 4294967266, %v2921
      %v2927 = vadd.s32 %v2926, 127
      %v2928 = vshll.u32 %v2927, 23
      %v2929 = vor.u32 4788187, %v2928
      %v2930 = vand.u32 2147483647, %v2929
      %v2932 = vcvt.s32.f32 %v2925
      %v2933 = vmul.f32 %v2932, %v2930
      %v2934 = vxor.u32 %v2933, 2147483648
      %v2935 = vsel %vm2852, %v2934, %v2933
      %v2936 = vsub.s32 4, %v2912
      %v2937 = vsel %vm2852, %v2936, %v2912
      %v2938 = vsel %vm2851, %v1304, %v2935
      %v2939 = vsel %vm2851, 0, %v2937
      %v2940 = vcosq.f32.pop %v2938
      %v2941 = vsinq.f32.pop %v2938
      %vm2942 = vweird.f32 %v1304
      %v2943 = vand.u32 %v2939, 3
      %vm2944 = vcmp.lt.s32.totalorder %v2943, 2
      %vm2945 = vcmp.eq.s32.totalorder %v2943, 0
      %v2946 = vxor.u32 %v2941, 2147483648
      %v2947 = vsel %vm2945, %v2940, %v2946
      %vm2948 = vcmp.eq.s32.totalorder %v2943, 2
      %v2949 = vxor.u32 %v2940, 2147483648
      %v2950 = vsel %vm2948, %v2949, %v2941
      %v2951 = vsel %vm2944, %v2947, %v2950
      %v2952 = vsel %vm2942, nan, %v2951
      %v2953 = vld [vmem:[%s8] sm:$0xff]
      %v2954 = vld [vmem:[%s8 + $0x8] sm:$0xff]
      %v2955 = vld [vmem:[%s9] sm:$0xff]
      %v2956 = vld [vmem:[%s9 + $0x8] sm:$0xff]
      %vm2957 = vcmask 130048
      %v2958 = vsel %vm2957, %v1083, 0
      %v2960 = vsel %vm2957, %v1084, 0
      %v2962 = vsel %vm2957, %v1085, 0
      %v2964 = vsel %vm2957, %v1086, 0
      %v2966 = vsel %vm2957, %v1087, 0
      %v2968 = vsel %vm2957, %v1088, 0
      %v2970 = vsel %vm2957, %v1089, 0
      %v2972 = vsel %vm2957, %v1090, 0
      %v2974 = vsel %vm2957, %v1091, 0
      %v2976 = vsel %vm2957, %v1092, 0
      %v2978 = vsel %vm2957, %v1093, 0
      %v2980 = vsel %vm2957, %v1094, 0
      %v2982 = vsel %vm2957, %v1095, 0
      %v2984 = vsel %vm2957, %v1096, 0
      %v2986 = vsel %vm2957, %v1097, 0
      %v2988 = vsel %vm2957, %v1098, 0
      %2990 = vmatprep.subr.mxu0 0.0
      %2991 = vmatpush1.msra.mxu0 %v2955
      %2992 = vmatprep.subr.mxu0 0.0
      %2993 = vmatpush1.msra.mxu0 %v2956
      %2994 = vmatprep.subr.mxu0 0.0
      %2995 = vmatpush1.msra.mxu0 0.0
      %2996 = vmatprep.subr.mxu0 0.0
      %2997 = vmatpush1.msra.mxu0 0.0
      %2998 = vmatprep.subr.mxu0 0.0
      %2999 = vmatpush1.msra.mxu0 0.0
      %3000 = vmatprep.subr.mxu0 0.0
      %3001 = vmatpush1.msra.mxu0 0.0
      %3002 = vmatprep.subr.mxu0 0.0
      %3003 = vmatpush1.msra.mxu0 0.0
      %3004 = vmatprep.subr.mxu0 0.0
      %3005 = vmatpush1.msra.mxu0 0.0
      %3006 = vmatprep.subr.mxu0 0.0
      %3007 = vmatpush1.msra.mxu0 0.0
      %3008 = vmatprep.subr.mxu0 0.0
      %3009 = vmatpush1.msra.mxu0 0.0
      %3010 = vmatprep.subr.mxu0 0.0
      %3011 = vmatpush1.msra.mxu0 0.0
      %3012 = vmatprep.subr.mxu0 0.0
      %3013 = vmatpush1.msra.mxu0 0.0
      %3014 = vmatprep.subr.mxu0 0.0
      %3015 = vmatpush1.msra.mxu0 0.0
      %3016 = vmatprep.subr.mxu0 0.0
      %3017 = vmatpush1.msra.mxu0 0.0
      %3018 = vmatprep.subr.mxu0 0.0
      %3019 = vmatpush1.msra.mxu0 0.0
      %3020 = vmatprep.subr.mxu0 0.0
      %3021 = vmatpush1.msra.mxu0 0.0
      %3022 = vmatprep.subr.mxu0 0.0
      %3023 = vmatpush1.msra.mxu0 0.0
      %3024 = vmatprep.subr.mxu0 0.0
      %3025 = vmatpush1.msra.mxu0 0.0
      %3026 = vmatprep.subr.mxu0 0.0
      %3027 = vmatpush1.msra.mxu0 0.0
      %3028 = vmatprep.subr.mxu0 0.0
      %3029 = vmatpush1.msra.mxu0 0.0
      %3030 = vmatprep.subr.mxu0 0.0
      %3031 = vmatpush1.msra.mxu0 0.0
      %3032 = vmatprep.subr.mxu0 0.0
      %3033 = vmatpush1.msra.mxu0 0.0
      %3034 = vmatprep.subr.mxu0 0.0
      %3035 = vmatpush1.msra.mxu0 0.0
      %3036 = vmatprep.subr.mxu0 0.0
      %3037 = vmatpush1.msra.mxu0 0.0
      %3038 = vmatprep.subr.mxu0 0.0
      %3039 = vmatpush1.msra.mxu0 0.0
      %3040 = vmatprep.subr.mxu0 0.0
      %3041 = vmatpush1.msra.mxu0 0.0
      %3042 = vmatprep.subr.mxu0 0.0
      %3043 = vmatpush1.msra.mxu0 0.0
      %3044 = vmatprep.subr.mxu0 0.0
      %3045 = vmatpush1.msra.mxu0 0.0
      %3046 = vmatprep.subr.mxu0 0.0
      %3047 = vmatpush1.msra.mxu0 0.0
      %3048 = vmatprep.subr.mxu0 0.0
      %3049 = vmatpush1.msra.mxu0 0.0
      %3050 = vmatprep.subr.mxu0 0.0
      %3051 = vmatpush1.msra.mxu0 0.0
      %3052 = vmatprep.subr.mxu0 0.0
      %3053 = vmatpush1.msra.mxu0 0.0
      %3054 = vmatprep.mubr.f32.mxu0 0.0
      %3055 = vmatmul.mubr.f32.gmra.mrb[0].mxu0 %v2958
      %v3056 = vpop.f32.mrb[0].mxu0
      %v3057 = vadd.f32 0.0, %v3056
      %v3058 = vpop.f32.mrb[0].mxu0
      %3059 = vmatprep.mubr.f32.mxu0 0.0
      %3060 = vmatmul.mubr.f32.gmra.mrb[0].mxu0 %v2960
      %v3061 = vpop.f32.mrb[0].mxu0
      %v3062 = vadd.f32 0.0, %v3061
      %v3063 = vpop.f32.mrb[0].mxu0
      %3064 = vmatprep.mubr.f32.mxu0 0.0
      %3065 = vmatmul.mubr.f32.gmra.mrb[0].mxu0 %v2962
      %v3066 = vpop.f32.mrb[0].mxu0
      %v3067 = vadd.f32 0.0, %v3066
      %v3068 = vpop.f32.mrb[0].mxu0
      %3069 = vmatprep.mubr.f32.mxu0 0.0
      %3070 = vmatmul.mubr.f32.gmra.mrb[0].mxu0 %v2964
      %v3071 = vpop.f32.mrb[0].mxu0
      %v3072 = vadd.f32 0.0, %v3071
      %v3073 = vpop.f32.mrb[0].mxu0
      %3074 = vmatprep.mubr.f32.mxu0 0.0
      %3075 = vmatmul.mubr.f32.gmra.mrb[0].mxu0 %v2966
      %v3076 = vpop.f32.mrb[0].mxu0
      %v3077 = vadd.f32 0.0, %v3076
      %v3078 = vpop.f32.mrb[0].mxu0
      %3079 = vmatprep.mubr.f32.mxu0 0.0
      %3080 = vmatmul.mubr.f32.gmra.mrb[0].mxu0 %v2968
      %v3081 = vpop.f32.mrb[0].mxu0
      %v3082 = vadd.f32 0.0, %v3081
      %v3083 = vpop.f32.mrb[0].mxu0
      %3084 = vmatprep.mubr.f32.mxu0 0.0
      %3085 = vmatmul.mubr.f32.gmra.mrb[0].mxu0 %v2970
      %v3086 = vpop.f32.mrb[0].mxu0
      %v3087 = vadd.f32 0.0, %v3086
      %v3088 = vpop.f32.mrb[0].mxu0
      %3089 = vmatprep.mubr.f32.mxu0 0.0
      %3090 = vmatmul.mubr.f32.gmra.mrb[0].mxu0 %v2972
      %v3091 = vpop.f32.mrb[0].mxu0
      %v3092 = vadd.f32 0.0, %v3091
      %v3093 = vpop.f32.mrb[0].mxu0
      %3094 = vmatprep.mubr.f32.mxu0 0.0
      %3095 = vmatmul.mubr.f32.gmra.mrb[0].mxu0 %v2974
      %v3096 = vpop.f32.mrb[0].mxu0
      %v3097 = vadd.f32 0.0, %v3096
      %v3098 = vpop.f32.mrb[0].mxu0
      %3099 = vmatprep.mubr.f32.mxu0 0.0
      %3100 = vmatmul.mubr.f32.gmra.mrb[0].mxu0 %v2976
      %v3101 = vpop.f32.mrb[0].mxu0
      %v3102 = vadd.f32 0.0, %v3101
      %v3103 = vpop.f32.mrb[0].mxu0
      %3104 = vmatprep.mubr.f32.mxu0 0.0
      %3105 = vmatmul.mubr.f32.gmra.mrb[0].mxu0 %v2978
      %v3106 = vpop.f32.mrb[0].mxu0
      %v3107 = vadd.f32 0.0, %v3106
      %v3108 = vpop.f32.mrb[0].mxu0
      %3109 = vmatprep.mubr.f32.mxu0 0.0
      %3110 = vmatmul.mubr.f32.gmra.mrb[0].mxu0 %v2980
      %v3111 = vpop.f32.mrb[0].mxu0
      %v3112 = vadd.f32 0.0, %v3111
      %v3113 = vpop.f32.mrb[0].mxu0
      %3114 = vmatprep.mubr.f32.mxu0 0.0
      %3115 = vmatmul.mubr.f32.gmra.mrb[0].mxu0 %v2982
      %v3116 = vpop.f32.mrb[0].mxu0
      %v3117 = vadd.f32 0.0, %v3116
      %v3118 = vpop.f32.mrb[0].mxu0
      %3119 = vmatprep.mubr.f32.mxu0 0.0
      %3120 = vmatmul.mubr.f32.gmra.mrb[0].mxu0 %v2984
      %v3121 = vpop.f32.mrb[0].mxu0
      %v3122 = vadd.f32 0.0, %v3121
      %v3123 = vpop.f32.mrb[0].mxu0
      %3124 = vmatprep.mubr.f32.mxu0 0.0
      %3125 = vmatmul.mubr.f32.gmra.mrb[0].mxu0 %v2986
      %v3126 = vpop.f32.mrb[0].mxu0
      %v3127 = vadd.f32 0.0, %v3126
      %v3128 = vpop.f32.mrb[0].mxu0
      %3129 = vmatprep.mubr.f32.mxu0 0.0
      %3130 = vmatmul.mubr.f32.gmra.mrb[0].mxu0 %v2988
      %v3131 = vpop.f32.mrb[0].mxu0
      %v3132 = vadd.f32 0.0, %v3131
      %v3133 = vpop.f32.mrb[0].mxu0
      %3134 = vdwg.mxu0
      %v3136 = vsel %vm2957, %v1407, 0
      %v3139 = vsel %vm2957, %v1510, 0
      %v3142 = vsel %vm2957, %v1613, 0
      %v3145 = vsel %vm2957, %v1716, 0
      %v3148 = vsel %vm2957, %v1819, 0
      %v3151 = vsel %vm2957, %v1922, 0
      %v3154 = vsel %vm2957, %v2025, 0
      %v3157 = vsel %vm2957, %v2128, 0
      %v3160 = vsel %vm2957, %v2231, 0
      %v3163 = vsel %vm2957, %v2334, 0
      %v3166 = vsel %vm2957, %v2437, 0
      %v3169 = vsel %vm2957, %v2540, 0
      %v3172 = vsel %vm2957, %v2643, 0
      %v3175 = vsel %vm2957, %v2746, 0
      %v3178 = vsel %vm2957, %v2849, 0
      %v3181 = vsel %vm2957, %v2952, 0
      %3183 = vmatprep.subr.mxu0 0.0
      %3184 = vmatpush1.msra.mxu0 %v2953
      %3185 = vmatprep.subr.mxu0 0.0
      %3186 = vmatpush1.msra.mxu0 %v2954
      %3187 = vmatprep.subr.mxu0 0.0
      %3188 = vmatpush1.msra.mxu0 0.0
      %3189 = vmatprep.subr.mxu0 0.0
      %3190 = vmatpush1.msra.mxu0 0.0
      %3191 = vmatprep.subr.mxu0 0.0
      %3192 = vmatpush1.msra.mxu0 0.0
      %3193 = vmatprep.subr.mxu0 0.0
      %3194 = vmatpush1.msra.mxu0 0.0
      %3195 = vmatprep.subr.mxu0 0.0
      %3196 = vmatpush1.msra.mxu0 0.0
      %3197 = vmatprep.subr.mxu0 0.0
      %3198 = vmatpush1.msra.mxu0 0.0
      %3199 = vmatprep.subr.mxu0 0.0
      %3200 = vmatpush1.msra.mxu0 0.0
      %3201 = vmatprep.subr.mxu0 0.0
      %3202 = vmatpush1.msra.mxu0 0.0
      %3203 = vmatprep.subr.mxu0 0.0
      %3204 = vmatpush1.msra.mxu0 0.0
      %3205 = vmatprep.subr.mxu0 0.0
      %3206 = vmatpush1.msra.mxu0 0.0
      %3207 = vmatprep.subr.mxu0 0.0
      %3208 = vmatpush1.msra.mxu0 0.0
      %3209 = vmatprep.subr.mxu0 0.0
      %3210 = vmatpush1.msra.mxu0 0.0
      %3211 = vmatprep.subr.mxu0 0.0
      %3212 = vmatpush1.msra.mxu0 0.0
      %3213 = vmatprep.subr.mxu0 0.0
      %3214 = vmatpush1.msra.mxu0 0.0
      %3215 = vmatprep.subr.mxu0 0.0
      %3216 = vmatpush1.msra.mxu0 0.0
      %3217 = vmatprep.subr.mxu0 0.0
      %3218 = vmatpush1.msra.mxu0 0.0
      %3219 = vmatprep.subr.mxu0 0.0
      %3220 = vmatpush1.msra.mxu0 0.0
      %3221 = vmatprep.subr.mxu0 0.0
      %3222 = vmatpush1.msra.mxu0 0.0
      %3223 = vmatprep.subr.mxu0 0.0
      %3224 = vmatpush1.msra.mxu0 0.0
      %3225 = vmatprep.subr.mxu0 0.0
      %3226 = vmatpush1.msra.mxu0 0.0
      %3227 = vmatprep.subr.mxu0 0.0
      %3228 = vmatpush1.msra.mxu0 0.0
      %3229 = vmatprep.subr.mxu0 0.0
      %3230 = vmatpush1.msra.mxu0 0.0
      %3231 = vmatprep.subr.mxu0 0.0
      %3232 = vmatpush1.msra.mxu0 0.0
      %3233 = vmatprep.subr.mxu0 0.0
      %3234 = vmatpush1.msra.mxu0 0.0
      %3235 = vmatprep.subr.mxu0 0.0
      %3236 = vmatpush1.msra.mxu0 0.0
      %3237 = vmatprep.subr.mxu0 0.0
      %3238 = vmatpush1.msra.mxu0 0.0
      %3239 = vmatprep.subr.mxu0 0.0
      %3240 = vmatpush1.msra.mxu0 0.0
      %3241 = vmatprep.subr.mxu0 0.0
      %3242 = vmatpush1.msra.mxu0 0.0
      %3243 = vmatprep.subr.mxu0 0.0
      %3244 = vmatpush1.msra.mxu0 0.0
      %3245 = vmatprep.subr.mxu0 0.0
      %3246 = vmatpush1.msra.mxu0 0.0
      %3247 = vmatprep.mubr.f32.mxu0 0.0
      %3248 = vmatmul.mubr.f32.gmra.mrb[0].mxu0 %v3136
      %v3249 = vpop.f32.mrb[0].mxu0
      %v3250 = vadd.f32 %v3057, %v3249
      %v3251 = vpop.f32.mrb[0].mxu0
      %3252 = vmatprep.mubr.f32.mxu0 0.0
      %3253 = vmatmul.mubr.f32.gmra.mrb[0].mxu0 %v3139
      %v3254 = vpop.f32.mrb[0].mxu0
      %v3255 = vadd.f32 %v3062, %v3254
      %v3256 = vpop.f32.mrb[0].mxu0
      %3257 = vmatprep.mubr.f32.mxu0 0.0
      %3258 = vmatmul.mubr.f32.gmra.mrb[0].mxu0 %v3142
      %v3259 = vpop.f32.mrb[0].mxu0
      %v3260 = vadd.f32 %v3067, %v3259
      %v3261 = vpop.f32.mrb[0].mxu0
      %3262 = vmatprep.mubr.f32.mxu0 0.0
      %3263 = vmatmul.mubr.f32.gmra.mrb[0].mxu0 %v3145
      %v3264 = vpop.f32.mrb[0].mxu0
      %v3265 = vadd.f32 %v3072, %v3264
      %v3266 = vpop.f32.mrb[0].mxu0
      %3267 = vmatprep.mubr.f32.mxu0 0.0
      %3268 = vmatmul.mubr.f32.gmra.mrb[0].mxu0 %v3148
      %v3269 = vpop.f32.mrb[0].mxu0
      %v3270 = vadd.f32 %v3077, %v3269
      %v3271 = vpop.f32.mrb[0].mxu0
      %3272 = vmatprep.mubr.f32.mxu0 0.0
      %3273 = vmatmul.mubr.f32.gmra.mrb[0].mxu0 %v3151
      %v3274 = vpop.f32.mrb[0].mxu0
      %v3275 = vadd.f32 %v3082, %v3274
      %v3276 = vpop.f32.mrb[0].mxu0
      %3277 = vmatprep.mubr.f32.mxu0 0.0
      %3278 = vmatmul.mubr.f32.gmra.mrb[0].mxu0 %v3154
      %v3279 = vpop.f32.mrb[0].mxu0
      %v3280 = vadd.f32 %v3087, %v3279
      %v3281 = vpop.f32.mrb[0].mxu0
      %3282 = vmatprep.mubr.f32.mxu0 0.0
      %3283 = vmatmul.mubr.f32.gmra.mrb[0].mxu0 %v3157
      %v3284 = vpop.f32.mrb[0].mxu0
      %v3285 = vadd.f32 %v3092, %v3284
      %v3286 = vpop.f32.mrb[0].mxu0
      %3287 = vmatprep.mubr.f32.mxu0 0.0
      %3288 = vmatmul.mubr.f32.gmra.mrb[0].mxu0 %v3160
      %v3289 = vpop.f32.mrb[0].mxu0
      %v3290 = vadd.f32 %v3097, %v3289
      %v3291 = vpop.f32.mrb[0].mxu0
      %3292 = vmatprep.mubr.f32.mxu0 0.0
      %3293 = vmatmul.mubr.f32.gmra.mrb[0].mxu0 %v3163
      %v3294 = vpop.f32.mrb[0].mxu0
      %v3295 = vadd.f32 %v3102, %v3294
      %v3296 = vpop.f32.mrb[0].mxu0
      %3297 = vmatprep.mubr.f32.mxu0 0.0
      %3298 = vmatmul.mubr.f32.gmra.mrb[0].mxu0 %v3166
      %v3299 = vpop.f32.mrb[0].mxu0
      %v3300 = vadd.f32 %v3107, %v3299
      %v3301 = vpop.f32.mrb[0].mxu0
      %3302 = vmatprep.mubr.f32.mxu0 0.0
      %3303 = vmatmul.mubr.f32.gmra.mrb[0].mxu0 %v3169
      %v3304 = vpop.f32.mrb[0].mxu0
      %v3305 = vadd.f32 %v3112, %v3304
      %v3306 = vpop.f32.mrb[0].mxu0
      %3307 = vmatprep.mubr.f32.mxu0 0.0
      %3308 = vmatmul.mubr.f32.gmra.mrb[0].mxu0 %v3172
      %v3309 = vpop.f32.mrb[0].mxu0
      %v3310 = vadd.f32 %v3117, %v3309
      %v3311 = vpop.f32.mrb[0].mxu0
      %3312 = vmatprep.mubr.f32.mxu0 0.0
      %3313 = vmatmul.mubr.f32.gmra.mrb[0].mxu0 %v3175
      %v3314 = vpop.f32.mrb[0].mxu0
      %v3315 = vadd.f32 %v3122, %v3314
      %v3316 = vpop.f32.mrb[0].mxu0
      %3317 = vmatprep.mubr.f32.mxu0 0.0
      %3318 = vmatmul.mubr.f32.gmra.mrb[0].mxu0 %v3178
      %v3319 = vpop.f32.mrb[0].mxu0
      %v3320 = vadd.f32 %v3127, %v3319
      %v3321 = vpop.f32.mrb[0].mxu0
      %3322 = vmatprep.mubr.f32.mxu0 0.0
      %3323 = vmatmul.mubr.f32.gmra.mrb[0].mxu0 %v3181
      %v3324 = vpop.f32.mrb[0].mxu0
      %v3325 = vadd.f32 %v3132, %v3324
      %v3326 = vpop.f32.mrb[0].mxu0
      %3327 = vdwg.mxu0
      %v3328 = vadd.f32 %v1005, %v3250
      %v3329 = vadd.f32 %v1010, %v3255
      %v3330 = vadd.f32 %v1015, %v3260
      %v3331 = vadd.f32 %v1020, %v3265
      %v3332 = vadd.f32 %v1025, %v3270
      %v3333 = vadd.f32 %v1030, %v3275
      %v3334 = vadd.f32 %v1035, %v3280
      %v3335 = vadd.f32 %v1040, %v3285
      %v3336 = vadd.f32 %v1045, %v3290
      %v3337 = vadd.f32 %v1050, %v3295
      %v3338 = vadd.f32 %v1055, %v3300
      %v3339 = vadd.f32 %v1060, %v3305
      %v3340 = vadd.f32 %v1065, %v3310
      %v3341 = vadd.f32 %v1070, %v3315
      %v3342 = vadd.f32 %v1075, %v3320
      %v3343 = vadd.f32 %v1080, %v3325
      %3360 = vrot.lane.b32.xlu0 %v3250, 32
      %v3361 = vpop.permute.xlu0 %3360
      %3362 = vrot.lane.b32.xlu0 %v3255, 32
      %v3363 = vpop.permute.xlu0 %3362
      %3364 = vrot.lane.b32.xlu0 %v3260, 32
      %v3365 = vpop.permute.xlu0 %3364
      %3366 = vrot.lane.b32.xlu0 %v3265, 32
      %v3367 = vpop.permute.xlu0 %3366
      %3368 = vrot.lane.b32.xlu0 %v3270, 32
      %v3369 = vpop.permute.xlu0 %3368
      %3370 = vrot.lane.b32.xlu0 %v3275, 32
      %v3371 = vpop.permute.xlu0 %3370
      %3372 = vrot.lane.b32.xlu0 %v3280, 32
      %v3373 = vpop.permute.xlu0 %3372
      %3374 = vrot.lane.b32.xlu0 %v3285, 32
      %v3375 = vpop.permute.xlu0 %3374
      %3376 = vrot.lane.b32.xlu0 %v3290, 32
      %v3377 = vpop.permute.xlu0 %3376
      %3378 = vrot.lane.b32.xlu0 %v3295, 32
      %v3379 = vpop.permute.xlu0 %3378
      %3380 = vrot.lane.b32.xlu0 %v3300, 32
      %v3381 = vpop.permute.xlu0 %3380
      %3382 = vrot.lane.b32.xlu0 %v3305, 32
      %v3383 = vpop.permute.xlu0 %3382
      %3384 = vrot.lane.b32.xlu0 %v3310, 32
      %v3385 = vpop.permute.xlu0 %3384
      %3386 = vrot.lane.b32.xlu0 %v3315, 32
      %v3387 = vpop.permute.xlu0 %3386
      %3388 = vrot.lane.b32.xlu0 %v3320, 32
      %v3389 = vpop.permute.xlu0 %3388
      %3390 = vrot.lane.b32.xlu0 %v3325, 32
      %v3391 = vpop.permute.xlu0 %3390
      %v3408 = vadd.f32 %v1005, %v3361
      %v3409 = vadd.f32 %v1010, %v3363
      %v3410 = vadd.f32 %v1015, %v3365
      %v3411 = vadd.f32 %v1020, %v3367
      %v3412 = vadd.f32 %v1025, %v3369
      %v3413 = vadd.f32 %v1030, %v3371
      %v3414 = vadd.f32 %v1035, %v3373
      %v3415 = vadd.f32 %v1040, %v3375
      %v3416 = vadd.f32 %v1045, %v3377
      %v3417 = vadd.f32 %v1050, %v3379
      %v3418 = vadd.f32 %v1055, %v3381
      %v3419 = vadd.f32 %v1060, %v3383
      %v3420 = vadd.f32 %v1065, %v3385
      %v3421 = vadd.f32 %v1070, %v3387
      %v3422 = vadd.f32 %v1075, %v3389
      %v3423 = vadd.f32 %v1080, %v3391
      %v3424 = vmul.f32 %v804, %v3328
      %v3425 = vmul.f32 %v809, %v3329
      %v3426 = vmul.f32 %v814, %v3330
      %v3427 = vmul.f32 %v819, %v3331
      %v3428 = vmul.f32 %v824, %v3332
      %v3429 = vmul.f32 %v829, %v3333
      %v3430 = vmul.f32 %v834, %v3334
      %v3431 = vmul.f32 %v839, %v3335
      %v3432 = vmul.f32 %v844, %v3336
      %v3433 = vmul.f32 %v849, %v3337
      %v3434 = vmul.f32 %v854, %v3338
      %v3435 = vmul.f32 %v859, %v3339
      %v3436 = vmul.f32 %v864, %v3340
      %v3437 = vmul.f32 %v869, %v3341
      %v3438 = vmul.f32 %v874, %v3342
      %v3439 = vmul.f32 %v879, %v3343
      %v3440 = vld [vmem:[%s10] sm:$0xff]
      %v3441 = vld [vmem:[%s10 + $0x8] sm:$0xff]
      %v3442 = vld [vmem:[%s10 + $0x10] sm:$0xff]
      %v3443 = vld [vmem:[%s10 + $0x18] sm:$0xff]
      %vm3444 = vcmask 261120
      %v3446 = vsel %vm3444, %v3424, 0
      %v3449 = vsel %vm3444, %v3425, 0
      %v3452 = vsel %vm3444, %v3426, 0
      %v3455 = vsel %vm3444, %v3427, 0
      %v3458 = vsel %vm3444, %v3428, 0
      %v3461 = vsel %vm3444, %v3429, 0
      %v3464 = vsel %vm3444, %v3430, 0
      %v3467 = vsel %vm3444, %v3431, 0
      %v3470 = vsel %vm3444, %v3432, 0
      %v3473 = vsel %vm3444, %v3433, 0
      %v3476 = vsel %vm3444, %v3434, 0
      %v3479 = vsel %vm3444, %v3435, 0
      %v3482 = vsel %vm3444, %v3436, 0
      %v3485 = vsel %vm3444, %v3437, 0
      %v3488 = vsel %vm3444, %v3438, 0
      %v3491 = vsel %vm3444, %v3439, 0
      %3493 = vmatprep.subr.mxu0 0.0
      %3494 = vmatpush1.msra.mxu0 %v3440
      %3495 = vmatprep.subr.mxu0 0.0
      %3496 = vmatpush1.msra.mxu0 %v3441
      %3497 = vmatprep.subr.mxu0 0.0
      %3498 = vmatpush1.msra.mxu0 %v3442
      %3499 = vmatprep.subr.mxu0 0.0
      %3500 = vmatpush1.msra.mxu0 %v3443
      %3501 = vmatprep.subr.mxu0 0.0
      %3502 = vmatpush1.msra.mxu0 0.0
      %3503 = vmatprep.subr.mxu0 0.0
      %3504 = vmatpush1.msra.mxu0 0.0
      %3505 = vmatprep.subr.mxu0 0.0
      %3506 = vmatpush1.msra.mxu0 0.0
      %3507 = vmatprep.subr.mxu0 0.0
      %3508 = vmatpush1.msra.mxu0 0.0
      %3509 = vmatprep.subr.mxu0 0.0
      %3510 = vmatpush1.msra.mxu0 0.0
      %3511 = vmatprep.subr.mxu0 0.0
      %3512 = vmatpush1.msra.mxu0 0.0
      %3513 = vmatprep.subr.mxu0 0.0
      %3514 = vmatpush1.msra.mxu0 0.0
      %3515 = vmatprep.subr.mxu0 0.0
      %3516 = vmatpush1.msra.mxu0 0.0
      %3517 = vmatprep.subr.mxu0 0.0
      %3518 = vmatpush1.msra.mxu0 0.0
      %3519 = vmatprep.subr.mxu0 0.0
      %3520 = vmatpush1.msra.mxu0 0.0
      %3521 = vmatprep.subr.mxu0 0.0
      %3522 = vmatpush1.msra.mxu0 0.0
      %3523 = vmatprep.subr.mxu0 0.0
      %3524 = vmatpush1.msra.mxu0 0.0
      %3525 = vmatprep.subr.mxu0 0.0
      %3526 = vmatpush1.msra.mxu0 0.0
      %3527 = vmatprep.subr.mxu0 0.0
      %3528 = vmatpush1.msra.mxu0 0.0
      %3529 = vmatprep.subr.mxu0 0.0
      %3530 = vmatpush1.msra.mxu0 0.0
      %3531 = vmatprep.subr.mxu0 0.0
      %3532 = vmatpush1.msra.mxu0 0.0
      %3533 = vmatprep.subr.mxu0 0.0
      %3534 = vmatpush1.msra.mxu0 0.0
      %3535 = vmatprep.subr.mxu0 0.0
      %3536 = vmatpush1.msra.mxu0 0.0
      %3537 = vmatprep.subr.mxu0 0.0
      %3538 = vmatpush1.msra.mxu0 0.0
      %3539 = vmatprep.subr.mxu0 0.0
      %3540 = vmatpush1.msra.mxu0 0.0
      %3541 = vmatprep.subr.mxu0 0.0
      %3542 = vmatpush1.msra.mxu0 0.0
      %3543 = vmatprep.subr.mxu0 0.0
      %3544 = vmatpush1.msra.mxu0 0.0
      %3545 = vmatprep.subr.mxu0 0.0
      %3546 = vmatpush1.msra.mxu0 0.0
      %3547 = vmatprep.subr.mxu0 0.0
      %3548 = vmatpush1.msra.mxu0 0.0
      %3549 = vmatprep.subr.mxu0 0.0
      %3550 = vmatpush1.msra.mxu0 0.0
      %3551 = vmatprep.subr.mxu0 0.0
      %3552 = vmatpush1.msra.mxu0 0.0
      %3553 = vmatprep.subr.mxu0 0.0
      %3554 = vmatpush1.msra.mxu0 0.0
      %3555 = vmatprep.subr.mxu0 0.0
      %3556 = vmatpush1.msra.mxu0 0.0
      %3557 = vmatprep.mubr.f32.mxu0 0.0
      %3558 = vmatmul.mubr.f32.gmra.mrb[0].mxu0 %v3446
      %v3559 = vpop.f32.mrb[0].mxu0
      %v3560 = vadd.f32 0.0, %v3559
      %v3561 = vpop.f32.mrb[0].mxu0
      %3562 = vmatprep.mubr.f32.mxu0 0.0
      %3563 = vmatmul.mubr.f32.gmra.mrb[0].mxu0 %v3449
      %v3564 = vpop.f32.mrb[0].mxu0
      %v3565 = vadd.f32 0.0, %v3564
      %v3566 = vpop.f32.mrb[0].mxu0
      %3567 = vmatprep.mubr.f32.mxu0 0.0
      %3568 = vmatmul.mubr.f32.gmra.mrb[0].mxu0 %v3452
      %v3569 = vpop.f32.mrb[0].mxu0
      %v3570 = vadd.f32 0.0, %v3569
      %v3571 = vpop.f32.mrb[0].mxu0
      %3572 = vmatprep.mubr.f32.mxu0 0.0
      %3573 = vmatmul.mubr.f32.gmra.mrb[0].mxu0 %v3455
      %v3574 = vpop.f32.mrb[0].mxu0
      %v3575 = vadd.f32 0.0, %v3574
      %v3576 = vpop.f32.mrb[0].mxu0
      %3577 = vmatprep.mubr.f32.mxu0 0.0
      %3578 = vmatmul.mubr.f32.gmra.mrb[0].mxu0 %v3458
      %v3579 = vpop.f32.mrb[0].mxu0
      %v3580 = vadd.f32 0.0, %v3579
      %v3581 = vpop.f32.mrb[0].mxu0
      %3582 = vmatprep.mubr.f32.mxu0 0.0
      %3583 = vmatmul.mubr.f32.gmra.mrb[0].mxu0 %v3461
      %v3584 = vpop.f32.mrb[0].mxu0
      %v3585 = vadd.f32 0.0, %v3584
      %v3586 = vpop.f32.mrb[0].mxu0
      %3587 = vmatprep.mubr.f32.mxu0 0.0
      %3588 = vmatmul.mubr.f32.gmra.mrb[0].mxu0 %v3464
      %v3589 = vpop.f32.mrb[0].mxu0
      %v3590 = vadd.f32 0.0, %v3589
      %v3591 = vpop.f32.mrb[0].mxu0
      %3592 = vmatprep.mubr.f32.mxu0 0.0
      %3593 = vmatmul.mubr.f32.gmra.mrb[0].mxu0 %v3467
      %v3594 = vpop.f32.mrb[0].mxu0
      %v3595 = vadd.f32 0.0, %v3594
      %v3596 = vpop.f32.mrb[0].mxu0
      %3597 = vmatprep.mubr.f32.mxu0 0.0
      %3598 = vmatmul.mubr.f32.gmra.mrb[0].mxu0 %v3470
      %v3599 = vpop.f32.mrb[0].mxu0
      %v3600 = vadd.f32 0.0, %v3599
      %v3601 = vpop.f32.mrb[0].mxu0
      %3602 = vmatprep.mubr.f32.mxu0 0.0
      %3603 = vmatmul.mubr.f32.gmra.mrb[0].mxu0 %v3473
      %v3604 = vpop.f32.mrb[0].mxu0
      %v3605 = vadd.f32 0.0, %v3604
      %v3606 = vpop.f32.mrb[0].mxu0
      %3607 = vmatprep.mubr.f32.mxu0 0.0
      %3608 = vmatmul.mubr.f32.gmra.mrb[0].mxu0 %v3476
      %v3609 = vpop.f32.mrb[0].mxu0
      %v3610 = vadd.f32 0.0, %v3609
      %v3611 = vpop.f32.mrb[0].mxu0
      %3612 = vmatprep.mubr.f32.mxu0 0.0
      %3613 = vmatmul.mubr.f32.gmra.mrb[0].mxu0 %v3479
      %v3614 = vpop.f32.mrb[0].mxu0
      %v3615 = vadd.f32 0.0, %v3614
      %v3616 = vpop.f32.mrb[0].mxu0
      %3617 = vmatprep.mubr.f32.mxu0 0.0
      %3618 = vmatmul.mubr.f32.gmra.mrb[0].mxu0 %v3482
      %v3619 = vpop.f32.mrb[0].mxu0
      %v3620 = vadd.f32 0.0, %v3619
      %v3621 = vpop.f32.mrb[0].mxu0
      %3622 = vmatprep.mubr.f32.mxu0 0.0
      %3623 = vmatmul.mubr.f32.gmra.mrb[0].mxu0 %v3485
      %v3624 = vpop.f32.mrb[0].mxu0
      %v3625 = vadd.f32 0.0, %v3624
      %v3626 = vpop.f32.mrb[0].mxu0
      %3627 = vmatprep.mubr.f32.mxu0 0.0
      %3628 = vmatmul.mubr.f32.gmra.mrb[0].mxu0 %v3488
      %v3629 = vpop.f32.mrb[0].mxu0
      %v3630 = vadd.f32 0.0, %v3629
      %v3631 = vpop.f32.mrb[0].mxu0
      %3632 = vmatprep.mubr.f32.mxu0 0.0
      %3633 = vmatmul.mubr.f32.gmra.mrb[0].mxu0 %v3491
      %v3634 = vpop.f32.mrb[0].mxu0
      %v3635 = vadd.f32 0.0, %v3634
      %v3636 = vpop.f32.mrb[0].mxu0
      %3637 = vdwg.mxu0
      %v3638 = vmul.f32 %v3560, 0.25
      %v3639 = vmul.f32 %v3565, 0.25
      %v3640 = vmul.f32 %v3570, 0.25
      %v3641 = vmul.f32 %v3575, 0.25
      %v3642 = vmul.f32 %v3580, 0.25
      %v3643 = vmul.f32 %v3585, 0.25
      %v3644 = vmul.f32 %v3590, 0.25
      %v3645 = vmul.f32 %v3595, 0.25
      %v3646 = vmul.f32 %v3600, 0.25
      %v3647 = vmul.f32 %v3605, 0.25
      %v3648 = vmul.f32 %v3610, 0.25
      %v3649 = vmul.f32 %v3615, 0.25
      %v3650 = vmul.f32 %v3620, 0.25
      %v3651 = vmul.f32 %v3625, 0.25
      %v3652 = vmul.f32 %v3630, 0.25
      %v3653 = vmul.f32 %v3635, 0.25
      %3655 = vset.pattern.permute.xlu0 0
      %3656 = vperm.xlu0 %3655, %v3638
      %v3657 = vpop.permute.xlu0 %3656
      %3660 = vset.pattern.permute.xlu0 0
      %3661 = vperm.xlu0 %3660, %v3639
      %v3662 = vpop.permute.xlu0 %3661
      %3665 = vset.pattern.permute.xlu0 0
      %3666 = vperm.xlu0 %3665, %v3640
      %v3667 = vpop.permute.xlu0 %3666
      %3670 = vset.pattern.permute.xlu0 0
      %3671 = vperm.xlu0 %3670, %v3641
      %v3672 = vpop.permute.xlu0 %3671
      %3675 = vset.pattern.permute.xlu0 0
      %3676 = vperm.xlu0 %3675, %v3642
      %v3677 = vpop.permute.xlu0 %3676
      %3680 = vset.pattern.permute.xlu0 0
      %3681 = vperm.xlu0 %3680, %v3643
      %v3682 = vpop.permute.xlu0 %3681
      %3685 = vset.pattern.permute.xlu0 0
      %3686 = vperm.xlu0 %3685, %v3644
      %v3687 = vpop.permute.xlu0 %3686
      %3690 = vset.pattern.permute.xlu0 0
      %3691 = vperm.xlu0 %3690, %v3645
      %v3692 = vpop.permute.xlu0 %3691
      %3695 = vset.pattern.permute.xlu0 0
      %3696 = vperm.xlu0 %3695, %v3646
      %v3697 = vpop.permute.xlu0 %3696
      %3700 = vset.pattern.permute.xlu0 0
      %3701 = vperm.xlu0 %3700, %v3647
      %v3702 = vpop.permute.xlu0 %3701
      %3705 = vset.pattern.permute.xlu0 0
      %3706 = vperm.xlu0 %3705, %v3648
      %v3707 = vpop.permute.xlu0 %3706
      %3710 = vset.pattern.permute.xlu0 0
      %3711 = vperm.xlu0 %3710, %v3649
      %v3712 = vpop.permute.xlu0 %3711
      %3715 = vset.pattern.permute.xlu0 0
      %3716 = vperm.xlu0 %3715, %v3650
      %v3717 = vpop.permute.xlu0 %3716
      %3720 = vset.pattern.permute.xlu0 0
      %3721 = vperm.xlu0 %3720, %v3651
      %v3722 = vpop.permute.xlu0 %3721
      %3725 = vset.pattern.permute.xlu0 0
      %3726 = vperm.xlu0 %3725, %v3652
      %v3727 = vpop.permute.xlu0 %3726
      %3730 = vset.pattern.permute.xlu0 0
      %3731 = vperm.xlu0 %3730, %v3653
      %v3732 = vpop.permute.xlu0 %3731
      %v3734 = vsel %vm562, %v3657, -1e+30
      %v3735 = vsel %vm563, %v3662, -1e+30
      %v3736 = vsel %vm564, %v3667, -1e+30
      %v3737 = vsel %vm565, %v3672, -1e+30
      %v3738 = vsel %vm566, %v3677, -1e+30
      %v3739 = vsel %vm567, %v3682, -1e+30
      %v3740 = vsel %vm568, %v3687, -1e+30
      %v3741 = vsel %vm569, %v3692, -1e+30
      %v3742 = vsel %vm570, %v3697, -1e+30
      %v3743 = vsel %vm571, %v3702, -1e+30
      %v3744 = vsel %vm572, %v3707, -1e+30
      %v3745 = vsel %vm573, %v3712, -1e+30
      %v3746 = vsel %vm574, %v3717, -1e+30
      %v3747 = vsel %vm575, %v3722, -1e+30
      %v3748 = vsel %vm576, %v3727, -1e+30
      %v3749 = vsel %vm577, %v3732, -1e+30
      %v3750 = vsel %vm688, %v3734, -inf
      %v3751 = vsel %vm688, %v3735, -inf
      %v3752 = vsel %vm688, %v3736, -inf
      %v3753 = vsel %vm688, %v3737, -inf
      %v3754 = vsel %vm688, %v3738, -inf
      %v3755 = vmax.f32 %v3750, %v3754
      %v3756 = vsel %vm688, %v3739, -inf
      %v3757 = vmax.f32 %v3751, %v3756
      %v3758 = vsel %vm688, %v3740, -inf
      %v3759 = vmax.f32 %v3752, %v3758
      %v3760 = vsel %vm688, %v3741, -inf
      %v3761 = vmax.f32 %v3753, %v3760
      %v3762 = vsel %vm688, %v3742, -inf
      %v3763 = vmax.f32 %v3755, %v3762
      %v3764 = vsel %vm688, %v3743, -inf
      %v3765 = vmax.f32 %v3757, %v3764
      %v3766 = vsel %vm688, %v3744, -inf
      %v3767 = vmax.f32 %v3759, %v3766
      %v3768 = vsel %vm688, %v3745, -inf
      %v3769 = vmax.f32 %v3761, %v3768
      %v3770 = vsel %vm688, %v3746, -inf
      %v3771 = vmax.f32 %v3763, %v3770
      %v3772 = vsel %vm688, %v3747, -inf
      %v3773 = vmax.f32 %v3765, %v3772
      %v3774 = vsel %vm688, %v3748, -inf
      %v3775 = vmax.f32 %v3767, %v3774
      %v3776 = vsel %vm688, %v3749, -inf
      %v3777 = vmax.f32 %v3769, %v3776
      %v3778 = vmax.f32 %v3771, %v3773
      %v3779 = vmax.f32 %v3775, %v3777
      %v3780 = vmax.f32 %v3778, %v3779
      %v3781 = vrot.slane %v3780, 4
      %v3782 = vmax.f32 %v3780, %v3781
      %v3783 = vrot.slane %v3782, 2
      %v3784 = vmax.f32 %v3782, %v3783
      %v3785 = vrot.slane %v3784, 1
      %v3786 = vmax.f32 %v3784, %v3785
      %v3787 = vsel %vm562, %v3786, 0.0
      %v3788 = vsel %vm563, %v3786, 0.0
      %v3789 = vsel %vm564, %v3786, 0.0
      %v3790 = vsel %vm565, %v3786, 0.0
      %v3791 = vsel %vm566, %v3786, 0.0
      %v3792 = vsel %vm567, %v3786, 0.0
      %v3793 = vsel %vm568, %v3786, 0.0
      %v3794 = vsel %vm569, %v3786, 0.0
      %v3795 = vsel %vm570, %v3786, 0.0
      %v3796 = vsel %vm571, %v3786, 0.0
      %v3797 = vsel %vm572, %v3786, 0.0
      %v3798 = vsel %vm573, %v3786, 0.0
      %v3799 = vsel %vm574, %v3786, 0.0
      %v3800 = vsel %vm575, %v3786, 0.0
      %v3801 = vsel %vm576, %v3786, 0.0
      %v3802 = vsel %vm577, %v3786, 0.0
      %v3803 = vsel %vm688, %v3787, 0.0
      %3804 = vadd.xlane.f32.xlu0 %v3803
      %v3805 = vpop.xlane.xlu0 %3804
      %v3806 = vsel %vm688, %v3788, 0.0
      %3807 = vadd.xlane.f32.xlu0 %v3806
      %v3808 = vpop.xlane.xlu0 %3807
      %v3809 = vsel %vm688, %v3789, 0.0
      %3810 = vadd.xlane.f32.xlu0 %v3809
      %v3811 = vpop.xlane.xlu0 %3810
      %v3812 = vsel %vm688, %v3790, 0.0
      %3813 = vadd.xlane.f32.xlu0 %v3812
      %v3814 = vpop.xlane.xlu0 %3813
      %v3815 = vsel %vm688, %v3791, 0.0
      %3816 = vadd.xlane.f32.xlu0 %v3815
      %v3817 = vpop.xlane.xlu0 %3816
      %v3818 = vsel %vm688, %v3792, 0.0
      %3819 = vadd.xlane.f32.xlu0 %v3818
      %v3820 = vpop.xlane.xlu0 %3819
      %v3821 = vsel %vm688, %v3793, 0.0
      %3822 = vadd.xlane.f32.xlu0 %v3821
      %v3823 = vpop.xlane.xlu0 %3822
      %v3824 = vsel %vm688, %v3794, 0.0
      %3825 = vadd.xlane.f32.xlu0 %v3824
      %v3826 = vpop.xlane.xlu0 %3825
      %v3827 = vsel %vm688, %v3795, 0.0
      %3828 = vadd.xlane.f32.xlu0 %v3827
      %v3829 = vpop.xlane.xlu0 %3828
      %v3830 = vsel %vm688, %v3796, 0.0
      %3831 = vadd.xlane.f32.xlu0 %v3830
      %v3832 = vpop.xlane.xlu0 %3831
      %v3833 = vsel %vm688, %v3797, 0.0
      %3834 = vadd.xlane.f32.xlu0 %v3833
      %v3835 = vpop.xlane.xlu0 %3834
      %v3836 = vsel %vm688, %v3798, 0.0
      %3837 = vadd.xlane.f32.xlu0 %v3836
      %v3838 = vpop.xlane.xlu0 %3837
      %v3839 = vsel %vm688, %v3799, 0.0
      %3840 = vadd.xlane.f32.xlu0 %v3839
      %v3841 = vpop.xlane.xlu0 %3840
      %v3842 = vsel %vm688, %v3800, 0.0
      %3843 = vadd.xlane.f32.xlu0 %v3842
      %v3844 = vpop.xlane.xlu0 %3843
      %v3845 = vsel %vm688, %v3801, 0.0
      %3846 = vadd.xlane.f32.xlu0 %v3845
      %v3847 = vpop.xlane.xlu0 %3846
      %v3848 = vsel %vm688, %v3802, 0.0
      %3849 = vadd.xlane.f32.xlu0 %v3848
      %v3850 = vpop.xlane.xlu0 %3849
      %3851 = vset.pattern.permute.xlu0 1
      %3852 = vperm.xlu0 %3851, %v3638
      %v3853 = vpop.permute.xlu0 %3852
      %3855 = vset.pattern.permute.xlu0 1
      %3856 = vperm.xlu0 %3855, %v3639
      %v3857 = vpop.permute.xlu0 %3856
      %3859 = vset.pattern.permute.xlu0 1
      %3860 = vperm.xlu0 %3859, %v3640
      %v3861 = vpop.permute.xlu0 %3860
      %3863 = vset.pattern.permute.xlu0 1
      %3864 = vperm.xlu0 %3863, %v3641
      %v3865 = vpop.permute.xlu0 %3864
      %3867 = vset.pattern.permute.xlu0 1
      %3868 = vperm.xlu0 %3867, %v3642
      %v3869 = vpop.permute.xlu0 %3868
      %3871 = vset.pattern.permute.xlu0 1
      %3872 = vperm.xlu0 %3871, %v3643
      %v3873 = vpop.permute.xlu0 %3872
      %3875 = vset.pattern.permute.xlu0 1
      %3876 = vperm.xlu0 %3875, %v3644
      %v3877 = vpop.permute.xlu0 %3876
      %3879 = vset.pattern.permute.xlu0 1
      %3880 = vperm.xlu0 %3879, %v3645
      %v3881 = vpop.permute.xlu0 %3880
      %3883 = vset.pattern.permute.xlu0 1
      %3884 = vperm.xlu0 %3883, %v3646
      %v3885 = vpop.permute.xlu0 %3884
      %3887 = vset.pattern.permute.xlu0 1
      %3888 = vperm.xlu0 %3887, %v3647
      %v3889 = vpop.permute.xlu0 %3888
      %3891 = vset.pattern.permute.xlu0 1
      %3892 = vperm.xlu0 %3891, %v3648
      %v3893 = vpop.permute.xlu0 %3892
      %3895 = vset.pattern.permute.xlu0 1
      %3896 = vperm.xlu0 %3895, %v3649
      %v3897 = vpop.permute.xlu0 %3896
      %3899 = vset.pattern.permute.xlu0 1
      %3900 = vperm.xlu0 %3899, %v3650
      %v3901 = vpop.permute.xlu0 %3900
      %3903 = vset.pattern.permute.xlu0 1
      %3904 = vperm.xlu0 %3903, %v3651
      %v3905 = vpop.permute.xlu0 %3904
      %3907 = vset.pattern.permute.xlu0 1
      %3908 = vperm.xlu0 %3907, %v3652
      %v3909 = vpop.permute.xlu0 %3908
      %3911 = vset.pattern.permute.xlu0 1
      %3912 = vperm.xlu0 %3911, %v3653
      %v3913 = vpop.permute.xlu0 %3912
      %v3915 = vsel %vm562, %v3853, -1e+30
      %v3916 = vsel %vm563, %v3857, -1e+30
      %v3917 = vsel %vm564, %v3861, -1e+30
      %v3918 = vsel %vm565, %v3865, -1e+30
      %v3919 = vsel %vm566, %v3869, -1e+30
      %v3920 = vsel %vm567, %v3873, -1e+30
      %v3921 = vsel %vm568, %v3877, -1e+30
      %v3922 = vsel %vm569, %v3881, -1e+30
      %v3923 = vsel %vm570, %v3885, -1e+30
      %v3924 = vsel %vm571, %v3889, -1e+30
      %v3925 = vsel %vm572, %v3893, -1e+30
      %v3926 = vsel %vm573, %v3897, -1e+30
      %v3927 = vsel %vm574, %v3901, -1e+30
      %v3928 = vsel %vm575, %v3905, -1e+30
      %v3929 = vsel %vm576, %v3909, -1e+30
      %v3930 = vsel %vm577, %v3913, -1e+30
      %v3931 = vsel %vm688, %v3915, -inf
      %v3932 = vsel %vm688, %v3916, -inf
      %v3933 = vsel %vm688, %v3917, -inf
      %v3934 = vsel %vm688, %v3918, -inf
      %v3935 = vsel %vm688, %v3919, -inf
      %v3936 = vmax.f32 %v3931, %v3935
      %v3937 = vsel %vm688, %v3920, -inf
      %v3938 = vmax.f32 %v3932, %v3937
      %v3939 = vsel %vm688, %v3921, -inf
      %v3940 = vmax.f32 %v3933, %v3939
      %v3941 = vsel %vm688, %v3922, -inf
      %v3942 = vmax.f32 %v3934, %v3941
      %v3943 = vsel %vm688, %v3923, -inf
      %v3944 = vmax.f32 %v3936, %v3943
      %v3945 = vsel %vm688, %v3924, -inf
      %v3946 = vmax.f32 %v3938, %v3945
      %v3947 = vsel %vm688, %v3925, -inf
      %v3948 = vmax.f32 %v3940, %v3947
      %v3949 = vsel %vm688, %v3926, -inf
      %v3950 = vmax.f32 %v3942, %v3949
      %v3951 = vsel %vm688, %v3927, -inf
      %v3952 = vmax.f32 %v3944, %v3951
      %v3953 = vsel %vm688, %v3928, -inf
      %v3954 = vmax.f32 %v3946, %v3953
      %v3955 = vsel %vm688, %v3929, -inf
      %v3956 = vmax.f32 %v3948, %v3955
      %v3957 = vsel %vm688, %v3930, -inf
      %v3958 = vmax.f32 %v3950, %v3957
      %v3959 = vmax.f32 %v3952, %v3954
      %v3960 = vmax.f32 %v3956, %v3958
      %v3961 = vmax.f32 %v3959, %v3960
      %v3962 = vrot.slane %v3961, 4
      %v3963 = vmax.f32 %v3961, %v3962
      %v3964 = vrot.slane %v3963, 2
      %v3965 = vmax.f32 %v3963, %v3964
      %v3966 = vrot.slane %v3965, 1
      %v3967 = vmax.f32 %v3965, %v3966
      %v3968 = vsel %vm562, %v3967, 0.0
      %v3969 = vsel %vm563, %v3967, 0.0
      %v3970 = vsel %vm564, %v3967, 0.0
      %v3971 = vsel %vm565, %v3967, 0.0
      %v3972 = vsel %vm566, %v3967, 0.0
      %v3973 = vsel %vm567, %v3967, 0.0
      %v3974 = vsel %vm568, %v3967, 0.0
      %v3975 = vsel %vm569, %v3967, 0.0
      %v3976 = vsel %vm570, %v3967, 0.0
      %v3977 = vsel %vm571, %v3967, 0.0
      %v3978 = vsel %vm572, %v3967, 0.0
      %v3979 = vsel %vm573, %v3967, 0.0
      %v3980 = vsel %vm574, %v3967, 0.0
      %v3981 = vsel %vm575, %v3967, 0.0
      %v3982 = vsel %vm576, %v3967, 0.0
      %v3983 = vsel %vm577, %v3967, 0.0
      %v3984 = vsel %vm688, %v3968, 0.0
      %3985 = vadd.xlane.f32.xlu0 %v3984
      %v3986 = vpop.xlane.xlu0 %3985
      %v3987 = vsel %vm688, %v3969, 0.0
      %3988 = vadd.xlane.f32.xlu0 %v3987
      %v3989 = vpop.xlane.xlu0 %3988
      %v3990 = vsel %vm688, %v3970, 0.0
      %3991 = vadd.xlane.f32.xlu0 %v3990
      %v3992 = vpop.xlane.xlu0 %3991
      %v3993 = vsel %vm688, %v3971, 0.0
      %3994 = vadd.xlane.f32.xlu0 %v3993
      %v3995 = vpop.xlane.xlu0 %3994
      %v3996 = vsel %vm688, %v3972, 0.0
      %3997 = vadd.xlane.f32.xlu0 %v3996
      %v3998 = vpop.xlane.xlu0 %3997
      %v3999 = vsel %vm688, %v3973, 0.0
      %4000 = vadd.xlane.f32.xlu0 %v3999
      %v4001 = vpop.xlane.xlu0 %4000
      %v4002 = vsel %vm688, %v3974, 0.0
      %4003 = vadd.xlane.f32.xlu0 %v4002
      %v4004 = vpop.xlane.xlu0 %4003
      %v4005 = vsel %vm688, %v3975, 0.0
      %4006 = vadd.xlane.f32.xlu0 %v4005
      %v4007 = vpop.xlane.xlu0 %4006
      %v4008 = vsel %vm688, %v3976, 0.0
      %4009 = vadd.xlane.f32.xlu0 %v4008
      %v4010 = vpop.xlane.xlu0 %4009
      %v4011 = vsel %vm688, %v3977, 0.0
      %4012 = vadd.xlane.f32.xlu0 %v4011
      %v4013 = vpop.xlane.xlu0 %4012
      %v4014 = vsel %vm688, %v3978, 0.0
      %4015 = vadd.xlane.f32.xlu0 %v4014
      %v4016 = vpop.xlane.xlu0 %4015
      %v4017 = vsel %vm688, %v3979, 0.0
      %4018 = vadd.xlane.f32.xlu0 %v4017
      %v4019 = vpop.xlane.xlu0 %4018
      %v4020 = vsel %vm688, %v3980, 0.0
      %4021 = vadd.xlane.f32.xlu0 %v4020
      %v4022 = vpop.xlane.xlu0 %4021
      %v4023 = vsel %vm688, %v3981, 0.0
      %4024 = vadd.xlane.f32.xlu0 %v4023
      %v4025 = vpop.xlane.xlu0 %4024
      %v4026 = vsel %vm688, %v3982, 0.0
      %4027 = vadd.xlane.f32.xlu0 %v4026
      %v4028 = vpop.xlane.xlu0 %4027
      %v4029 = vsel %vm688, %v3983, 0.0
      %4030 = vadd.xlane.f32.xlu0 %v4029
      %v4031 = vpop.xlane.xlu0 %4030
      %vm4032 = vcmask 1040384
      %v4033 = vsel %vm4032, %v3786, %v3967
      %vm4034 = vcmask 7168
      %v4035 = vsel %vm4034, %v3805, %v3986
      %v4036 = vsel %vm4034, %v3808, %v3989
      %v4037 = vsel %vm4034, %v3811, %v3992
      %v4038 = vsel %vm4034, %v3814, %v3995
      %v4039 = vsel %vm4034, %v3817, %v3998
      %v4040 = vsel %vm4034, %v3820, %v4001
      %v4041 = vsel %vm4034, %v3823, %v4004
      %v4042 = vsel %vm4034, %v3826, %v4007
      %v4043 = vsel %vm4034, %v3829, %v4010
      %v4044 = vsel %vm4034, %v3832, %v4013
      %v4045 = vsel %vm4034, %v3835, %v4016
      %v4046 = vsel %vm4034, %v3838, %v4019
      %v4047 = vsel %vm4034, %v3841, %v4022
      %v4048 = vsel %vm4034, %v3844, %v4025
      %v4049 = vsel %vm4034, %v3847, %v4028
      %v4050 = vsel %vm4034, %v3850, %v4031
      %v4051 = vsub.f32 %v3638, %v4035
      %v4052 = vsub.f32 %v3639, %v4036
      %v4053 = vsub.f32 %v3640, %v4037
      %v4054 = vsub.f32 %v3641, %v4038
      %v4055 = vsub.f32 %v3642, %v4039
      %v4056 = vsub.f32 %v3643, %v4040
      %v4057 = vsub.f32 %v3644, %v4041
      %v4058 = vsub.f32 %v3645, %v4042
      %v4059 = vsub.f32 %v3646, %v4043
      %v4060 = vsub.f32 %v3647, %v4044
      %v4061 = vsub.f32 %v3648, %v4045
      %v4062 = vsub.f32 %v3649, %v4046
      %v4063 = vsub.f32 %v3650, %v4047
      %v4064 = vsub.f32 %v3651, %v4048
      %v4065 = vsub.f32 %v3652, %v4049
      %v4066 = vsub.f32 %v3653, %v4050
      %v4067 = vmul.f32 %v4051, 1.442695
      %v4068 = vpow.pop %v4067
      %v4069 = vmul.f32 %v4052, 1.442695
      %v4070 = vpow.pop %v4069
      %v4071 = vmul.f32 %v4053, 1.442695
      %v4072 = vpow.pop %v4071
      %v4073 = vmul.f32 %v4054, 1.442695
      %v4074 = vpow.pop %v4073
      %v4075 = vmul.f32 %v4055, 1.442695
      %v4076 = vpow.pop %v4075
      %v4077 = vmul.f32 %v4056, 1.442695
      %v4078 = vpow.pop %v4077
      %v4079 = vmul.f32 %v4057, 1.442695
      %v4080 = vpow.pop %v4079
      %v4081 = vmul.f32 %v4058, 1.442695
      %v4082 = vpow.pop %v4081
      %v4083 = vmul.f32 %v4059, 1.442695
      %v4084 = vpow.pop %v4083
      %v4085 = vmul.f32 %v4060, 1.442695
      %v4086 = vpow.pop %v4085
      %v4087 = vmul.f32 %v4061, 1.442695
      %v4088 = vpow.pop %v4087
      %v4089 = vmul.f32 %v4062, 1.442695
      %v4090 = vpow.pop %v4089
      %v4091 = vmul.f32 %v4063, 1.442695
      %v4092 = vpow.pop %v4091
      %v4093 = vmul.f32 %v4064, 1.442695
      %v4094 = vpow.pop %v4093
      %v4095 = vmul.f32 %v4065, 1.442695
      %v4096 = vpow.pop %v4095
      %v4097 = vmul.f32 %v4066, 1.442695
      %v4098 = vpow.pop %v4097
      %vm4099 = vcmp.lt.s32.totalorder %v449, 16
      %v4100 = vsel %vm4099, 1, 0
      %vm4101 = vcmp.eq.s32.totalorder %v4100, 1
      %4103 = vset.pattern.permute.xlu0 0
      %4104 = vperm.xlu0 %4103, %v4068
      %v4105 = vpop.permute.xlu0 %4104
      %4108 = vset.pattern.permute.xlu0 0
      %4109 = vperm.xlu0 %4108, %v4070
      %v4110 = vpop.permute.xlu0 %4109
      %4113 = vset.pattern.permute.xlu0 0
      %4114 = vperm.xlu0 %4113, %v4072
      %v4115 = vpop.permute.xlu0 %4114
      %4118 = vset.pattern.permute.xlu0 0
      %4119 = vperm.xlu0 %4118, %v4074
      %v4120 = vpop.permute.xlu0 %4119
      %4123 = vset.pattern.permute.xlu0 0
      %4124 = vperm.xlu0 %4123, %v4076
      %v4125 = vpop.permute.xlu0 %4124
      %4128 = vset.pattern.permute.xlu0 0
      %4129 = vperm.xlu0 %4128, %v4078
      %v4130 = vpop.permute.xlu0 %4129
      %4133 = vset.pattern.permute.xlu0 0
      %4134 = vperm.xlu0 %4133, %v4080
      %v4135 = vpop.permute.xlu0 %4134
      %4138 = vset.pattern.permute.xlu0 0
      %4139 = vperm.xlu0 %4138, %v4082
      %v4140 = vpop.permute.xlu0 %4139
      %4143 = vset.pattern.permute.xlu0 0
      %4144 = vperm.xlu0 %4143, %v4084
      %v4145 = vpop.permute.xlu0 %4144
      %4148 = vset.pattern.permute.xlu0 0
      %4149 = vperm.xlu0 %4148, %v4086
      %v4150 = vpop.permute.xlu0 %4149
      %4153 = vset.pattern.permute.xlu0 0
      %4154 = vperm.xlu0 %4153, %v4088
      %v4155 = vpop.permute.xlu0 %4154
      %4158 = vset.pattern.permute.xlu0 0
      %4159 = vperm.xlu0 %4158, %v4090
      %v4160 = vpop.permute.xlu0 %4159
      %4163 = vset.pattern.permute.xlu0 0
      %4164 = vperm.xlu0 %4163, %v4092
      %v4165 = vpop.permute.xlu0 %4164
      %4168 = vset.pattern.permute.xlu0 0
      %4169 = vperm.xlu0 %4168, %v4094
      %v4170 = vpop.permute.xlu0 %4169
      %4173 = vset.pattern.permute.xlu0 0
      %4174 = vperm.xlu0 %4173, %v4096
      %v4175 = vpop.permute.xlu0 %4174
      %4178 = vset.pattern.permute.xlu0 0
      %4179 = vperm.xlu0 %4178, %v4098
      %v4180 = vpop.permute.xlu0 %4179
      %4182 = vset.pattern.permute.xlu0 1
      %4183 = vperm.xlu0 %4182, %v4068
      %v4184 = vpop.permute.xlu0 %4183
      %4186 = vset.pattern.permute.xlu0 1
      %4187 = vperm.xlu0 %4186, %v4070
      %v4188 = vpop.permute.xlu0 %4187
      %4190 = vset.pattern.permute.xlu0 1
      %4191 = vperm.xlu0 %4190, %v4072
      %v4192 = vpop.permute.xlu0 %4191
      %4194 = vset.pattern.permute.xlu0 1
      %4195 = vperm.xlu0 %4194, %v4074
      %v4196 = vpop.permute.xlu0 %4195
      %4198 = vset.pattern.permute.xlu0 1
      %4199 = vperm.xlu0 %4198, %v4076
      %v4200 = vpop.permute.xlu0 %4199
      %4202 = vset.pattern.permute.xlu0 1
      %4203 = vperm.xlu0 %4202, %v4078
      %v4204 = vpop.permute.xlu0 %4203
      %4206 = vset.pattern.permute.xlu0 1
      %4207 = vperm.xlu0 %4206, %v4080
      %v4208 = vpop.permute.xlu0 %4207
      %4210 = vset.pattern.permute.xlu0 1
      %4211 = vperm.xlu0 %4210, %v4082
      %v4212 = vpop.permute.xlu0 %4211
      %4214 = vset.pattern.permute.xlu0 1
      %4215 = vperm.xlu0 %4214, %v4084
      %v4216 = vpop.permute.xlu0 %4215
      %4218 = vset.pattern.permute.xlu0 1
      %4219 = vperm.xlu0 %4218, %v4086
      %v4220 = vpop.permute.xlu0 %4219
      %4222 = vset.pattern.permute.xlu0 1
      %4223 = vperm.xlu0 %4222, %v4088
      %v4224 = vpop.permute.xlu0 %4223
      %4226 = vset.pattern.permute.xlu0 1
      %4227 = vperm.xlu0 %4226, %v4090
      %v4228 = vpop.permute.xlu0 %4227
      %4230 = vset.pattern.permute.xlu0 1
      %4231 = vperm.xlu0 %4230, %v4092
      %v4232 = vpop.permute.xlu0 %4231
      %4234 = vset.pattern.permute.xlu0 1
      %4235 = vperm.xlu0 %4234, %v4094
      %v4236 = vpop.permute.xlu0 %4235
      %4238 = vset.pattern.permute.xlu0 1
      %4239 = vperm.xlu0 %4238, %v4096
      %v4240 = vpop.permute.xlu0 %4239
      %4242 = vset.pattern.permute.xlu0 1
      %4243 = vperm.xlu0 %4242, %v4098
      %v4244 = vpop.permute.xlu0 %4243
      %v4246 = vsel %vm4101, %v4105, %v4184
      %v4247 = vsel %vm4101, %v4110, %v4188
      %v4248 = vsel %vm4101, %v4115, %v4192
      %v4249 = vsel %vm4101, %v4120, %v4196
      %v4250 = vsel %vm4101, %v4125, %v4200
      %v4251 = vsel %vm4101, %v4130, %v4204
      %v4252 = vsel %vm4101, %v4135, %v4208
      %v4253 = vsel %vm4101, %v4140, %v4212
      %v4254 = vsel %vm4101, %v4145, %v4216
      %v4255 = vsel %vm4101, %v4150, %v4220
      %v4256 = vsel %vm4101, %v4155, %v4224
      %v4257 = vsel %vm4101, %v4160, %v4228
      %v4258 = vsel %vm4101, %v4165, %v4232
      %v4259 = vsel %vm4101, %v4170, %v4236
      %v4260 = vsel %vm4101, %v4175, %v4240
      %v4261 = vsel %vm4101, %v4180, %v4244
      %4278 = vrot.lane.b32.xlu0 %v3408, 96
      %v4279 = vpop.permute.xlu0 %4278
      %4280 = vrot.lane.b32.xlu0 %v3409, 96
      %v4281 = vpop.permute.xlu0 %4280
      %4282 = vrot.lane.b32.xlu0 %v3410, 96
      %v4283 = vpop.permute.xlu0 %4282
      %4284 = vrot.lane.b32.xlu0 %v3411, 96
      %v4285 = vpop.permute.xlu0 %4284
      %4286 = vrot.lane.b32.xlu0 %v3412, 96
      %v4287 = vpop.permute.xlu0 %4286
      %4288 = vrot.lane.b32.xlu0 %v3413, 96
      %v4289 = vpop.permute.xlu0 %4288
      %4290 = vrot.lane.b32.xlu0 %v3414, 96
      %v4291 = vpop.permute.xlu0 %4290
      %4292 = vrot.lane.b32.xlu0 %v3415, 96
      %v4293 = vpop.permute.xlu0 %4292
      %4294 = vrot.lane.b32.xlu0 %v3416, 96
      %v4295 = vpop.permute.xlu0 %4294
      %4296 = vrot.lane.b32.xlu0 %v3417, 96
      %v4297 = vpop.permute.xlu0 %4296
      %4298 = vrot.lane.b32.xlu0 %v3418, 96
      %v4299 = vpop.permute.xlu0 %4298
      %4300 = vrot.lane.b32.xlu0 %v3419, 96
      %v4301 = vpop.permute.xlu0 %4300
      %4302 = vrot.lane.b32.xlu0 %v3420, 96
      %v4303 = vpop.permute.xlu0 %4302
      %4304 = vrot.lane.b32.xlu0 %v3421, 96
      %v4305 = vpop.permute.xlu0 %4304
      %4306 = vrot.lane.b32.xlu0 %v3422, 96
      %v4307 = vpop.permute.xlu0 %4306
      %4308 = vrot.lane.b32.xlu0 %v3423, 96
      %v4309 = vpop.permute.xlu0 %4308
      %v4326 = vmul.f32 %v4246, %v4279
      %v4327 = vmul.f32 %v4247, %v4281
      %v4328 = vmul.f32 %v4248, %v4283
      %v4329 = vmul.f32 %v4249, %v4285
      %v4330 = vmul.f32 %v4250, %v4287
      %v4331 = vmul.f32 %v4251, %v4289
      %v4332 = vmul.f32 %v4252, %v4291
      %v4333 = vmul.f32 %v4253, %v4293
      %v4334 = vmul.f32 %v4254, %v4295
      %v4335 = vmul.f32 %v4255, %v4297
      %v4336 = vmul.f32 %v4256, %v4299
      %v4337 = vmul.f32 %v4257, %v4301
      %v4338 = vmul.f32 %v4258, %v4303
      %v4339 = vmul.f32 %v4259, %v4305
      %v4340 = vmul.f32 %v4260, %v4307
      %v4341 = vmul.f32 %v4261, %v4309
      %4358 = vrot.lane.b32.xlu0 %v4326, 2
      %v4359 = vpop.permute.xlu0 %4358
      %4360 = vrot.lane.b32.xlu0 %v4327, 2
      %v4361 = vpop.permute.xlu0 %4360
      %4362 = vrot.lane.b32.xlu0 %v4328, 2
      %v4363 = vpop.permute.xlu0 %4362
      %4364 = vrot.lane.b32.xlu0 %v4329, 2
      %v4365 = vpop.permute.xlu0 %4364
      %4366 = vrot.lane.b32.xlu0 %v4330, 2
      %v4367 = vpop.permute.xlu0 %4366
      %4368 = vrot.lane.b32.xlu0 %v4331, 2
      %v4369 = vpop.permute.xlu0 %4368
      %4370 = vrot.lane.b32.xlu0 %v4332, 2
      %v4371 = vpop.permute.xlu0 %4370
      %4372 = vrot.lane.b32.xlu0 %v4333, 2
      %v4373 = vpop.permute.xlu0 %4372
      %4374 = vrot.lane.b32.xlu0 %v4334, 2
      %v4375 = vpop.permute.xlu0 %4374
      %4376 = vrot.lane.b32.xlu0 %v4335, 2
      %v4377 = vpop.permute.xlu0 %4376
      %4378 = vrot.lane.b32.xlu0 %v4336, 2
      %v4379 = vpop.permute.xlu0 %4378
      %4380 = vrot.lane.b32.xlu0 %v4337, 2
      %v4381 = vpop.permute.xlu0 %4380
      %4382 = vrot.lane.b32.xlu0 %v4338, 2
      %v4383 = vpop.permute.xlu0 %4382
      %4384 = vrot.lane.b32.xlu0 %v4339, 2
      %v4385 = vpop.permute.xlu0 %4384
      %4386 = vrot.lane.b32.xlu0 %v4340, 2
      %v4387 = vpop.permute.xlu0 %4386
      %4388 = vrot.lane.b32.xlu0 %v4341, 2
      %v4389 = vpop.permute.xlu0 %4388
      %vm4406 = vcmask 15360
      %v4407 = vsel %vm4406, %v4068, %v4359
      %v4408 = vsel %vm4406, %v4070, %v4361
      %v4409 = vsel %vm4406, %v4072, %v4363
      %v4410 = vsel %vm4406, %v4074, %v4365
      %v4411 = vsel %vm4406, %v4076, %v4367
      %v4412 = vsel %vm4406, %v4078, %v4369
      %v4413 = vsel %vm4406, %v4080, %v4371
      %v4414 = vsel %vm4406, %v4082, %v4373
      %v4415 = vsel %vm4406, %v4084, %v4375
      %v4416 = vsel %vm4406, %v4086, %v4377
      %v4417 = vsel %vm4406, %v4088, %v4379
      %v4418 = vsel %vm4406, %v4090, %v4381
      %v4419 = vsel %vm4406, %v4092, %v4383
      %v4420 = vsel %vm4406, %v4094, %v4385
      %v4421 = vsel %vm4406, %v4096, %v4387
      %v4422 = vsel %vm4406, %v4098, %v4389
      %4423 = vmatprep.subr.mxu0 0.0
      %4424 = vmatpush1.msra.mxu0 %v4407
      %4425 = vmatprep.subr.mxu0 0.0
      %4426 = vmatpush1.msra.mxu0 %v4408
      %4427 = vmatprep.subr.mxu0 0.0
      %4428 = vmatpush1.msra.mxu0 %v4409
      %4429 = vmatprep.subr.mxu0 0.0
      %4430 = vmatpush1.msra.mxu0 %v4410
      %4431 = vmatprep.subr.mxu0 0.0
      %4432 = vmatpush1.msra.mxu0 %v4411
      %4433 = vmatprep.subr.mxu0 0.0
      %4434 = vmatpush1.msra.mxu0 %v4412
      %4435 = vmatprep.subr.mxu0 0.0
      %4436 = vmatpush1.msra.mxu0 %v4413
      %4437 = vmatprep.subr.mxu0 0.0
      %4438 = vmatpush1.msra.mxu0 %v4414
      %4439 = vmatprep.subr.mxu0 0.0
      %4440 = vmatpush1.msra.mxu0 %v4415
      %4441 = vmatprep.subr.mxu0 0.0
      %4442 = vmatpush1.msra.mxu0 %v4416
      %4443 = vmatprep.subr.mxu0 0.0
      %4444 = vmatpush1.msra.mxu0 %v4417
      %4445 = vmatprep.subr.mxu0 0.0
      %4446 = vmatpush1.msra.mxu0 %v4418
      %4447 = vmatprep.subr.mxu0 0.0
      %4448 = vmatpush1.msra.mxu0 %v4419
      %4449 = vmatprep.subr.mxu0 0.0
      %4450 = vmatpush1.msra.mxu0 %v4420
      %4451 = vmatprep.subr.mxu0 0.0
      %4452 = vmatpush1.msra.mxu0 %v4421
      %4453 = vmatprep.subr.mxu0 0.0
      %4454 = vmatpush1.msra.mxu0 %v4422
      %4455 = vmatprep.subr.mxu0 0.0
      %4456 = vmatpush1.msra.mxu0 0.0
      %4457 = vmatprep.subr.mxu0 0.0
      %4458 = vmatpush1.msra.mxu0 0.0
      %4459 = vmatprep.subr.mxu0 0.0
      %4460 = vmatpush1.msra.mxu0 0.0
      %4461 = vmatprep.subr.mxu0 0.0
      %4462 = vmatpush1.msra.mxu0 0.0
      %4463 = vmatprep.subr.mxu0 0.0
      %4464 = vmatpush1.msra.mxu0 0.0
      %4465 = vmatprep.subr.mxu0 0.0
      %4466 = vmatpush1.msra.mxu0 0.0
      %4467 = vmatprep.subr.mxu0 0.0
      %4468 = vmatpush1.msra.mxu0 0.0
      %4469 = vmatprep.subr.mxu0 0.0
      %4470 = vmatpush1.msra.mxu0 0.0
      %4471 = vmatprep.subr.mxu0 0.0
      %4472 = vmatpush1.msra.mxu0 0.0
      %4473 = vmatprep.subr.mxu0 0.0
      %4474 = vmatpush1.msra.mxu0 0.0
      %4475 = vmatprep.subr.mxu0 0.0
      %4476 = vmatpush1.msra.mxu0 0.0
      %4477 = vmatprep.subr.mxu0 0.0
      %4478 = vmatpush1.msra.mxu0 0.0
      %4479 = vmatprep.subr.mxu0 0.0
      %4480 = vmatpush1.msra.mxu0 0.0
      %4481 = vmatprep.subr.mxu0 0.0
      %4482 = vmatpush1.msra.mxu0 0.0
      %4483 = vmatprep.subr.mxu0 0.0
      %4484 = vmatpush1.msra.mxu0 0.0
      %4485 = vmatprep.subr.mxu0 0.0
      %4486 = vmatpush1.msra.mxu0 0.0
      %4487 = vmatprep.mubr.f32.mxu0 0.0
      %4488 = vmatmul.mubr.f32.gmra.mrb[0].mxu0 %v672
      %v4489 = vpop.f32.mrb[0].mxu0
      %v4490 = vadd.f32 0.0, %v4489
      %v4491 = vpop.f32.mrb[0].mxu0
      %4492 = vmatprep.mubr.f32.mxu0 0.0
      %4493 = vmatmul.mubr.f32.gmra.mrb[0].mxu0 %v673
      %v4494 = vpop.f32.mrb[0].mxu0
      %v4495 = vadd.f32 0.0, %v4494
      %v4496 = vpop.f32.mrb[0].mxu0
      %4497 = vmatprep.mubr.f32.mxu0 0.0
      %4498 = vmatmul.mubr.f32.gmra.mrb[0].mxu0 %v674
      %v4499 = vpop.f32.mrb[0].mxu0
      %v4500 = vadd.f32 0.0, %v4499
      %v4501 = vpop.f32.mrb[0].mxu0
      %4502 = vmatprep.mubr.f32.mxu0 0.0
      %4503 = vmatmul.mubr.f32.gmra.mrb[0].mxu0 %v675
      %v4504 = vpop.f32.mrb[0].mxu0
      %v4505 = vadd.f32 0.0, %v4504
      %v4506 = vpop.f32.mrb[0].mxu0
      %4507 = vmatprep.mubr.f32.mxu0 0.0
      %4508 = vmatmul.mubr.f32.gmra.mrb[0].mxu0 %v676
      %v4509 = vpop.f32.mrb[0].mxu0
      %v4510 = vadd.f32 0.0, %v4509
      %v4511 = vpop.f32.mrb[0].mxu0
      %4512 = vmatprep.mubr.f32.mxu0 0.0
      %4513 = vmatmul.mubr.f32.gmra.mrb[0].mxu0 %v677
      %v4514 = vpop.f32.mrb[0].mxu0
      %v4515 = vadd.f32 0.0, %v4514
      %v4516 = vpop.f32.mrb[0].mxu0
      %4517 = vmatprep.mubr.f32.mxu0 0.0
      %4518 = vmatmul.mubr.f32.gmra.mrb[0].mxu0 %v678
      %v4519 = vpop.f32.mrb[0].mxu0
      %v4520 = vadd.f32 0.0, %v4519
      %v4521 = vpop.f32.mrb[0].mxu0
      %4522 = vmatprep.mubr.f32.mxu0 0.0
      %4523 = vmatmul.mubr.f32.gmra.mrb[0].mxu0 %v679
      %v4524 = vpop.f32.mrb[0].mxu0
      %v4525 = vadd.f32 0.0, %v4524
      %v4526 = vpop.f32.mrb[0].mxu0
      %4527 = vdwg.mxu0
      %4528 = vxpose.xlu0.b32.start [1/16] %v4033, 128
      %4529 = vxpose.xlu0.b32.cont [2/16] 0.0, 128
      %4530 = vxpose.xlu0.b32.cont [3/16] 0.0, 128
      %4531 = vxpose.xlu0.b32.cont [4/16] 0.0, 128
      %4532 = vxpose.xlu0.b32.cont [5/16] 0.0, 128
      %4533 = vxpose.xlu0.b32.cont [6/16] 0.0, 128
      %4534 = vxpose.xlu0.b32.cont [7/16] 0.0, 128
      %4535 = vxpose.xlu0.b32.cont [8/16] 0.0, 128
      %4536 = vxpose.xlu0.b32.cont [9/16] 0.0, 128
      %4537 = vxpose.xlu0.b32.cont [10/16] 0.0, 128
      %4538 = vxpose.xlu0.b32.cont [11/16] 0.0, 128
      %4539 = vxpose.xlu0.b32.cont [12/16] 0.0, 128
      %4540 = vxpose.xlu0.b32.cont [13/16] 0.0, 128
      %4541 = vxpose.xlu0.b32.cont [14/16] 0.0, 128
      %4542 = vxpose.xlu0.b32.cont [15/16] 0.0, 128
      %4543 = vxpose.xlu0.b32.end [16/16] 0.0, 128
      %v4544 = vpop.trf.xlu0
      %v4545 = vpop.trf.xlu0
      %v4546 = vpop.trf.xlu0
      %v4547 = vpop.trf.xlu0
      %v4548 = vpop.trf.xlu0
      %v4549 = vpop.trf.xlu0
      %v4550 = vpop.trf.xlu0
      %v4551 = vpop.trf.xlu0
      %v4552 = vpop.trf.xlu0
      %v4553 = vpop.trf.xlu0
      %v4554 = vpop.trf.xlu0
      %v4555 = vpop.trf.xlu0
      %v4556 = vpop.trf.xlu0
      %v4557 = vpop.trf.xlu0
      %v4558 = vpop.trf.xlu0
      %v4559 = vpop.trf.xlu0
      %v4560 = vld [vmem:[#allocation2] sm:$0xff]
      %v4561 = vld [vmem:[#allocation2 + $0x8] sm:$0xff]
      %v4562 = vld [vmem:[#allocation2 + $0x10] sm:$0xff]
      %v4563 = vld [vmem:[#allocation2 + $0x18] sm:$0xff]
      %v4564 = vld [vmem:[#allocation2 + $0x20] sm:$0xff]
      %v4565 = vld [vmem:[#allocation2 + $0x28] sm:$0xff]
      %v4566 = vld [vmem:[#allocation2 + $0x30] sm:$0xff]
      %v4567 = vld [vmem:[#allocation2 + $0x38] sm:$0xff]
      %v4568 = vmax.f32 %v4560, %v4544
      %v4569 = vmax.f32 %v4561, %v4545
      %v4570 = vmax.f32 %v4562, %v4546
      %v4571 = vmax.f32 %v4563, %v4547
      %v4572 = vmax.f32 %v4564, %v4548
      %v4573 = vmax.f32 %v4565, %v4549
      %v4574 = vmax.f32 %v4566, %v4550
      %v4575 = vmax.f32 %v4567, %v4551
      %v4576 = vsub.f32 %v4560, %v4568
      %v4577 = vsub.f32 %v4561, %v4569
      %v4578 = vsub.f32 %v4562, %v4570
      %v4579 = vsub.f32 %v4563, %v4571
      %v4580 = vsub.f32 %v4564, %v4572
      %v4581 = vsub.f32 %v4565, %v4573
      %v4582 = vsub.f32 %v4566, %v4574
      %v4583 = vsub.f32 %v4567, %v4575
      %v4584 = vmul.f32 %v4576, 1.442695
      %v4585 = vpow.pop %v4584
      %v4586 = vmul.f32 %v4577, 1.442695
      %v4587 = vpow.pop %v4586
      %v4588 = vmul.f32 %v4578, 1.442695
      %v4589 = vpow.pop %v4588
      %v4590 = vmul.f32 %v4579, 1.442695
      %v4591 = vpow.pop %v4590
      %v4592 = vmul.f32 %v4580, 1.442695
      %v4593 = vpow.pop %v4592
      %v4594 = vmul.f32 %v4581, 1.442695
      %v4595 = vpow.pop %v4594
      %v4596 = vmul.f32 %v4582, 1.442695
      %v4597 = vpow.pop %v4596
      %v4598 = vmul.f32 %v4583, 1.442695
      %v4599 = vpow.pop %v4598
      %v4600 = vsub.f32 %v4544, %v4568
      %v4601 = vsub.f32 %v4545, %v4569
      %v4602 = vsub.f32 %v4546, %v4570
      %v4603 = vsub.f32 %v4547, %v4571
      %v4604 = vsub.f32 %v4548, %v4572
      %v4605 = vsub.f32 %v4549, %v4573
      %v4606 = vsub.f32 %v4550, %v4574
      %v4607 = vsub.f32 %v4551, %v4575
      %v4608 = vmul.f32 %v4600, 1.442695
      %v4609 = vpow.pop %v4608
      %v4610 = vmul.f32 %v4601, 1.442695
      %v4611 = vpow.pop %v4610
      %v4612 = vmul.f32 %v4602, 1.442695
      %v4613 = vpow.pop %v4612
      %v4614 = vmul.f32 %v4603, 1.442695
      %v4615 = vpow.pop %v4614
      %v4616 = vmul.f32 %v4604, 1.442695
      %v4617 = vpow.pop %v4616
      %v4618 = vmul.f32 %v4605, 1.442695
      %v4619 = vpow.pop %v4618
      %v4620 = vmul.f32 %v4606, 1.442695
      %v4621 = vpow.pop %v4620
      %v4622 = vmul.f32 %v4607, 1.442695
      %v4623 = vpow.pop %v4622
      %vm4624 = vcmp.eq.s32.totalorder %v449, 0
      %vm4625 = vcmp.ge.s32.totalorder %v449, 2
      %vm4626 = vcmp.lt.s32.totalorder %v449, 18
      %vm4627 = vmand %vm4625, %vm4626
      %vm4628 = vmor %vm4624, %vm4627
      %v4629 = vsel %vm4628, 1, 0
      %vm4630 = vcmp.eq.s32.totalorder %v4629, 1
      %4632 = vset.pattern.permute.xlu0 0
      %4633 = vperm.xlu0 %4632, %v4585
      %v4634 = vpop.permute.xlu0 %4633
      %4637 = vset.pattern.permute.xlu0 0
      %4638 = vperm.xlu0 %4637, %v4587
      %v4639 = vpop.permute.xlu0 %4638
      %4642 = vset.pattern.permute.xlu0 0
      %4643 = vperm.xlu0 %4642, %v4589
      %v4644 = vpop.permute.xlu0 %4643
      %4647 = vset.pattern.permute.xlu0 0
      %4648 = vperm.xlu0 %4647, %v4591
      %v4649 = vpop.permute.xlu0 %4648
      %4652 = vset.pattern.permute.xlu0 0
      %4653 = vperm.xlu0 %4652, %v4593
      %v4654 = vpop.permute.xlu0 %4653
      %4657 = vset.pattern.permute.xlu0 0
      %4658 = vperm.xlu0 %4657, %v4595
      %v4659 = vpop.permute.xlu0 %4658
      %4662 = vset.pattern.permute.xlu0 0
      %4663 = vperm.xlu0 %4662, %v4597
      %v4664 = vpop.permute.xlu0 %4663
      %4667 = vset.pattern.permute.xlu0 0
      %4668 = vperm.xlu0 %4667, %v4599
      %v4669 = vpop.permute.xlu0 %4668
      %4671 = vset.pattern.permute.xlu0 1
      %4672 = vperm.xlu0 %4671, %v4585
      %v4673 = vpop.permute.xlu0 %4672
      %4675 = vset.pattern.permute.xlu0 1
      %4676 = vperm.xlu0 %4675, %v4587
      %v4677 = vpop.permute.xlu0 %4676
      %4679 = vset.pattern.permute.xlu0 1
      %4680 = vperm.xlu0 %4679, %v4589
      %v4681 = vpop.permute.xlu0 %4680
      %4683 = vset.pattern.permute.xlu0 1
      %4684 = vperm.xlu0 %4683, %v4591
      %v4685 = vpop.permute.xlu0 %4684
      %4687 = vset.pattern.permute.xlu0 1
      %4688 = vperm.xlu0 %4687, %v4593
      %v4689 = vpop.permute.xlu0 %4688
      %4691 = vset.pattern.permute.xlu0 1
      %4692 = vperm.xlu0 %4691, %v4595
      %v4693 = vpop.permute.xlu0 %4692
      %4695 = vset.pattern.permute.xlu0 1
      %4696 = vperm.xlu0 %4695, %v4597
      %v4697 = vpop.permute.xlu0 %4696
      %4699 = vset.pattern.permute.xlu0 1
      %4700 = vperm.xlu0 %4699, %v4599
      %v4701 = vpop.permute.xlu0 %4700
      %v4703 = vsel %vm4630, %v4634, %v4673
      %v4704 = vsel %vm4630, %v4639, %v4677
      %v4705 = vsel %vm4630, %v4644, %v4681
      %v4706 = vsel %vm4630, %v4649, %v4685
      %v4707 = vsel %vm4630, %v4654, %v4689
      %v4708 = vsel %vm4630, %v4659, %v4693
      %v4709 = vsel %vm4630, %v4664, %v4697
      %v4710 = vsel %vm4630, %v4669, %v4701
      %4712 = vset.pattern.permute.xlu0 0
      %4713 = vperm.xlu0 %4712, %v4609
      %v4714 = vpop.permute.xlu0 %4713
      %4717 = vset.pattern.permute.xlu0 0
      %4718 = vperm.xlu0 %4717, %v4611
      %v4719 = vpop.permute.xlu0 %4718
      %4722 = vset.pattern.permute.xlu0 0
      %4723 = vperm.xlu0 %4722, %v4613
      %v4724 = vpop.permute.xlu0 %4723
      %4727 = vset.pattern.permute.xlu0 0
      %4728 = vperm.xlu0 %4727, %v4615
      %v4729 = vpop.permute.xlu0 %4728
      %4732 = vset.pattern.permute.xlu0 0
      %4733 = vperm.xlu0 %4732, %v4617
      %v4734 = vpop.permute.xlu0 %4733
      %4737 = vset.pattern.permute.xlu0 0
      %4738 = vperm.xlu0 %4737, %v4619
      %v4739 = vpop.permute.xlu0 %4738
      %4742 = vset.pattern.permute.xlu0 0
      %4743 = vperm.xlu0 %4742, %v4621
      %v4744 = vpop.permute.xlu0 %4743
      %4747 = vset.pattern.permute.xlu0 0
      %4748 = vperm.xlu0 %4747, %v4623
      %v4749 = vpop.permute.xlu0 %4748
      %4751 = vset.pattern.permute.xlu0 1
      %4752 = vperm.xlu0 %4751, %v4609
      %v4753 = vpop.permute.xlu0 %4752
      %4755 = vset.pattern.permute.xlu0 1
      %4756 = vperm.xlu0 %4755, %v4611
      %v4757 = vpop.permute.xlu0 %4756
      %4759 = vset.pattern.permute.xlu0 1
      %4760 = vperm.xlu0 %4759, %v4613
      %v4761 = vpop.permute.xlu0 %4760
      %4763 = vset.pattern.permute.xlu0 1
      %4764 = vperm.xlu0 %4763, %v4615
      %v4765 = vpop.permute.xlu0 %4764
      %4767 = vset.pattern.permute.xlu0 1
      %4768 = vperm.xlu0 %4767, %v4617
      %v4769 = vpop.permute.xlu0 %4768
      %4771 = vset.pattern.permute.xlu0 1
      %4772 = vperm.xlu0 %4771, %v4619
      %v4773 = vpop.permute.xlu0 %4772
      %4775 = vset.pattern.permute.xlu0 1
      %4776 = vperm.xlu0 %4775, %v4621
      %v4777 = vpop.permute.xlu0 %4776
      %4779 = vset.pattern.permute.xlu0 1
      %4780 = vperm.xlu0 %4779, %v4623
      %v4781 = vpop.permute.xlu0 %4780
      %v4783 = vsel %vm4630, %v4714, %v4753
      %v4784 = vsel %vm4630, %v4719, %v4757
      %v4785 = vsel %vm4630, %v4724, %v4761
      %v4786 = vsel %vm4630, %v4729, %v4765
      %v4787 = vsel %vm4630, %v4734, %v4769
      %v4788 = vsel %vm4630, %v4739, %v4773
      %v4789 = vsel %vm4630, %v4744, %v4777
      %v4790 = vsel %vm4630, %v4749, %v4781
      %4791 = vst.msk [vmem:[#allocation2] sm:$0xff] %vm4406, %v4568
      %4792 = vst.msk [vmem:[#allocation2 + $0x8] sm:$0xff] %vm4406, %v4569
      %4793 = vst.msk [vmem:[#allocation2 + $0x10] sm:$0xff] %vm4406, %v4570
      %4794 = vst.msk [vmem:[#allocation2 + $0x18] sm:$0xff] %vm4406, %v4571
      %4795 = vst.msk [vmem:[#allocation2 + $0x20] sm:$0xff] %vm4406, %v4572
      %4796 = vst.msk [vmem:[#allocation2 + $0x28] sm:$0xff] %vm4406, %v4573
      %4797 = vst.msk [vmem:[#allocation2 + $0x30] sm:$0xff] %vm4406, %v4574
      %4798 = vst.msk [vmem:[#allocation2 + $0x38] sm:$0xff] %vm4406, %v4575
      %v4799 = vld [vmem:[#allocation3] sm:$0xff]
      %v4800 = vld [vmem:[#allocation3 + $0x8] sm:$0xff]
      %v4801 = vld [vmem:[#allocation3 + $0x10] sm:$0xff]
      %v4802 = vld [vmem:[#allocation3 + $0x18] sm:$0xff]
      %v4803 = vld [vmem:[#allocation3 + $0x20] sm:$0xff]
      %v4804 = vld [vmem:[#allocation3 + $0x28] sm:$0xff]
      %v4805 = vld [vmem:[#allocation3 + $0x30] sm:$0xff]
      %v4806 = vld [vmem:[#allocation3 + $0x38] sm:$0xff]
      %v4807 = vmul.f32 %v4799, %v4703
      %v4808 = vmul.f32 %v4800, %v4704
      %v4809 = vmul.f32 %v4801, %v4705
      %v4810 = vmul.f32 %v4802, %v4706
      %v4811 = vmul.f32 %v4803, %v4707
      %v4812 = vmul.f32 %v4804, %v4708
      %v4813 = vmul.f32 %v4805, %v4709
      %v4814 = vmul.f32 %v4806, %v4710
      %v4815 = vmul.f32 %v4490, %v4783
      %v4816 = vmul.f32 %v4495, %v4784
      %v4817 = vmul.f32 %v4500, %v4785
      %v4818 = vmul.f32 %v4505, %v4786
      %v4819 = vmul.f32 %v4510, %v4787
      %v4820 = vmul.f32 %v4515, %v4788
      %v4821 = vmul.f32 %v4520, %v4789
      %v4822 = vmul.f32 %v4525, %v4790
      %v4823 = vadd.f32 %v4807, %v4815
      %v4824 = vadd.f32 %v4808, %v4816
      %v4825 = vadd.f32 %v4809, %v4817
      %v4826 = vadd.f32 %v4810, %v4818
      %v4827 = vadd.f32 %v4811, %v4819
      %v4828 = vadd.f32 %v4812, %v4820
      %v4829 = vadd.f32 %v4813, %v4821
      %v4830 = vadd.f32 %v4814, %v4822
      %vm4831 = vcmask 277504
      %4832 = vst.msk [vmem:[#allocation3] sm:$0xff] %vm4831, %v4823
      %4833 = vst.msk [vmem:[#allocation3 + $0x8] sm:$0xff] %vm4831, %v4824
      %4834 = vst.msk [vmem:[#allocation3 + $0x10] sm:$0xff] %vm4831, %v4825
      %4835 = vst.msk [vmem:[#allocation3 + $0x18] sm:$0xff] %vm4831, %v4826
      %4836 = vst.msk [vmem:[#allocation3 + $0x20] sm:$0xff] %vm4831, %v4827
      %4837 = vst.msk [vmem:[#allocation3 + $0x28] sm:$0xff] %vm4831, %v4828
      %4838 = vst.msk [vmem:[#allocation3 + $0x30] sm:$0xff] %vm4831, %v4829
      %4839 = vst.msk [vmem:[#allocation3 + $0x38] sm:$0xff] %vm4831, %v4830
      %p4840 = scmp.eq.s32.totalorder %s22, 1
      // Predicated region
      $region69: #{tpu_custom_call.1} parent=63 // pred_check
        %p4841 = pneg %p4840
      $region70: #{tpu_custom_call.1} parent=63 // pred_check_branch
        %4843 = sbr.rel (%p4841) target = $region72
      $region71: #{tpu_custom_call.1} parent=63 // pred_region
        %v4844 = vld [vmem:[#allocation3] sm:$0xff]
        %v4845 = vld [vmem:[#allocation3 + $0x8] sm:$0xff]
        %v4846 = vld [vmem:[#allocation3 + $0x10] sm:$0xff]
        %v4847 = vld [vmem:[#allocation3 + $0x18] sm:$0xff]
        %v4848 = vld [vmem:[#allocation3 + $0x20] sm:$0xff]
        %v4849 = vld [vmem:[#allocation3 + $0x28] sm:$0xff]
        %v4850 = vld [vmem:[#allocation3 + $0x30] sm:$0xff]
        %v4851 = vld [vmem:[#allocation3 + $0x38] sm:$0xff]
        %4853 = vset.pattern.permute.xlu0 0
        %4854 = vperm.xlu0 %4853, %v4844
        %v4855 = vpop.permute.xlu0 %4854
        %4858 = vset.pattern.permute.xlu0 0
        %4859 = vperm.xlu0 %4858, %v4845
        %v4860 = vpop.permute.xlu0 %4859
        %4863 = vset.pattern.permute.xlu0 0
        %4864 = vperm.xlu0 %4863, %v4846
        %v4865 = vpop.permute.xlu0 %4864
        %4868 = vset.pattern.permute.xlu0 0
        %4869 = vperm.xlu0 %4868, %v4847
        %v4870 = vpop.permute.xlu0 %4869
        %4873 = vset.pattern.permute.xlu0 0
        %4874 = vperm.xlu0 %4873, %v4848
        %v4875 = vpop.permute.xlu0 %4874
        %4878 = vset.pattern.permute.xlu0 0
        %4879 = vperm.xlu0 %4878, %v4849
        %v4880 = vpop.permute.xlu0 %4879
        %4883 = vset.pattern.permute.xlu0 0
        %4884 = vperm.xlu0 %4883, %v4850
        %v4885 = vpop.permute.xlu0 %4884
        %4888 = vset.pattern.permute.xlu0 0
        %4889 = vperm.xlu0 %4888, %v4851
        %v4890 = vpop.permute.xlu0 %4889
        %4892 = vset.pattern.permute.xlu0 1
        %4893 = vperm.xlu0 %4892, %v4844
        %v4894 = vpop.permute.xlu0 %4893
        %4896 = vset.pattern.permute.xlu0 1
        %4897 = vperm.xlu0 %4896, %v4845
        %v4898 = vpop.permute.xlu0 %4897
        %4900 = vset.pattern.permute.xlu0 1
        %4901 = vperm.xlu0 %4900, %v4846
        %v4902 = vpop.permute.xlu0 %4901
        %4904 = vset.pattern.permute.xlu0 1
        %4905 = vperm.xlu0 %4904, %v4847
        %v4906 = vpop.permute.xlu0 %4905
        %4908 = vset.pattern.permute.xlu0 1
        %4909 = vperm.xlu0 %4908, %v4848
        %v4910 = vpop.permute.xlu0 %4909
        %4912 = vset.pattern.permute.xlu0 1
        %4913 = vperm.xlu0 %4912, %v4849
        %v4914 = vpop.permute.xlu0 %4913
        %4916 = vset.pattern.permute.xlu0 1
        %4917 = vperm.xlu0 %4916, %v4850
        %v4918 = vpop.permute.xlu0 %4917
        %4920 = vset.pattern.permute.xlu0 1
        %4921 = vperm.xlu0 %4920, %v4851
        %v4922 = vpop.permute.xlu0 %4921
        %v4924 = vsel %vm4101, %v4855, %v4894
        %v4925 = vsel %vm4101, %v4860, %v4898
        %v4926 = vsel %vm4101, %v4865, %v4902
        %v4927 = vsel %vm4101, %v4870, %v4906
        %v4928 = vsel %vm4101, %v4875, %v4910
        %v4929 = vsel %vm4101, %v4880, %v4914
        %v4930 = vsel %vm4101, %v4885, %v4918
        %v4931 = vsel %vm4101, %v4890, %v4922
        %vm4932 = vcmp.gt.f32.partialorder %v4924, 0.0
        %vm4933 = vcmp.gt.f32.partialorder %v4925, 0.0
        %vm4934 = vcmp.gt.f32.partialorder %v4926, 0.0
        %vm4935 = vcmp.gt.f32.partialorder %v4927, 0.0
        %vm4936 = vcmp.gt.f32.partialorder %v4928, 0.0
        %vm4937 = vcmp.gt.f32.partialorder %v4929, 0.0
        %vm4938 = vcmp.gt.f32.partialorder %v4930, 0.0
        %vm4939 = vcmp.gt.f32.partialorder %v4931, 0.0
        %v4940 = vsel %vm4932, %v4924, 1.0
        %v4941 = vsel %vm4933, %v4925, 1.0
        %v4942 = vsel %vm4934, %v4926, 1.0
        %v4943 = vsel %vm4935, %v4927, 1.0
        %v4944 = vsel %vm4936, %v4928, 1.0
        %v4945 = vsel %vm4937, %v4929, 1.0
        %v4946 = vsel %vm4938, %v4930, 1.0
        %v4947 = vsel %vm4939, %v4931, 1.0
        %v4948 = vrcp.pop %v4940
        %v4949 = vrcp.pop %v4941
        %v4950 = vrcp.pop %v4942
        %v4951 = vrcp.pop %v4943
        %v4952 = vrcp.pop %v4944
        %v4953 = vrcp.pop %v4945
        %v4954 = vrcp.pop %v4946
        %v4955 = vrcp.pop %v4947
        %4964 = vrot.lane.b32.xlu0 %v4948, 2
        %v4965 = vpop.permute.xlu0 %4964
        %4966 = vrot.lane.b32.xlu0 %v4949, 2
        %v4967 = vpop.permute.xlu0 %4966
        %4968 = vrot.lane.b32.xlu0 %v4950, 2
        %v4969 = vpop.permute.xlu0 %4968
        %4970 = vrot.lane.b32.xlu0 %v4951, 2
        %v4971 = vpop.permute.xlu0 %4970
        %4972 = vrot.lane.b32.xlu0 %v4952, 2
        %v4973 = vpop.permute.xlu0 %4972
        %4974 = vrot.lane.b32.xlu0 %v4953, 2
        %v4975 = vpop.permute.xlu0 %4974
        %4976 = vrot.lane.b32.xlu0 %v4954, 2
        %v4977 = vpop.permute.xlu0 %4976
        %4978 = vrot.lane.b32.xlu0 %v4955, 2
        %v4979 = vpop.permute.xlu0 %4978
        %v4988 = vmul.f32 %v4844, %v4965
        %v4989 = vmul.f32 %v4845, %v4967
        %v4990 = vmul.f32 %v4846, %v4969
        %v4991 = vmul.f32 %v4847, %v4971
        %v4992 = vmul.f32 %v4848, %v4973
        %v4993 = vmul.f32 %v4849, %v4975
        %v4994 = vmul.f32 %v4850, %v4977
        %v4995 = vmul.f32 %v4851, %v4979
        %v4996 = vld [vmem:[%s5] sm:$0xff]
        %v4997 = vld [vmem:[%s5 + $0x8] sm:$0xff]
        %v4998 = vld [vmem:[%s5 + $0x10] sm:$0xff]
        %v4999 = vld [vmem:[%s5 + $0x18] sm:$0xff]
        %v5000 = vld [vmem:[%s5 + $0x20] sm:$0xff]
        %v5001 = vld [vmem:[%s5 + $0x28] sm:$0xff]
        %v5002 = vld [vmem:[%s5 + $0x30] sm:$0xff]
        %v5003 = vld [vmem:[%s5 + $0x38] sm:$0xff]
        %5012 = vrot.lane.b32.xlu0 %v4996, 2
        %v5013 = vpop.permute.xlu0 %5012
        %5014 = vrot.lane.b32.xlu0 %v4997, 2
        %v5015 = vpop.permute.xlu0 %5014
        %5016 = vrot.lane.b32.xlu0 %v4998, 2
        %v5017 = vpop.permute.xlu0 %5016
        %5018 = vrot.lane.b32.xlu0 %v4999, 2
        %v5019 = vpop.permute.xlu0 %5018
        %5020 = vrot.lane.b32.xlu0 %v5000, 2
        %v5021 = vpop.permute.xlu0 %5020
        %5022 = vrot.lane.b32.xlu0 %v5001, 2
        %v5023 = vpop.permute.xlu0 %5022
        %5024 = vrot.lane.b32.xlu0 %v5002, 2
        %v5025 = vpop.permute.xlu0 %5024
        %5026 = vrot.lane.b32.xlu0 %v5003, 2
        %v5027 = vpop.permute.xlu0 %5026
        %v5036 = vadd.f32 %v4988, %v5013
        %v5037 = vadd.f32 %v4989, %v5015
        %v5038 = vadd.f32 %v4990, %v5017
        %v5039 = vadd.f32 %v4991, %v5019
        %v5040 = vadd.f32 %v4992, %v5021
        %v5041 = vadd.f32 %v4993, %v5023
        %v5042 = vadd.f32 %v4994, %v5025
        %v5043 = vadd.f32 %v4995, %v5027
        %5052 = vrot.lane.b32.xlu0 %v5036, 126
        %v5053 = vpop.permute.xlu0 %5052
        %5054 = vrot.lane.b32.xlu0 %v5037, 126
        %v5055 = vpop.permute.xlu0 %5054
        %5056 = vrot.lane.b32.xlu0 %v5038, 126
        %v5057 = vpop.permute.xlu0 %5056
        %5058 = vrot.lane.b32.xlu0 %v5039, 126
        %v5059 = vpop.permute.xlu0 %5058
        %5060 = vrot.lane.b32.xlu0 %v5040, 126
        %v5061 = vpop.permute.xlu0 %5060
        %5062 = vrot.lane.b32.xlu0 %v5041, 126
        %v5063 = vpop.permute.xlu0 %5062
        %5064 = vrot.lane.b32.xlu0 %v5042, 126
        %v5065 = vpop.permute.xlu0 %5064
        %5066 = vrot.lane.b32.xlu0 %v5043, 126
        %v5067 = vpop.permute.xlu0 %5066
        %5076 = vst.msk [vmem:[%s11] sm:$0xff] %vm3444, %v5053
        %5077 = vst.msk [vmem:[%s11 + $0x8] sm:$0xff] %vm3444, %v5055
        %5078 = vst.msk [vmem:[%s11 + $0x10] sm:$0xff] %vm3444, %v5057
        %5079 = vst.msk [vmem:[%s11 + $0x18] sm:$0xff] %vm3444, %v5059
        %5080 = vst.msk [vmem:[%s11 + $0x20] sm:$0xff] %vm3444, %v5061
        %5081 = vst.msk [vmem:[%s11 + $0x28] sm:$0xff] %vm3444, %v5063
        %5082 = vst.msk [vmem:[%s11 + $0x30] sm:$0xff] %vm3444, %v5065
        %5083 = vst.msk [vmem:[%s11 + $0x38] sm:$0xff] %vm3444, %v5067
      $region72: #{tpu_custom_call.1} parent=63 // pred_fallthru
        _
      // Predicated region
      $region73: #{tpu_custom_call.1} parent=63 // pred_check
        %p5084 = pneg %p281
      $region74: #{tpu_custom_call.1} parent=63 // pred_check_branch
        %5086 = sbr.rel (%p5084) target = $region76
      $region75: #{tpu_custom_call.1} parent=63 // pred_region
        _
      $region76: #{tpu_custom_call.1} parent=63 // pred_fallthru
        _
      // Predicated region
      $region77: #{tpu_custom_call.1} parent=63 // pred_check
        %p5087 = pneg %p281
      $region78: #{tpu_custom_call.1} parent=63 // pred_check_branch
        %5089 = sbr.rel (%p5087) target = $region80
      $region79: #{tpu_custom_call.1} parent=63 // pred_region
        _
      $region80: #{tpu_custom_call.1} parent=63 // pred_fallthru
        _
    $region64: #{tpu_custom_call.1} parent=5 // pred_fallthru
      _
    %p5090 = scmp.le.s32.totalorder 2, %s17
    // Predicated region
    $region81: #{tpu_custom_call.1} parent=5 // pred_check
      %p5091 = pneg %p5090
    $region82: #{tpu_custom_call.1} parent=5 // pred_check_branch
      %5093 = sbr.rel (%p5091) target = $region84
    $region83: #{tpu_custom_call.1} parent=5 // pred_region
      %s5094 = ssub.s32 %s17, 2
    $region84: #{tpu_custom_call.1} parent=5 // pred_fallthru
      _
  $region6: #{tpu_custom_call.1} parent=0 // loop_footer
    %s21 = sadd.s32 1, %s17
  $region7: #{tpu_custom_call.1} parent=0 // loop_footer_branch
    %16 = sbr.rel target = $region3
  $region8: #{tpu_custom_call.1} parent=0 // loop_exit
    _

</llo_original>
